<compile_context>
chip_gen: v7x
topology: tpu7x:2x2x1
jax: 0.10.0
libtpu: 0.0.40
codegen_flags: <defaults>
</compile_context>

<pallas_src>
import functools

import jax
import jax.numpy as jnp
from jax import lax
from jax.experimental import pallas as pl
from jax.experimental.pallas import tpu as pltpu


def _round_up(x, m):
    return ((x + m - 1) // m) * m


# ---------------------------------------------------------------------------
# Pallas kernels
# ---------------------------------------------------------------------------
def _matmul_act_kernel(x_ref, w_ref, o_ref, *, activation):
    """One MXU matmul over the full K, with fused activation epilogue."""
    y = jnp.dot(x_ref[...], w_ref[...], preferred_element_type=jnp.float32)
    if activation == "leaky":
        y = jnp.where(y >= 0, y, 0.2 * y)
    elif activation == "sigmoid":
        y = jax.nn.sigmoid(y)
    o_ref[...] = y.astype(o_ref.dtype)


def _matmul_bn_leaky_kernel(x_ref, w_ref, o_ref, *, m_valid, eps):
    """Conv matmul + BatchNorm(batch stats, identity affine) + LeakyReLU(0.2).

    Requires the whole M (batch*spatial) extent in one block so the batch
    statistics can be reduced in-kernel (true for every BN layer here).
    Accumulation and statistics are f32; the store is bf16.
    """
    y = jnp.dot(x_ref[...], w_ref[...], preferred_element_type=jnp.float32)
    inv_m = 1.0 / m_valid
    mean = jnp.sum(y, axis=0, keepdims=True) * inv_m
    centered = y - mean
    var = jnp.sum(centered * centered, axis=0, keepdims=True) * inv_m
    yn = centered * lax.rsqrt(var + eps)
    o_ref[...] = jnp.where(yn >= 0, yn, 0.2 * yn).astype(o_ref.dtype)


# ---------------------------------------------------------------------------
# Pallas wrappers
# ---------------------------------------------------------------------------
def _pick_tm(m_pad, max_tile=1024):
    """Biggest M tile <= max_tile dividing m_pad (keeps >=2 blocks when large
    so v7x megacore can shard the parallel axis)."""
    if m_pad <= max_tile:
        return m_pad
    for t in (1024, 512, 256, 128, 64, 32, 16, 8):
        if t <= max_tile and m_pad % t == 0:
            return t
    return m_pad


def _pallas_matmul_act(xp, wp, activation, out_dtype):
    """xp: [M_pad, K_pad] bf16, wp: [K_pad, N_pad] bf16 -> act(xp @ wp)."""
    m_pad, k_pad = xp.shape
    _, n_pad = wp.shape
    tm = _pick_tm(m_pad)
    kernel = functools.partial(_matmul_act_kernel, activation=activation)
    return pl.pallas_call(
        kernel,
        out_shape=jax.ShapeDtypeStruct((m_pad, n_pad), out_dtype),
        grid_spec=pltpu.PrefetchScalarGridSpec(
            num_scalar_prefetch=0,
            grid=(m_pad // tm,),
            in_specs=[
                pl.BlockSpec((tm, k_pad), lambda i: (i, 0)),
                pl.BlockSpec((k_pad, n_pad), lambda i: (0, 0)),
            ],
            out_specs=pl.BlockSpec((tm, n_pad), lambda i: (i, 0)),
        ),
        compiler_params=pltpu.CompilerParams(
            dimension_semantics=("parallel",)
        ),
    )(xp, wp)


def _pallas_matmul_bn_leaky(xp, wp, out_dtype, eps=1e-5):
    """Fused conv-matmul + BN(batch stats) + LeakyReLU, single VMEM block."""
    m_pad, k_pad = xp.shape
    _, n_pad = wp.shape
    kernel = functools.partial(
        _matmul_bn_leaky_kernel, m_valid=float(m_pad), eps=eps
    )
    return pl.pallas_call(
        kernel,
        out_shape=jax.ShapeDtypeStruct((m_pad, n_pad), out_dtype),
        grid_spec=pltpu.PrefetchScalarGridSpec(
            num_scalar_prefetch=0,
            grid=(1,),
            in_specs=[
                pl.BlockSpec((m_pad, k_pad), lambda i: (0, 0)),
                pl.BlockSpec((k_pad, n_pad), lambda i: (0, 0)),
            ],
            out_specs=pl.BlockSpec((m_pad, n_pad), lambda i: (0, 0)),
        ),
        compiler_params=pltpu.CompilerParams(
            dimension_semantics=("arbitrary",)
        ),
    )(xp, wp)


# ---------------------------------------------------------------------------
# Glue: patch extraction + conv layer
# ---------------------------------------------------------------------------
def _extract_patches(x_nhwc, kh, kw, stride, pad):
    """[N,H,W,C] -> ([N*Hout*Wout, C*kh*kw], Hout, Wout); channel-major K."""
    patches = lax.conv_general_dilated_patches(
        x_nhwc,
        filter_shape=(kh, kw),
        window_strides=(stride, stride),
        padding=((pad, pad), (pad, pad)),
        dimension_numbers=("NHWC", "HWIO", "NHWC"),
    )
    n, hout, wout, k = patches.shape
    return patches.reshape(n * hout * wout, k), hout, wout


def _conv_block(x_nhwc, wp, cfg):
    kh, kw, cin, cout, stride, pad, kind = cfg
    n = x_nhwc.shape[0]
    cols, hout, wout = _extract_patches(x_nhwc, kh, kw, stride, pad)
    m, k = cols.shape
    k_pad, _ = wp.shape
    m_pad = _round_up(m, 8)
    xp = cols
    if m_pad != m or k_pad != k:
        xp = jnp.pad(cols, ((0, m_pad - m), (0, k_pad - k)))
    xp = xp.astype(jnp.bfloat16)

    if kind == "bn_leaky":
        # Whole M fits in one block (<=512 rows here), so batch statistics are
        # computed inside the kernel. Requires no row padding.
        assert m_pad == m, "fused BN path requires M to be a multiple of 8"
        y = _pallas_matmul_bn_leaky(xp, wp, jnp.bfloat16)
    elif kind == "leaky":
        y = _pallas_matmul_act(xp, wp, "leaky", jnp.bfloat16)
    else:  # "sigmoid" — final layer, keep f32 output
        y = _pallas_matmul_act(xp, wp, "sigmoid", jnp.float32)

    return y[:m, :cout].reshape(n, hout, wout, cout)


# ---------------------------------------------------------------------------
# NetD: init + forward
# ---------------------------------------------------------------------------
def _layer_cfgs(ndf):
    # (kh, kw, cin, cout, stride, pad, kind)
    return (
        (5, 5, 3,       ndf,     3, 1, "leaky"),
        (4, 4, ndf,     ndf * 2, 2, 1, "bn_leaky"),
        (4, 4, ndf * 2, ndf * 4, 2, 1, "bn_leaky"),
        (4, 4, ndf * 4, ndf * 8, 2, 1, "bn_leaky"),
        (4, 4, ndf * 8, 1,       1, 0, "sigmoid"),
    )


def netd_init(key, ndf=8):
    """Returns per-layer weights already flattened (channel-major), padded to
    (K_pad, N_pad) and cast to bf16 — no per-forward weight prep needed."""
    cfgs = _layer_cfgs(ndf)
    keys = jax.random.split(key, len(cfgs))
    weights = []
    for k, (kh, kw, cin, cout, _stride, _pad, _kind) in zip(keys, cfgs):
        w = 0.02 * jax.random.normal(k, (kh, kw, cin, cout), jnp.float32)
        # Channel-major flatten: K index = c * (kh*kw) + (i*kw + j), matching
        # lax.conv_general_dilated_patches' feature ordering.
        w2d = jnp.transpose(w, (2, 0, 1, 3)).reshape(cin * kh * kw, cout)
        kdim, ndim = w2d.shape
        k_pad = _round_up(kdim, 128)
        n_pad = _round_up(ndim, 128)
        wp = jnp.pad(w2d, ((0, k_pad - kdim), (0, n_pad - ndim)))
        weights.append(wp.astype(jnp.bfloat16))
    return tuple(weights)


@functools.partial(jax.jit, static_argnames=("ndf",))
def netd_forward(x_nchw, weights, ndf=8):
    cfgs = _layer_cfgs(ndf)
    # PyTorch feeds NCHW; convert once to NHWC bf16 for the kernels.
    x = jnp.transpose(x_nchw, (0, 2, 3, 1)).astype(jnp.bfloat16)
    for wp, cfg in zip(weights, cfgs):
        x = _conv_block(x, wp, cfg)
    # [N, 1, 1, 1] -> view(-1) -> [N]
    return x.reshape(-1).astype(jnp.float32)


if __name__ == "__main__":
    key = jax.random.PRNGKey(0)
    k_img, k_par = jax.random.split(key)

    batch, ndf = 2, 8
    # 96x96 input is what this architecture implies (5/3/1, then three 4/2/1
    # convs, then a 4x4 valid conv -> 1x1 spatial output).
    x = jax.random.normal(k_img, (batch, 3, 96, 96), jnp.float32)
    weights = netd_init(k_par, ndf=ndf)

    out = netd_forward(x, weights, ndf=ndf)
    out = jax.block_until_ready(out)

    assert out.shape == (batch,), out.shape
    assert bool(jnp.all(jnp.isfinite(out)))
    assert bool(jnp.all((out >= 0.0) & (out <= 1.0)))
    print("KERNEL_OK")
</pallas_src>

<mosaic_0001>
module attributes {stable_mosaic.version = 11 : i64} {
  func.func @_matmul_act_kernel(%arg0: i32, %arg1: memref<1024x128xbf16, #tpu.memory_space<vmem>>, %arg2: memref<128x128xbf16, #tpu.memory_space<vmem>>, %arg3: memref<1024x128xbf16, #tpu.memory_space<vmem>>) attributes {dimension_semantics = [#tpu.dimension_semantics<parallel>], iteration_bounds = array<i64: 2>, scalar_prefetch = 0 : i64, scratch_operands = 0 : i64, tpu.core_type = #tpu.core_type<tc>, window_params = [{transform_indices = @transform_0, window_bounds = array<i64: 1024, 128>}, {pipeline_mode = #tpu.pipeline_mode<synchronous>, transform_indices = @transform_1, window_bounds = array<i64: 128, 128>}, {transform_indices = @transform_2, window_bounds = array<i64: 1024, 128>}]} {
    %c0 = arith.constant 0 : index
    %c0_0 = arith.constant 0 : index
    %0 = vector.load %arg1[%c0, %c0_0] : memref<1024x128xbf16, #tpu.memory_space<vmem>>, vector<1024x128xbf16>
    %c0_1 = arith.constant 0 : index
    %c0_2 = arith.constant 0 : index
    %1 = vector.load %arg2[%c0_1, %c0_2] : memref<128x128xbf16, #tpu.memory_space<vmem>>, vector<128x128xbf16>
    %cst = arith.constant dense<0.000000e+00> : vector<1024x128xf32>
    %2 = tpu.matmul %0, %1, %cst {dimension_numbers = #tpu.dot_dimension_numbers<[1], [0], [0], [1], [0, 0, 1, 1], [], []>} : vector<1024x128xbf16>, vector<128x128xbf16>, vector<1024x128xf32> -> vector<1024x128xf32>
    %cst_3 = arith.constant 0.000000e+00 : f32
    %3 = vector.broadcast %cst_3 : f32 to vector<1024x128xf32>
    %4 = arith.cmpf oge, %2, %3 : vector<1024x128xf32>
    %cst_4 = arith.constant 2.000000e-01 : f32
    %5 = vector.broadcast %cst_4 : f32 to vector<1024x128xf32>
    %6 = arith.mulf %5, %2 : vector<1024x128xf32>
    %7 = arith.select %4, %2, %6 : vector<1024x128xi1>, vector<1024x128xf32>
    %8 = arith.truncf %7 : vector<1024x128xf32> to vector<1024x128xbf16>
    %c0_5 = arith.constant 0 : index
    %c0_6 = arith.constant 0 : index
    %9 = vector.load %arg3[%c0_5, %c0_6] : memref<1024x128xbf16, #tpu.memory_space<vmem>>, vector<1024x128xbf16>
    tpu.vector_store %arg3[%c0_5, %c0_6], %8 {strides = array<i32>} : memref<1024x128xbf16, #tpu.memory_space<vmem>>, vector<1024x128xbf16>,
    return
  }
  func.func @transform_0(%arg0: i32) -> (i32, i32) {
    %c0_i32 = arith.constant 0 : i32
    %c0_i32_0 = arith.constant 0 : i32
    return %arg0, %c0_i32 : i32, i32
  }
  func.func @transform_1(%arg0: i32) -> (i32, i32) {
    %c0_i32 = arith.constant 0 : i32
    %c0_i32_0 = arith.constant 0 : i32
    %c0_i32_1 = arith.constant 0 : i32
    return %c0_i32, %c0_i32_0 : i32, i32
  }
  func.func @transform_2(%arg0: i32) -> (i32, i32) {
    %c0_i32 = arith.constant 0 : i32
    %c0_i32_0 = arith.constant 0 : i32
    return %arg0, %c0_i32 : i32, i32
  }
}

module attributes {stable_mosaic.version = 11 : i64} {
  func.func @_matmul_bn_leaky_kernel(%arg0: i32, %arg1: memref<512x128xbf16, #tpu.memory_space<vmem>>, %arg2: memref<128x128xbf16, #tpu.memory_space<vmem>>, %arg3: memref<512x128xbf16, #tpu.memory_space<vmem>>) attributes {dimension_semantics = [#tpu.dimension_semantics<arbitrary>], iteration_bounds = array<i64: 1>, scalar_prefetch = 0 : i64, scratch_operands = 0 : i64, tpu.core_type = #tpu.core_type<tc>, window_params = [{pipeline_mode = #tpu.pipeline_mode<synchronous>, transform_indices = @transform_0, window_bounds = array<i64: 512, 128>}, {pipeline_mode = #tpu.pipeline_mode<synchronous>, transform_indices = @transform_1, window_bounds = array<i64: 128, 128>}, {pipeline_mode = #tpu.pipeline_mode<synchronous>, transform_indices = @transform_2, window_bounds = array<i64: 512, 128>}]} {
    %c0 = arith.constant 0 : index
    %c0_0 = arith.constant 0 : index
    %0 = vector.load %arg1[%c0, %c0_0] : memref<512x128xbf16, #tpu.memory_space<vmem>>, vector<512x128xbf16>
    %c0_1 = arith.constant 0 : index
    %c0_2 = arith.constant 0 : index
    %1 = vector.load %arg2[%c0_1, %c0_2] : memref<128x128xbf16, #tpu.memory_space<vmem>>, vector<128x128xbf16>
    %cst = arith.constant dense<0.000000e+00> : vector<512x128xf32>
    %2 = tpu.matmul %0, %1, %cst {dimension_numbers = #tpu.dot_dimension_numbers<[1], [0], [0], [1], [0, 0, 1, 1], [], []>} : vector<512x128xbf16>, vector<128x128xbf16>, vector<512x128xf32> -> vector<512x128xf32>
    %cst_3 = arith.constant dense<0.000000e+00> : vector<128xf32>
    %3 = vector.multi_reduction <add>, %2, %cst_3 [0] : vector<512x128xf32> to vector<128xf32>
    %4 = vector.shape_cast %3 : vector<128xf32> to vector<1x128xf32>
    %cst_4 = arith.constant 0.001953125 : f32
    %5 = vector.broadcast %cst_4 : f32 to vector<1x128xf32>
    %6 = arith.mulf %4, %5 : vector<1x128xf32>
    %7 = vector.broadcast %6 : vector<1x128xf32> to vector<512x128xf32>
    %8 = arith.subf %2, %7 : vector<512x128xf32>
    %9 = arith.mulf %8, %8 : vector<512x128xf32>
    %cst_5 = arith.constant dense<0.000000e+00> : vector<128xf32>
    %10 = vector.multi_reduction <add>, %9, %cst_5 [0] : vector<512x128xf32> to vector<128xf32>
    %11 = vector.shape_cast %10 : vector<128xf32> to vector<1x128xf32>
    %cst_6 = arith.constant 0.001953125 : f32
    %12 = vector.broadcast %cst_6 : f32 to vector<1x128xf32>
    %13 = arith.mulf %11, %12 : vector<1x128xf32>
    %cst_7 = arith.constant 9.99999974E-6 : f32
    %14 = vector.broadcast %cst_7 : f32 to vector<1x128xf32>
    %15 = arith.addf %13, %14 : vector<1x128xf32>
    %16 = math.rsqrt %15 : vector<1x128xf32>
    %17 = vector.broadcast %16 : vector<1x128xf32> to vector<512x128xf32>
    %18 = arith.mulf %8, %17 : vector<512x128xf32>
    %cst_8 = arith.constant 0.000000e+00 : f32
    %19 = vector.broadcast %cst_8 : f32 to vector<512x128xf32>
    %20 = arith.cmpf oge, %18, %19 : vector<512x128xf32>
    %cst_9 = arith.constant 2.000000e-01 : f32
    %21 = vector.broadcast %cst_9 : f32 to vector<512x128xf32>
    %22 = arith.mulf %21, %18 : vector<512x128xf32>
    %23 = arith.select %20, %18, %22 : vector<512x128xi1>, vector<512x128xf32>
    %24 = arith.truncf %23 : vector<512x128xf32> to vector<512x128xbf16>
    %c0_10 = arith.constant 0 : index
    %c0_11 = arith.constant 0 : index
    %25 = vector.load %arg3[%c0_10, %c0_11] : memref<512x128xbf16, #tpu.memory_space<vmem>>, vector<512x128xbf16>
    tpu.vector_store %arg3[%c0_10, %c0_11], %24 {strides = array<i32>} : memref<512x128xbf16, #tpu.memory_space<vmem>>, vector<512x128xbf16>,
    return
  }
  func.func @transform_0(%arg0: i32) -> (i32, i32) {
    %c0_i32 = arith.constant 0 : i32
    %c0_i32_0 = arith.constant 0 : i32
    %c0_i32_1 = arith.constant 0 : i32
    return %c0_i32, %c0_i32_0 : i32, i32
  }
  func.func @transform_1(%arg0: i32) -> (i32, i32) {
    %c0_i32 = arith.constant 0 : i32
    %c0_i32_0 = arith.constant 0 : i32
    %c0_i32_1 = arith.constant 0 : i32
    return %c0_i32, %c0_i32_0 : i32, i32
  }
  func.func @transform_2(%arg0: i32) -> (i32, i32) {
    %c0_i32 = arith.constant 0 : i32
    %c0_i32_0 = arith.constant 0 : i32
    %c0_i32_1 = arith.constant 0 : i32
    return %c0_i32, %c0_i32_0 : i32, i32
  }
}

module attributes {stable_mosaic.version = 11 : i64} {
  func.func @_matmul_bn_leaky_kernel(%arg0: i32, %arg1: memref<128x256xbf16, #tpu.memory_space<vmem>>, %arg2: memref<256x128xbf16, #tpu.memory_space<vmem>>, %arg3: memref<128x128xbf16, #tpu.memory_space<vmem>>) attributes {dimension_semantics = [#tpu.dimension_semantics<arbitrary>], iteration_bounds = array<i64: 1>, scalar_prefetch = 0 : i64, scratch_operands = 0 : i64, tpu.core_type = #tpu.core_type<tc>, window_params = [{pipeline_mode = #tpu.pipeline_mode<synchronous>, transform_indices = @transform_0, window_bounds = array<i64: 128, 256>}, {pipeline_mode = #tpu.pipeline_mode<synchronous>, transform_indices = @transform_1, window_bounds = array<i64: 256, 128>}, {pipeline_mode = #tpu.pipeline_mode<synchronous>, transform_indices = @transform_2, window_bounds = array<i64: 128, 128>}]} {
    %c0 = arith.constant 0 : index
    %c0_0 = arith.constant 0 : index
    %0 = vector.load %arg1[%c0, %c0_0] : memref<128x256xbf16, #tpu.memory_space<vmem>>, vector<128x256xbf16>
    %c0_1 = arith.constant 0 : index
    %c0_2 = arith.constant 0 : index
    %1 = vector.load %arg2[%c0_1, %c0_2] : memref<256x128xbf16, #tpu.memory_space<vmem>>, vector<256x128xbf16>
    %cst = arith.constant dense<0.000000e+00> : vector<128x128xf32>
    %2 = tpu.matmul %0, %1, %cst {dimension_numbers = #tpu.dot_dimension_numbers<[1], [0], [0], [1], [0, 0, 1, 1], [], []>} : vector<128x256xbf16>, vector<256x128xbf16>, vector<128x128xf32> -> vector<128x128xf32>
    %cst_3 = arith.constant dense<0.000000e+00> : vector<128xf32>
    %3 = vector.multi_reduction <add>, %2, %cst_3 [0] : vector<128x128xf32> to vector<128xf32>
    %4 = vector.shape_cast %3 : vector<128xf32> to vector<1x128xf32>
    %cst_4 = arith.constant 7.812500e-03 : f32
    %5 = vector.broadcast %cst_4 : f32 to vector<1x128xf32>
    %6 = arith.mulf %4, %5 : vector<1x128xf32>
    %7 = vector.broadcast %6 : vector<1x128xf32> to vector<128x128xf32>
    %8 = arith.subf %2, %7 : vector<128x128xf32>
    %9 = arith.mulf %8, %8 : vector<128x128xf32>
    %cst_5 = arith.constant dense<0.000000e+00> : vector<128xf32>
    %10 = vector.multi_reduction <add>, %9, %cst_5 [0] : vector<128x128xf32> to vector<128xf32>
    %11 = vector.shape_cast %10 : vector<128xf32> to vector<1x128xf32>
    %cst_6 = arith.constant 7.812500e-03 : f32
    %12 = vector.broadcast %cst_6 : f32 to vector<1x128xf32>
    %13 = arith.mulf %11, %12 : vector<1x128xf32>
    %cst_7 = arith.constant 9.99999974E-6 : f32
    %14 = vector.broadcast %cst_7 : f32 to vector<1x128xf32>
    %15 = arith.addf %13, %14 : vector<1x128xf32>
    %16 = math.rsqrt %15 : vector<1x128xf32>
    %17 = vector.broadcast %16 : vector<1x128xf32> to vector<128x128xf32>
    %18 = arith.mulf %8, %17 : vector<128x128xf32>
    %cst_8 = arith.constant 0.000000e+00 : f32
    %19 = vector.broadcast %cst_8 : f32 to vector<128x128xf32>
    %20 = arith.cmpf oge, %18, %19 : vector<128x128xf32>
    %cst_9 = arith.constant 2.000000e-01 : f32
    %21 = vector.broadcast %cst_9 : f32 to vector<128x128xf32>
    %22 = arith.mulf %21, %18 : vector<128x128xf32>
    %23 = arith.select %20, %18, %22 : vector<128x128xi1>, vector<128x128xf32>
    %24 = arith.truncf %23 : vector<128x128xf32> to vector<128x128xbf16>
    %c0_10 = arith.constant 0 : index
    %c0_11 = arith.constant 0 : index
    %25 = vector.load %arg3[%c0_10, %c0_11] : memref<128x128xbf16, #tpu.memory_space<vmem>>, vector<128x128xbf16>
    tpu.vector_store %arg3[%c0_10, %c0_11], %24 {strides = array<i32>} : memref<128x128xbf16, #tpu.memory_space<vmem>>, vector<128x128xbf16>,
    return
  }
  func.func @transform_0(%arg0: i32) -> (i32, i32) {
    %c0_i32 = arith.constant 0 : i32
    %c0_i32_0 = arith.constant 0 : i32
    %c0_i32_1 = arith.constant 0 : i32
    return %c0_i32, %c0_i32_0 : i32, i32
  }
  func.func @transform_1(%arg0: i32) -> (i32, i32) {
    %c0_i32 = arith.constant 0 : i32
    %c0_i32_0 = arith.constant 0 : i32
    %c0_i32_1 = arith.constant 0 : i32
    return %c0_i32, %c0_i32_0 : i32, i32
  }
  func.func @transform_2(%arg0: i32) -> (i32, i32) {
    %c0_i32 = arith.constant 0 : i32
    %c0_i32_0 = arith.constant 0 : i32
    %c0_i32_1 = arith.constant 0 : i32
    return %c0_i32, %c0_i32_0 : i32, i32
  }
}

module attributes {stable_mosaic.version = 11 : i64} {
  func.func @_matmul_bn_leaky_kernel(%arg0: i32, %arg1: memref<32x512xbf16, #tpu.memory_space<vmem>>, %arg2: memref<512x128xbf16, #tpu.memory_space<vmem>>, %arg3: memref<32x128xbf16, #tpu.memory_space<vmem>>) attributes {dimension_semantics = [#tpu.dimension_semantics<arbitrary>], iteration_bounds = array<i64: 1>, scalar_prefetch = 0 : i64, scratch_operands = 0 : i64, tpu.core_type = #tpu.core_type<tc>, window_params = [{pipeline_mode = #tpu.pipeline_mode<synchronous>, transform_indices = @transform_0, window_bounds = array<i64: 32, 512>}, {pipeline_mode = #tpu.pipeline_mode<synchronous>, transform_indices = @transform_1, window_bounds = array<i64: 512, 128>}, {pipeline_mode = #tpu.pipeline_mode<synchronous>, transform_indices = @transform_2, window_bounds = array<i64: 32, 128>}]} {
    %c0 = arith.constant 0 : index
    %c0_0 = arith.constant 0 : index
    %0 = vector.load %arg1[%c0, %c0_0] : memref<32x512xbf16, #tpu.memory_space<vmem>>, vector<32x512xbf16>
    %c0_1 = arith.constant 0 : index
    %c0_2 = arith.constant 0 : index
    %1 = vector.load %arg2[%c0_1, %c0_2] : memref<512x128xbf16, #tpu.memory_space<vmem>>, vector<512x128xbf16>
    %cst = arith.constant dense<0.000000e+00> : vector<32x128xf32>
    %2 = tpu.matmul %0, %1, %cst {dimension_numbers = #tpu.dot_dimension_numbers<[1], [0], [0], [1], [0, 0, 1, 1], [], []>} : vector<32x512xbf16>, vector<512x128xbf16>, vector<32x128xf32> -> vector<32x128xf32>
    %cst_3 = arith.constant dense<0.000000e+00> : vector<128xf32>
    %3 = vector.multi_reduction <add>, %2, %cst_3 [0] : vector<32x128xf32> to vector<128xf32>
    %4 = vector.shape_cast %3 : vector<128xf32> to vector<1x128xf32>
    %cst_4 = arith.constant 3.125000e-02 : f32
    %5 = vector.broadcast %cst_4 : f32 to vector<1x128xf32>
    %6 = arith.mulf %4, %5 : vector<1x128xf32>
    %7 = vector.broadcast %6 : vector<1x128xf32> to vector<32x128xf32>
    %8 = arith.subf %2, %7 : vector<32x128xf32>
    %9 = arith.mulf %8, %8 : vector<32x128xf32>
    %cst_5 = arith.constant dense<0.000000e+00> : vector<128xf32>
    %10 = vector.multi_reduction <add>, %9, %cst_5 [0] : vector<32x128xf32> to vector<128xf32>
    %11 = vector.shape_cast %10 : vector<128xf32> to vector<1x128xf32>
    %cst_6 = arith.constant 3.125000e-02 : f32
    %12 = vector.broadcast %cst_6 : f32 to vector<1x128xf32>
    %13 = arith.mulf %11, %12 : vector<1x128xf32>
    %cst_7 = arith.constant 9.99999974E-6 : f32
    %14 = vector.broadcast %cst_7 : f32 to vector<1x128xf32>
    %15 = arith.addf %13, %14 : vector<1x128xf32>
    %16 = math.rsqrt %15 : vector<1x128xf32>
    %17 = vector.broadcast %16 : vector<1x128xf32> to vector<32x128xf32>
    %18 = arith.mulf %8, %17 : vector<32x128xf32>
    %cst_8 = arith.constant 0.000000e+00 : f32
    %19 = vector.broadcast %cst_8 : f32 to vector<32x128xf32>
    %20 = arith.cmpf oge, %18, %19 : vector<32x128xf32>
    %cst_9 = arith.constant 2.000000e-01 : f32
    %21 = vector.broadcast %cst_9 : f32 to vector<32x128xf32>
    %22 = arith.mulf %21, %18 : vector<32x128xf32>
    %23 = arith.select %20, %18, %22 : vector<32x128xi1>, vector<32x128xf32>
    %24 = arith.truncf %23 : vector<32x128xf32> to vector<32x128xbf16>
    %c0_10 = arith.constant 0 : index
    %c0_11 = arith.constant 0 : index
    %25 = vector.load %arg3[%c0_10, %c0_11] : memref<32x128xbf16, #tpu.memory_space<vmem>>, vector<32x128xbf16>
    tpu.vector_store %arg3[%c0_10, %c0_11], %24 {strides = array<i32>} : memref<32x128xbf16, #tpu.memory_space<vmem>>, vector<32x128xbf16>,
    return
  }
  func.func @transform_0(%arg0: i32) -> (i32, i32) {
    %c0_i32 = arith.constant 0 : i32
    %c0_i32_0 = arith.constant 0 : i32
    %c0_i32_1 = arith.constant 0 : i32
    return %c0_i32, %c0_i32_0 : i32, i32
  }
  func.func @transform_1(%arg0: i32) -> (i32, i32) {
    %c0_i32 = arith.constant 0 : i32
    %c0_i32_0 = arith.constant 0 : i32
    %c0_i32_1 = arith.constant 0 : i32
    return %c0_i32, %c0_i32_0 : i32, i32
  }
  func.func @transform_2(%arg0: i32) -> (i32, i32) {
    %c0_i32 = arith.constant 0 : i32
    %c0_i32_0 = arith.constant 0 : i32
    %c0_i32_1 = arith.constant 0 : i32
    return %c0_i32, %c0_i32_0 : i32, i32
  }
}

module attributes {stable_mosaic.version = 11 : i64} {
  func.func @_matmul_act_kernel(%arg0: i32, %arg1: memref<8x1024xbf16, #tpu.memory_space<vmem>>, %arg2: memref<1024x128xbf16, #tpu.memory_space<vmem>>, %arg3: memref<8x128xf32, #tpu.memory_space<vmem>>) attributes {dimension_semantics = [#tpu.dimension_semantics<parallel>], iteration_bounds = array<i64: 1>, scalar_prefetch = 0 : i64, scratch_operands = 0 : i64, tpu.core_type = #tpu.core_type<tc>, window_params = [{transform_indices = @transform_0, window_bounds = array<i64: 8, 1024>}, {pipeline_mode = #tpu.pipeline_mode<synchronous>, transform_indices = @transform_1, window_bounds = array<i64: 1024, 128>}, {transform_indices = @transform_2, window_bounds = array<i64: 8, 128>}]} {
    %c0 = arith.constant 0 : index
    %c0_0 = arith.constant 0 : index
    %0 = vector.load %arg1[%c0, %c0_0] : memref<8x1024xbf16, #tpu.memory_space<vmem>>, vector<8x1024xbf16>
    %c0_1 = arith.constant 0 : index
    %c0_2 = arith.constant 0 : index
    %1 = vector.load %arg2[%c0_1, %c0_2] : memref<1024x128xbf16, #tpu.memory_space<vmem>>, vector<1024x128xbf16>
    %cst = arith.constant dense<0.000000e+00> : vector<8x128xf32>
    %2 = tpu.matmul %0, %1, %cst {dimension_numbers = #tpu.dot_dimension_numbers<[1], [0], [0], [1], [0, 0, 1, 1], [], []>} : vector<8x1024xbf16>, vector<1024x128xbf16>, vector<8x128xf32> -> vector<8x128xf32>
    %3 = arith.negf %2 : vector<8x128xf32>
    %4 = math.exp %3 : vector<8x128xf32>
    %cst_3 = arith.constant 1.000000e+00 : f32
    %5 = vector.broadcast %cst_3 : f32 to vector<8x128xf32>
    %6 = arith.addf %5, %4 : vector<8x128xf32>
    %7 = arith.divf %5, %6 : vector<8x128xf32>
    %c0_4 = arith.constant 0 : index
    %c0_5 = arith.constant 0 : index
    %8 = vector.load %arg3[%c0_4, %c0_5] : memref<8x128xf32, #tpu.memory_space<vmem>>, vector<8x128xf32>
    tpu.vector_store %arg3[%c0_4, %c0_5], %7 {strides = array<i32>} : memref<8x128xf32, #tpu.memory_space<vmem>>, vector<8x128xf32>,
    return
  }
  func.func @transform_0(%arg0: i32) -> (i32, i32) {
    %c0_i32 = arith.constant 0 : i32
    %c0_i32_0 = arith.constant 0 : i32
    return %arg0, %c0_i32 : i32, i32
  }
  func.func @transform_1(%arg0: i32) -> (i32, i32) {
    %c0_i32 = arith.constant 0 : i32
    %c0_i32_0 = arith.constant 0 : i32
    %c0_i32_1 = arith.constant 0 : i32
    return %c0_i32, %c0_i32_0 : i32, i32
  }
  func.func @transform_2(%arg0: i32) -> (i32, i32) {
    %c0_i32 = arith.constant 0 : i32
    %c0_i32_0 = arith.constant 0 : i32
    return %arg0, %c0_i32 : i32, i32
  }
}

</mosaic_0001>

<llo_original>
// kernel: netd_forward.5
$region0: #{netd_forward.5}
  #allocation0 [shape = 'u32[]', space=smem, size = 0x4, offset = 0x4, fixed_abs, tag = 'smem constant byte address 0x4 - core index']
  #allocation1 [shape = 'u32[144,128]{1,0:T(1,128)}', space=vmem, size = 0x12000, scoped, tag = 'internal scratch']
  %s0 = inlined_call_operand.vmem [shape: bf16[2048,128], index: 0, kind: input, shape index: {}]
  %s1 = inlined_call_operand.vmem [shape: bf16[128,128], index: 1, kind: input, shape index: {}]
  %s2 = inlined_call_operand.vmem [shape: bf16[2048,128], index: 2, kind: output, shape index: {}]
  %s3 = sld [smem:[#allocation0]]
  $region41: #{netd_forward.5} parent=0
    _
  %s5 = ssub.s32 1, %s3
  %s6 = scalar_select 0, %s5, %s3
  loop: start=0, step=1, limit=4
  $region2: #{netd_forward.5} parent=0 // loop_pre_header
    _
  $region3: #{netd_forward.5} parent=0 // loop_header
    %s8 = sphi 0, %s12
    %p9 = scmp.ge.s32.totalorder %s8, 4
    %s18 = sphi 0, %s20
    %s21 = sphi 0, %s18
    %s22 = sphi 0, %s21
    %s38 = sphi 0, %s22
    %s42 = sphi 0, %s42
    %s44 = sphi 0, %s42
    %s45 = sphi 0, %s44
    %s59 = sphi 0, %s45
    %s65 = sphi 0, %s67
    %s68 = sphi 0, %s65
    %s69 = sphi 0, %s68
    %s85 = sphi 0, %s69
  $region4: #{netd_forward.5} parent=0 // loop_header_branch
    %11 = sbr.rel (%p9) target = $region8
  $region5: #{netd_forward.5} parent=0 // loop_body
    %s13 = ssub.s32 %s8, 1
    %s14 = ssub.s32 %s8, 2
    %s15 = sadd.s32 %s8, 1
    %s16 = ssub.s32 %s8, %s15
    %p17 = scmp.eq.s32.totalorder %s16, 0
    %s19 = sadd.s32 %s18, 1
    %s20 = scalar_select %p17, %s18, %s19
    %p23 = pneg %p17
    %p24 = scmp.eq.s32.totalorder %s8, 1
    %p25 = por %p23, %p24
    %p26 = scmp.ne.s32.totalorder %s18, %s21
    %p27 = scmp.eq.s32.totalorder %s8, 0
    %p28 = por %p26, %p27
    %p29 = scmp.ne.s32.totalorder %s18, %s21
    %p30 = scmp.eq.s32.totalorder %s13, 1
    %p31 = por %p29, %p30
    %p32 = scmp.ne.s32.totalorder %s21, %s22
    %p33 = scmp.eq.s32.totalorder %s13, 0
    %p34 = por %p32, %p33
    %p35 = scmp.ne.s32.totalorder %s21, %s22
    %p36 = scmp.eq.s32.totalorder %s14, 1
    %p37 = por %p35, %p36
    %p39 = scmp.ne.s32.totalorder %s22, %s38
    %p40 = scmp.eq.s32.totalorder %s14, 0
    %p41 = por %p39, %p40
    %s43 = sadd.s32 %s42, 1
    %p46 = scmp.eq.s32.totalorder %s8, 1
    %p47 = scmp.ne.s32.totalorder %s42, %s44
    %p48 = scmp.eq.s32.totalorder %s8, 0
    %p49 = por %p47, %p48
    %p50 = scmp.ne.s32.totalorder %s42, %s44
    %p51 = scmp.eq.s32.totalorder %s13, 1
    %p52 = por %p50, %p51
    %p53 = scmp.ne.s32.totalorder %s44, %s45
    %p54 = scmp.eq.s32.totalorder %s13, 0
    %p55 = por %p53, %p54
    %p56 = scmp.ne.s32.totalorder %s44, %s45
    %p57 = scmp.eq.s32.totalorder %s14, 1
    %p58 = por %p56, %p57
    %p60 = scmp.ne.s32.totalorder %s45, %s59
    %p61 = scmp.eq.s32.totalorder %s14, 0
    %p62 = por %p60, %p61
    %s63 = ssub.s32 %s8, %s15
    %p64 = scmp.eq.s32.totalorder %s63, 0
    %s66 = sadd.s32 %s65, 1
    %s67 = scalar_select %p64, %s65, %s66
    %p70 = pneg %p64
    %p71 = scmp.eq.s32.totalorder %s8, 1
    %p72 = por %p70, %p71
    %p73 = scmp.ne.s32.totalorder %s65, %s68
    %p74 = scmp.eq.s32.totalorder %s8, 0
    %p75 = por %p73, %p74
    %p76 = scmp.ne.s32.totalorder %s65, %s68
    %p77 = scmp.eq.s32.totalorder %s13, 1
    %p78 = por %p76, %p77
    %p79 = scmp.ne.s32.totalorder %s68, %s69
    %p80 = scmp.eq.s32.totalorder %s13, 0
    %p81 = por %p79, %p80
    %p82 = scmp.ne.s32.totalorder %s68, %s69
    %p83 = scmp.eq.s32.totalorder %s14, 1
    %p84 = por %p82, %p83
    %p86 = scmp.ne.s32.totalorder %s69, %s85
    %p87 = scmp.eq.s32.totalorder %s14, 0
    %p88 = por %p86, %p87
    %p89 = scmp.le.s32.totalorder 1, %s8
    %p90 = scmp.lt.s32.totalorder %s8, 3
    %p91 = pnand %p89, %p90
    %p92 = pneg %p91
    // Predicated region
    $region9: #{netd_forward.5} parent=5 // pred_check
      _
    $region10: #{netd_forward.5} parent=5 // pred_check_branch
      %94 = sbr.rel (%p91) target = $region12
    $region11: #{netd_forward.5} parent=5 // pred_region
      %s95 = ssub.s32 %s8, 1
      // Predicated region
      $region13: #{netd_forward.5} parent=11 // pred_check
        %p96 = pneg %p55
      $region14: #{netd_forward.5} parent=11 // pred_check_branch
        %98 = sbr.rel (%p96) target = $region16
      $region15: #{netd_forward.5} parent=11 // pred_region
        _
      $region16: #{netd_forward.5} parent=11 // pred_fallthru
        _
    $region12: #{netd_forward.5} parent=5 // pred_fallthru
      _
    %p99 = scmp.lt.s32.totalorder %s8, 2
    // Predicated region
    $region17: #{netd_forward.5} parent=5 // pred_check
      %p100 = pneg %p99
    $region18: #{netd_forward.5} parent=5 // pred_check_branch
      %102 = sbr.rel (%p100) target = $region20
    $region19: #{netd_forward.5} parent=5 // pred_region
      // Predicated region
      $region21: #{netd_forward.5} parent=19 // pred_check
        %p103 = pneg %p28
      $region22: #{netd_forward.5} parent=19 // pred_check_branch
        %105 = sbr.rel (%p103) target = $region24
      $region23: #{netd_forward.5} parent=19 // pred_region
        %s106 = smul.u32 128, %s8
        %p107 = scmp.lt.s32.totalorder %s106, 255
        %s108 = scalar_select %p107, %s106, 255
        %s109 = smul.addr %s108, 4
        %s110 = scalar_lea.vmem %s0, %s109
        %s111 = smul.u32 128, %s8
      $region24: #{netd_forward.5} parent=19 // pred_fallthru
        _
    $region20: #{netd_forward.5} parent=5 // pred_fallthru
      _
    %p112 = scmp.le.s32.totalorder 1, %s8
    %p113 = scmp.lt.s32.totalorder %s8, 3
    %p114 = pnand %p112, %p113
    %p115 = pneg %p114
    // Predicated region
    $region25: #{netd_forward.5} parent=5 // pred_check
      _
    $region26: #{netd_forward.5} parent=5 // pred_check_branch
      %117 = sbr.rel (%p114) target = $region28
    $region27: #{netd_forward.5} parent=5 // pred_region
      %s118 = ssub.s32 %s8, 1
      %s119 = smul.u32 128, %s13
      %p120 = scmp.lt.s32.totalorder %s119, 255
      %s121 = scalar_select %p120, %s119, 255
      %s122 = smul.addr %s121, 4
      %s123 = scalar_lea.vmem %s0, %s122
      %p124 = pneg %p34
      %p125 = pneg %p31
      %p126 = pneg %p55
      %p127 = pneg %p52
      %p128 = pneg %p81
      %p129 = pneg %p78
      %s130 = smul.u32 128, %s13
      %p131 = scmp.lt.s32.totalorder %s130, 255
      %s132 = scalar_select %p131, %s130, 255
      %s133 = smul.addr %s132, 4
      %s134 = scalar_lea.vmem %s2, %s133
      %s135 = smul.u32 128, %s13
      %p136 = scmp.lt.s32.totalorder %s135, 255
      %s137 = scalar_select %p136, %s135, 255
      %s138 = smul.addr %s137, 4
      %s139 = scalar_lea.vmem %s0, %s138
      %s140 = smul.u32 128, %s13
      %s141 = smul.u32 128, %s13
      %p142 = scmp.lt.s32.totalorder %s141, 255
      %s143 = scalar_select %p142, %s141, 255
      %s144 = smul.addr %s143, 4
      %s145 = scalar_lea.vmem %s2, %s144
      %s146 = smul.u32 128, %s13
      %v148 = vld [vmem:[%s139] sm:$0xf]
      %v149 = vld [vmem:[%s139 + $0x4] sm:$0xf]
      %v150 = vld [vmem:[%s139 + $0x8] sm:$0xf]
      %v151 = vld [vmem:[%s139 + $0xc] sm:$0xf]
      %v152 = vld [vmem:[%s139 + $0x10] sm:$0xf]
      %v153 = vld [vmem:[%s139 + $0x14] sm:$0xf]
      %v154 = vld [vmem:[%s139 + $0x18] sm:$0xf]
      %v155 = vld [vmem:[%s139 + $0x1c] sm:$0xf]
      %v156 = vld [vmem:[%s139 + $0x20] sm:$0xf]
      %v157 = vld [vmem:[%s139 + $0x24] sm:$0xf]
      %v158 = vld [vmem:[%s139 + $0x28] sm:$0xf]
      %v159 = vld [vmem:[%s139 + $0x2c] sm:$0xf]
      %v160 = vld [vmem:[%s139 + $0x30] sm:$0xf]
      %v161 = vld [vmem:[%s139 + $0x34] sm:$0xf]
      %v162 = vld [vmem:[%s139 + $0x38] sm:$0xf]
      %v163 = vld [vmem:[%s139 + $0x3c] sm:$0xf]
      %v164 = vld [vmem:[%s139 + $0x40] sm:$0xf]
      %v165 = vld [vmem:[%s139 + $0x44] sm:$0xf]
      %v166 = vld [vmem:[%s139 + $0x48] sm:$0xf]
      %v167 = vld [vmem:[%s139 + $0x4c] sm:$0xf]
      %v168 = vld [vmem:[%s139 + $0x50] sm:$0xf]
      %v169 = vld [vmem:[%s139 + $0x54] sm:$0xf]
      %v170 = vld [vmem:[%s139 + $0x58] sm:$0xf]
      %v171 = vld [vmem:[%s139 + $0x5c] sm:$0xf]
      %v172 = vld [vmem:[%s139 + $0x60] sm:$0xf]
      %v173 = vld [vmem:[%s139 + $0x64] sm:$0xf]
      %v174 = vld [vmem:[%s139 + $0x68] sm:$0xf]
      %v175 = vld [vmem:[%s139 + $0x6c] sm:$0xf]
      %v176 = vld [vmem:[%s139 + $0x70] sm:$0xf]
      %v177 = vld [vmem:[%s139 + $0x74] sm:$0xf]
      %v178 = vld [vmem:[%s139 + $0x78] sm:$0xf]
      %v179 = vld [vmem:[%s139 + $0x7c] sm:$0xf]
      %v180 = vld [vmem:[%s139 + $0x80] sm:$0xf]
      %v181 = vld [vmem:[%s139 + $0x84] sm:$0xf]
      %v182 = vld [vmem:[%s139 + $0x88] sm:$0xf]
      %v183 = vld [vmem:[%s139 + $0x8c] sm:$0xf]
      %v184 = vld [vmem:[%s139 + $0x90] sm:$0xf]
      %v185 = vld [vmem:[%s139 + $0x94] sm:$0xf]
      %v186 = vld [vmem:[%s139 + $0x98] sm:$0xf]
      %v187 = vld [vmem:[%s139 + $0x9c] sm:$0xf]
      %v188 = vld [vmem:[%s139 + $0xa0] sm:$0xf]
      %v189 = vld [vmem:[%s139 + $0xa4] sm:$0xf]
      %v190 = vld [vmem:[%s139 + $0xa8] sm:$0xf]
      %v191 = vld [vmem:[%s139 + $0xac] sm:$0xf]
      %v192 = vld [vmem:[%s139 + $0xb0] sm:$0xf]
      %v193 = vld [vmem:[%s139 + $0xb4] sm:$0xf]
      %v194 = vld [vmem:[%s139 + $0xb8] sm:$0xf]
      %v195 = vld [vmem:[%s139 + $0xbc] sm:$0xf]
      %v196 = vld [vmem:[%s139 + $0xc0] sm:$0xf]
      %v197 = vld [vmem:[%s139 + $0xc4] sm:$0xf]
      %v198 = vld [vmem:[%s139 + $0xc8] sm:$0xf]
      %v199 = vld [vmem:[%s139 + $0xcc] sm:$0xf]
      %v200 = vld [vmem:[%s139 + $0xd0] sm:$0xf]
      %v201 = vld [vmem:[%s139 + $0xd4] sm:$0xf]
      %v202 = vld [vmem:[%s139 + $0xd8] sm:$0xf]
      %v203 = vld [vmem:[%s139 + $0xdc] sm:$0xf]
      %v204 = vld [vmem:[%s139 + $0xe0] sm:$0xf]
      %v205 = vld [vmem:[%s139 + $0xe4] sm:$0xf]
      %v206 = vld [vmem:[%s139 + $0xe8] sm:$0xf]
      %v207 = vld [vmem:[%s139 + $0xec] sm:$0xf]
      %v208 = vld [vmem:[%s139 + $0xf0] sm:$0xf]
      %v209 = vld [vmem:[%s139 + $0xf4] sm:$0xf]
      %v210 = vld [vmem:[%s139 + $0xf8] sm:$0xf]
      %v211 = vld [vmem:[%s139 + $0xfc] sm:$0xf]
      %v212 = vld [vmem:[%s139 + $0x100] sm:$0xf]
      %v213 = vld [vmem:[%s139 + $0x104] sm:$0xf]
      %v214 = vld [vmem:[%s139 + $0x108] sm:$0xf]
      %v215 = vld [vmem:[%s139 + $0x10c] sm:$0xf]
      %v216 = vld [vmem:[%s139 + $0x110] sm:$0xf]
      %v217 = vld [vmem:[%s139 + $0x114] sm:$0xf]
      %v218 = vld [vmem:[%s139 + $0x118] sm:$0xf]
      %v219 = vld [vmem:[%s139 + $0x11c] sm:$0xf]
      %v220 = vld [vmem:[%s139 + $0x120] sm:$0xf]
      %v221 = vld [vmem:[%s139 + $0x124] sm:$0xf]
      %v222 = vld [vmem:[%s139 + $0x128] sm:$0xf]
      %v223 = vld [vmem:[%s139 + $0x12c] sm:$0xf]
      %v224 = vld [vmem:[%s139 + $0x130] sm:$0xf]
      %v225 = vld [vmem:[%s139 + $0x134] sm:$0xf]
      %v226 = vld [vmem:[%s139 + $0x138] sm:$0xf]
      %v227 = vld [vmem:[%s139 + $0x13c] sm:$0xf]
      %v228 = vld [vmem:[%s139 + $0x140] sm:$0xf]
      %v229 = vld [vmem:[%s139 + $0x144] sm:$0xf]
      %v230 = vld [vmem:[%s139 + $0x148] sm:$0xf]
      %v231 = vld [vmem:[%s139 + $0x14c] sm:$0xf]
      %v232 = vld [vmem:[%s139 + $0x150] sm:$0xf]
      %v233 = vld [vmem:[%s139 + $0x154] sm:$0xf]
      %v234 = vld [vmem:[%s139 + $0x158] sm:$0xf]
      %v235 = vld [vmem:[%s139 + $0x15c] sm:$0xf]
      %v236 = vld [vmem:[%s139 + $0x160] sm:$0xf]
      %v237 = vld [vmem:[%s139 + $0x164] sm:$0xf]
      %v238 = vld [vmem:[%s139 + $0x168] sm:$0xf]
      %v239 = vld [vmem:[%s139 + $0x16c] sm:$0xf]
      %v240 = vld [vmem:[%s139 + $0x170] sm:$0xf]
      %v241 = vld [vmem:[%s139 + $0x174] sm:$0xf]
      %v242 = vld [vmem:[%s139 + $0x178] sm:$0xf]
      %v243 = vld [vmem:[%s139 + $0x17c] sm:$0xf]
      %v244 = vld [vmem:[%s139 + $0x180] sm:$0xf]
      %v245 = vld [vmem:[%s139 + $0x184] sm:$0xf]
      %v246 = vld [vmem:[%s139 + $0x188] sm:$0xf]
      %v247 = vld [vmem:[%s139 + $0x18c] sm:$0xf]
      %v248 = vld [vmem:[%s139 + $0x190] sm:$0xf]
      %v249 = vld [vmem:[%s139 + $0x194] sm:$0xf]
      %v250 = vld [vmem:[%s139 + $0x198] sm:$0xf]
      %v251 = vld [vmem:[%s139 + $0x19c] sm:$0xf]
      %v252 = vld [vmem:[%s139 + $0x1a0] sm:$0xf]
      %v253 = vld [vmem:[%s139 + $0x1a4] sm:$0xf]
      %v254 = vld [vmem:[%s139 + $0x1a8] sm:$0xf]
      %v255 = vld [vmem:[%s139 + $0x1ac] sm:$0xf]
      %v256 = vld [vmem:[%s139 + $0x1b0] sm:$0xf]
      %v257 = vld [vmem:[%s139 + $0x1b4] sm:$0xf]
      %v258 = vld [vmem:[%s139 + $0x1b8] sm:$0xf]
      %v259 = vld [vmem:[%s139 + $0x1bc] sm:$0xf]
      %v260 = vld [vmem:[%s139 + $0x1c0] sm:$0xf]
      %v261 = vld [vmem:[%s139 + $0x1c4] sm:$0xf]
      %v262 = vld [vmem:[%s139 + $0x1c8] sm:$0xf]
      %v263 = vld [vmem:[%s139 + $0x1cc] sm:$0xf]
      %v264 = vld [vmem:[%s139 + $0x1d0] sm:$0xf]
      %v265 = vld [vmem:[%s139 + $0x1d4] sm:$0xf]
      %v266 = vld [vmem:[%s139 + $0x1d8] sm:$0xf]
      %v267 = vld [vmem:[%s139 + $0x1dc] sm:$0xf]
      %v268 = vld [vmem:[%s139 + $0x1e0] sm:$0xf]
      %v269 = vld [vmem:[%s139 + $0x1e4] sm:$0xf]
      %v270 = vld [vmem:[%s139 + $0x1e8] sm:$0xf]
      %v271 = vld [vmem:[%s139 + $0x1ec] sm:$0xf]
      %v272 = vld [vmem:[%s139 + $0x1f0] sm:$0xf]
      %v273 = vld [vmem:[%s139 + $0x1f4] sm:$0xf]
      %v274 = vld [vmem:[%s139 + $0x1f8] sm:$0xf]
      %v275 = vld [vmem:[%s139 + $0x1fc] sm:$0xf]
      %v276 = vld [vmem:[%s1] sm:$0xf]
      %v277 = vld [vmem:[%s1 + $0x4] sm:$0xf]
      %v278 = vld [vmem:[%s1 + $0x8] sm:$0xf]
      %v279 = vld [vmem:[%s1 + $0xc] sm:$0xf]
      %v280 = vld [vmem:[%s1 + $0x10] sm:$0xf]
      %v281 = vld [vmem:[%s1 + $0x14] sm:$0xf]
      %v282 = vld [vmem:[%s1 + $0x18] sm:$0xf]
      %v283 = vld [vmem:[%s1 + $0x1c] sm:$0xf]
      %v284 = vld [vmem:[%s1 + $0x20] sm:$0xf]
      %v285 = vld [vmem:[%s1 + $0x24] sm:$0xf]
      %v286 = vld [vmem:[%s1 + $0x28] sm:$0xf]
      %v287 = vld [vmem:[%s1 + $0x2c] sm:$0xf]
      %v288 = vld [vmem:[%s1 + $0x30] sm:$0xf]
      %v289 = vld [vmem:[%s1 + $0x34] sm:$0xf]
      %v290 = vld [vmem:[%s1 + $0x38] sm:$0xf]
      %v291 = vld [vmem:[%s1 + $0x3c] sm:$0xf]
      %v420 = vunpack.c.l.b16 %v148
      %v421 = vunpack.c.l.b16 %v149
      %v422 = vunpack.c.l.b16 %v150
      %v423 = vunpack.c.l.b16 %v151
      %v424 = vunpack.c.l.b16 %v152
      %v425 = vunpack.c.l.b16 %v153
      %v426 = vunpack.c.l.b16 %v154
      %v427 = vunpack.c.l.b16 %v155
      %v428 = vunpack.c.l.b16 %v156
      %v429 = vunpack.c.l.b16 %v157
      %v430 = vunpack.c.l.b16 %v158
      %v431 = vunpack.c.l.b16 %v159
      %v432 = vunpack.c.l.b16 %v160
      %v433 = vunpack.c.l.b16 %v161
      %v434 = vunpack.c.l.b16 %v162
      %v435 = vunpack.c.l.b16 %v163
      %v436 = vunpack.c.l.b16 %v164
      %v437 = vunpack.c.l.b16 %v165
      %v438 = vunpack.c.l.b16 %v166
      %v439 = vunpack.c.l.b16 %v167
      %v440 = vunpack.c.l.b16 %v168
      %v441 = vunpack.c.l.b16 %v169
      %v442 = vunpack.c.l.b16 %v170
      %v443 = vunpack.c.l.b16 %v171
      %v444 = vunpack.c.l.b16 %v172
      %v445 = vunpack.c.l.b16 %v173
      %v446 = vunpack.c.l.b16 %v174
      %v447 = vunpack.c.l.b16 %v175
      %v448 = vunpack.c.l.b16 %v176
      %v449 = vunpack.c.l.b16 %v177
      %v450 = vunpack.c.l.b16 %v178
      %v451 = vunpack.c.l.b16 %v179
      %v452 = vunpack.c.l.b16 %v180
      %v453 = vunpack.c.l.b16 %v181
      %v454 = vunpack.c.l.b16 %v182
      %v455 = vunpack.c.l.b16 %v183
      %v456 = vunpack.c.l.b16 %v184
      %v457 = vunpack.c.l.b16 %v185
      %v458 = vunpack.c.l.b16 %v186
      %v459 = vunpack.c.l.b16 %v187
      %v460 = vunpack.c.l.b16 %v188
      %v461 = vunpack.c.l.b16 %v189
      %v462 = vunpack.c.l.b16 %v190
      %v463 = vunpack.c.l.b16 %v191
      %v464 = vunpack.c.l.b16 %v192
      %v465 = vunpack.c.l.b16 %v193
      %v466 = vunpack.c.l.b16 %v194
      %v467 = vunpack.c.l.b16 %v195
      %v468 = vunpack.c.l.b16 %v196
      %v469 = vunpack.c.l.b16 %v197
      %v470 = vunpack.c.l.b16 %v198
      %v471 = vunpack.c.l.b16 %v199
      %v472 = vunpack.c.l.b16 %v200
      %v473 = vunpack.c.l.b16 %v201
      %v474 = vunpack.c.l.b16 %v202
      %v475 = vunpack.c.l.b16 %v203
      %v476 = vunpack.c.l.b16 %v204
      %v477 = vunpack.c.l.b16 %v205
      %v478 = vunpack.c.l.b16 %v206
      %v479 = vunpack.c.l.b16 %v207
      %v480 = vunpack.c.l.b16 %v208
      %v481 = vunpack.c.l.b16 %v209
      %v482 = vunpack.c.l.b16 %v210
      %v483 = vunpack.c.l.b16 %v211
      %v484 = vunpack.c.l.b16 %v212
      %v485 = vunpack.c.l.b16 %v213
      %v486 = vunpack.c.l.b16 %v214
      %v487 = vunpack.c.l.b16 %v215
      %v488 = vunpack.c.l.b16 %v216
      %v489 = vunpack.c.l.b16 %v217
      %v490 = vunpack.c.l.b16 %v218
      %v491 = vunpack.c.l.b16 %v219
      %v492 = vunpack.c.l.b16 %v220
      %v493 = vunpack.c.l.b16 %v221
      %v494 = vunpack.c.l.b16 %v222
      %v495 = vunpack.c.l.b16 %v223
      %v496 = vunpack.c.l.b16 %v224
      %v497 = vunpack.c.l.b16 %v225
      %v498 = vunpack.c.l.b16 %v226
      %v499 = vunpack.c.l.b16 %v227
      %v500 = vunpack.c.l.b16 %v228
      %v501 = vunpack.c.l.b16 %v229
      %v502 = vunpack.c.l.b16 %v230
      %v503 = vunpack.c.l.b16 %v231
      %v504 = vunpack.c.l.b16 %v232
      %v505 = vunpack.c.l.b16 %v233
      %v506 = vunpack.c.l.b16 %v234
      %v507 = vunpack.c.l.b16 %v235
      %v508 = vunpack.c.l.b16 %v236
      %v509 = vunpack.c.l.b16 %v237
      %v510 = vunpack.c.l.b16 %v238
      %v511 = vunpack.c.l.b16 %v239
      %v512 = vunpack.c.l.b16 %v240
      %v513 = vunpack.c.l.b16 %v241
      %v514 = vunpack.c.l.b16 %v242
      %v515 = vunpack.c.l.b16 %v243
      %v516 = vunpack.c.l.b16 %v244
      %v517 = vunpack.c.l.b16 %v245
      %v518 = vunpack.c.l.b16 %v246
      %v519 = vunpack.c.l.b16 %v247
      %v520 = vunpack.c.l.b16 %v248
      %v521 = vunpack.c.l.b16 %v249
      %v522 = vunpack.c.l.b16 %v250
      %v523 = vunpack.c.l.b16 %v251
      %v524 = vunpack.c.l.b16 %v252
      %v525 = vunpack.c.l.b16 %v253
      %v526 = vunpack.c.l.b16 %v254
      %v527 = vunpack.c.l.b16 %v255
      %v528 = vunpack.c.l.b16 %v256
      %v529 = vunpack.c.l.b16 %v257
      %v530 = vunpack.c.l.b16 %v258
      %v531 = vunpack.c.l.b16 %v259
      %v532 = vunpack.c.l.b16 %v260
      %v533 = vunpack.c.l.b16 %v261
      %v534 = vunpack.c.l.b16 %v262
      %v535 = vunpack.c.l.b16 %v263
      %v536 = vunpack.c.l.b16 %v264
      %v537 = vunpack.c.l.b16 %v265
      %v538 = vunpack.c.l.b16 %v266
      %v539 = vunpack.c.l.b16 %v267
      %v540 = vunpack.c.l.b16 %v268
      %v541 = vunpack.c.l.b16 %v269
      %v542 = vunpack.c.l.b16 %v270
      %v543 = vunpack.c.l.b16 %v271
      %v544 = vunpack.c.l.b16 %v272
      %v545 = vunpack.c.l.b16 %v273
      %v546 = vunpack.c.l.b16 %v274
      %v547 = vunpack.c.l.b16 %v275
      %v548 = vpack.c.b16 %v421, %v420
      %v549 = vpack.c.b16 %v423, %v422
      %v550 = vpack.c.b16 %v425, %v424
      %v551 = vpack.c.b16 %v427, %v426
      %v552 = vpack.c.b16 %v429, %v428
      %v553 = vpack.c.b16 %v431, %v430
      %v554 = vpack.c.b16 %v433, %v432
      %v555 = vpack.c.b16 %v435, %v434
      %v556 = vpack.c.b16 %v437, %v436
      %v557 = vpack.c.b16 %v439, %v438
      %v558 = vpack.c.b16 %v441, %v440
      %v559 = vpack.c.b16 %v443, %v442
      %v560 = vpack.c.b16 %v445, %v444
      %v561 = vpack.c.b16 %v447, %v446
      %v562 = vpack.c.b16 %v449, %v448
      %v563 = vpack.c.b16 %v451, %v450
      %v564 = vpack.c.b16 %v453, %v452
      %v565 = vpack.c.b16 %v455, %v454
      %v566 = vpack.c.b16 %v457, %v456
      %v567 = vpack.c.b16 %v459, %v458
      %v568 = vpack.c.b16 %v461, %v460
      %v569 = vpack.c.b16 %v463, %v462
      %v570 = vpack.c.b16 %v465, %v464
      %v571 = vpack.c.b16 %v467, %v466
      %v572 = vpack.c.b16 %v469, %v468
      %v573 = vpack.c.b16 %v471, %v470
      %v574 = vpack.c.b16 %v473, %v472
      %v575 = vpack.c.b16 %v475, %v474
      %v576 = vpack.c.b16 %v477, %v476
      %v577 = vpack.c.b16 %v479, %v478
      %v578 = vpack.c.b16 %v481, %v480
      %v579 = vpack.c.b16 %v483, %v482
      %v580 = vpack.c.b16 %v485, %v484
      %v581 = vpack.c.b16 %v487, %v486
      %v582 = vpack.c.b16 %v489, %v488
      %v583 = vpack.c.b16 %v491, %v490
      %v584 = vpack.c.b16 %v493, %v492
      %v585 = vpack.c.b16 %v495, %v494
      %v586 = vpack.c.b16 %v497, %v496
      %v587 = vpack.c.b16 %v499, %v498
      %v588 = vpack.c.b16 %v501, %v500
      %v589 = vpack.c.b16 %v503, %v502
      %v590 = vpack.c.b16 %v505, %v504
      %v591 = vpack.c.b16 %v507, %v506
      %v592 = vpack.c.b16 %v509, %v508
      %v593 = vpack.c.b16 %v511, %v510
      %v594 = vpack.c.b16 %v513, %v512
      %v595 = vpack.c.b16 %v515, %v514
      %v596 = vpack.c.b16 %v517, %v516
      %v597 = vpack.c.b16 %v519, %v518
      %v598 = vpack.c.b16 %v521, %v520
      %v599 = vpack.c.b16 %v523, %v522
      %v600 = vpack.c.b16 %v525, %v524
      %v601 = vpack.c.b16 %v527, %v526
      %v602 = vpack.c.b16 %v529, %v528
      %v603 = vpack.c.b16 %v531, %v530
      %v604 = vpack.c.b16 %v533, %v532
      %v605 = vpack.c.b16 %v535, %v534
      %v606 = vpack.c.b16 %v537, %v536
      %v607 = vpack.c.b16 %v539, %v538
      %v608 = vpack.c.b16 %v541, %v540
      %v609 = vpack.c.b16 %v543, %v542
      %v610 = vpack.c.b16 %v545, %v544
      %v611 = vpack.c.b16 %v547, %v546
      %v692 = vunpack.c.l.b16 %v276
      %v693 = vunpack.c.l.b16 %v277
      %v694 = vunpack.c.l.b16 %v278
      %v695 = vunpack.c.l.b16 %v279
      %v696 = vunpack.c.l.b16 %v280
      %v697 = vunpack.c.l.b16 %v281
      %v698 = vunpack.c.l.b16 %v282
      %v699 = vunpack.c.l.b16 %v283
      %v700 = vunpack.c.l.b16 %v284
      %v701 = vunpack.c.l.b16 %v285
      %v702 = vunpack.c.l.b16 %v286
      %v703 = vunpack.c.l.b16 %v287
      %v704 = vunpack.c.l.b16 %v288
      %v705 = vunpack.c.l.b16 %v289
      %v706 = vunpack.c.l.b16 %v290
      %v707 = vunpack.c.l.b16 %v291
      %v708 = vpack.c.b16 %v693, %v692
      %v709 = vpack.c.b16 %v695, %v694
      %v710 = vpack.c.b16 %v697, %v696
      %v711 = vpack.c.b16 %v699, %v698
      %v712 = vpack.c.b16 %v701, %v700
      %v713 = vpack.c.b16 %v703, %v702
      %v714 = vpack.c.b16 %v705, %v704
      %v715 = vpack.c.b16 %v707, %v706
      %724 = vmatprep.subr.bf16.mxu0 0
      %725 = vmatpush1.bf16.msra.mxu0 %v708
      %726 = vmatprep.subr.bf16.mxu0 0
      %727 = vmatpush1.bf16.msra.mxu0 %v709
      %728 = vmatprep.subr.bf16.mxu0 0
      %729 = vmatpush1.bf16.msra.mxu0 %v710
      %730 = vmatprep.subr.bf16.mxu0 0
      %731 = vmatpush1.bf16.msra.mxu0 %v711
      %732 = vmatprep.subr.bf16.mxu0 0
      %733 = vmatpush1.bf16.msra.mxu0 %v712
      %734 = vmatprep.subr.bf16.mxu0 0
      %735 = vmatpush1.bf16.msra.mxu0 %v713
      %736 = vmatprep.subr.bf16.mxu0 0
      %737 = vmatpush1.bf16.msra.mxu0 %v714
      %738 = vmatprep.subr.bf16.mxu0 0
      %739 = vmatpush1.bf16.msra.mxu0 %v715
      %740 = vmatprep.subr.bf16.mxu0 0
      %741 = vmatpush1.bf16.msra.mxu0 0
      %742 = vmatprep.subr.bf16.mxu0 0
      %743 = vmatpush1.bf16.msra.mxu0 0
      %744 = vmatprep.subr.bf16.mxu0 0
      %745 = vmatpush1.bf16.msra.mxu0 0
      %746 = vmatprep.subr.bf16.mxu0 0
      %747 = vmatpush1.bf16.msra.mxu0 0
      %748 = vmatprep.subr.bf16.mxu0 0
      %749 = vmatpush1.bf16.msra.mxu0 0
      %750 = vmatprep.subr.bf16.mxu0 0
      %751 = vmatpush1.bf16.msra.mxu0 0
      %752 = vmatprep.subr.bf16.mxu0 0
      %753 = vmatpush1.bf16.msra.mxu0 0
      %754 = vmatprep.subr.bf16.mxu0 0
      %755 = vmatpush1.bf16.msra.mxu0 0
      %756 = vmatprep.mubr.bf16.mxu0 0
      %757 = vmatmul.mubr.bf16.gmra.mrb[0].mxu0 %v548
      %v758 = vpop.f32.mrb[0].mxu0
      %v759 = vadd.f32 0.0, %v758
      %v760 = vpop.f32.mrb[0].mxu0
      %v761 = vpop.f32.mrb[0].mxu0
      %v762 = vadd.f32 0.0, %v761
      %v763 = vpop.f32.mrb[0].mxu0
      %764 = vmatprep.mubr.bf16.mxu0 0
      %765 = vmatmul.mubr.bf16.gmra.mrb[0].mxu0 %v549
      %v766 = vpop.f32.mrb[0].mxu0
      %v767 = vadd.f32 0.0, %v766
      %v768 = vpop.f32.mrb[0].mxu0
      %v769 = vpop.f32.mrb[0].mxu0
      %v770 = vadd.f32 0.0, %v769
      %v771 = vpop.f32.mrb[0].mxu0
      %772 = vmatprep.mubr.bf16.mxu0 0
      %773 = vmatmul.mubr.bf16.gmra.mrb[0].mxu0 %v550
      %v774 = vpop.f32.mrb[0].mxu0
      %v775 = vadd.f32 0.0, %v774
      %v776 = vpop.f32.mrb[0].mxu0
      %v777 = vpop.f32.mrb[0].mxu0
      %v778 = vadd.f32 0.0, %v777
      %v779 = vpop.f32.mrb[0].mxu0
      %780 = vmatprep.mubr.bf16.mxu0 0
      %781 = vmatmul.mubr.bf16.gmra.mrb[0].mxu0 %v551
      %v782 = vpop.f32.mrb[0].mxu0
      %v783 = vadd.f32 0.0, %v782
      %v784 = vpop.f32.mrb[0].mxu0
      %v785 = vpop.f32.mrb[0].mxu0
      %v786 = vadd.f32 0.0, %v785
      %v787 = vpop.f32.mrb[0].mxu0
      %788 = vmatprep.mubr.bf16.mxu0 0
      %789 = vmatmul.mubr.bf16.gmra.mrb[0].mxu0 %v552
      %v790 = vpop.f32.mrb[0].mxu0
      %v791 = vadd.f32 0.0, %v790
      %v792 = vpop.f32.mrb[0].mxu0
      %v793 = vpop.f32.mrb[0].mxu0
      %v794 = vadd.f32 0.0, %v793
      %v795 = vpop.f32.mrb[0].mxu0
      %796 = vmatprep.mubr.bf16.mxu0 0
      %797 = vmatmul.mubr.bf16.gmra.mrb[0].mxu0 %v553
      %v798 = vpop.f32.mrb[0].mxu0
      %v799 = vadd.f32 0.0, %v798
      %v800 = vpop.f32.mrb[0].mxu0
      %v801 = vpop.f32.mrb[0].mxu0
      %v802 = vadd.f32 0.0, %v801
      %v803 = vpop.f32.mrb[0].mxu0
      %804 = vmatprep.mubr.bf16.mxu0 0
      %805 = vmatmul.mubr.bf16.gmra.mrb[0].mxu0 %v554
      %v806 = vpop.f32.mrb[0].mxu0
      %v807 = vadd.f32 0.0, %v806
      %v808 = vpop.f32.mrb[0].mxu0
      %v809 = vpop.f32.mrb[0].mxu0
      %v810 = vadd.f32 0.0, %v809
      %v811 = vpop.f32.mrb[0].mxu0
      %812 = vmatprep.mubr.bf16.mxu0 0
      %813 = vmatmul.mubr.bf16.gmra.mrb[0].mxu0 %v555
      %v814 = vpop.f32.mrb[0].mxu0
      %v815 = vadd.f32 0.0, %v814
      %v816 = vpop.f32.mrb[0].mxu0
      %v817 = vpop.f32.mrb[0].mxu0
      %v818 = vadd.f32 0.0, %v817
      %v819 = vpop.f32.mrb[0].mxu0
      %820 = vmatprep.mubr.bf16.mxu0 0
      %821 = vmatmul.mubr.bf16.gmra.mrb[0].mxu0 %v556
      %v822 = vpop.f32.mrb[0].mxu0
      %v823 = vadd.f32 0.0, %v822
      %v824 = vpop.f32.mrb[0].mxu0
      %v825 = vpop.f32.mrb[0].mxu0
      %v826 = vadd.f32 0.0, %v825
      %v827 = vpop.f32.mrb[0].mxu0
      %828 = vmatprep.mubr.bf16.mxu0 0
      %829 = vmatmul.mubr.bf16.gmra.mrb[0].mxu0 %v557
      %v830 = vpop.f32.mrb[0].mxu0
      %v831 = vadd.f32 0.0, %v830
      %v832 = vpop.f32.mrb[0].mxu0
      %v833 = vpop.f32.mrb[0].mxu0
      %v834 = vadd.f32 0.0, %v833
      %v835 = vpop.f32.mrb[0].mxu0
      %836 = vmatprep.mubr.bf16.mxu0 0
      %837 = vmatmul.mubr.bf16.gmra.mrb[0].mxu0 %v558
      %v838 = vpop.f32.mrb[0].mxu0
      %v839 = vadd.f32 0.0, %v838
      %v840 = vpop.f32.mrb[0].mxu0
      %v841 = vpop.f32.mrb[0].mxu0
      %v842 = vadd.f32 0.0, %v841
      %v843 = vpop.f32.mrb[0].mxu0
      %844 = vmatprep.mubr.bf16.mxu0 0
      %845 = vmatmul.mubr.bf16.gmra.mrb[0].mxu0 %v559
      %v846 = vpop.f32.mrb[0].mxu0
      %v847 = vadd.f32 0.0, %v846
      %v848 = vpop.f32.mrb[0].mxu0
      %v849 = vpop.f32.mrb[0].mxu0
      %v850 = vadd.f32 0.0, %v849
      %v851 = vpop.f32.mrb[0].mxu0
      %852 = vmatprep.mubr.bf16.mxu0 0
      %853 = vmatmul.mubr.bf16.gmra.mrb[0].mxu0 %v560
      %v854 = vpop.f32.mrb[0].mxu0
      %v855 = vadd.f32 0.0, %v854
      %v856 = vpop.f32.mrb[0].mxu0
      %v857 = vpop.f32.mrb[0].mxu0
      %v858 = vadd.f32 0.0, %v857
      %v859 = vpop.f32.mrb[0].mxu0
      %860 = vmatprep.mubr.bf16.mxu0 0
      %861 = vmatmul.mubr.bf16.gmra.mrb[0].mxu0 %v561
      %v862 = vpop.f32.mrb[0].mxu0
      %v863 = vadd.f32 0.0, %v862
      %v864 = vpop.f32.mrb[0].mxu0
      %v865 = vpop.f32.mrb[0].mxu0
      %v866 = vadd.f32 0.0, %v865
      %v867 = vpop.f32.mrb[0].mxu0
      %868 = vmatprep.mubr.bf16.mxu0 0
      %869 = vmatmul.mubr.bf16.gmra.mrb[0].mxu0 %v562
      %v870 = vpop.f32.mrb[0].mxu0
      %v871 = vadd.f32 0.0, %v870
      %v872 = vpop.f32.mrb[0].mxu0
      %v873 = vpop.f32.mrb[0].mxu0
      %v874 = vadd.f32 0.0, %v873
      %v875 = vpop.f32.mrb[0].mxu0
      %876 = vmatprep.mubr.bf16.mxu0 0
      %877 = vmatmul.mubr.bf16.gmra.mrb[0].mxu0 %v563
      %v878 = vpop.f32.mrb[0].mxu0
      %v879 = vadd.f32 0.0, %v878
      %v880 = vpop.f32.mrb[0].mxu0
      %v881 = vpop.f32.mrb[0].mxu0
      %v882 = vadd.f32 0.0, %v881
      %v883 = vpop.f32.mrb[0].mxu0
      %884 = vmatprep.mubr.bf16.mxu0 0
      %885 = vmatmul.mubr.bf16.gmra.mrb[0].mxu0 %v564
      %v886 = vpop.f32.mrb[0].mxu0
      %v887 = vadd.f32 0.0, %v886
      %v888 = vpop.f32.mrb[0].mxu0
      %v889 = vpop.f32.mrb[0].mxu0
      %v890 = vadd.f32 0.0, %v889
      %v891 = vpop.f32.mrb[0].mxu0
      %892 = vmatprep.mubr.bf16.mxu0 0
      %893 = vmatmul.mubr.bf16.gmra.mrb[0].mxu0 %v565
      %v894 = vpop.f32.mrb[0].mxu0
      %v895 = vadd.f32 0.0, %v894
      %v896 = vpop.f32.mrb[0].mxu0
      %v897 = vpop.f32.mrb[0].mxu0
      %v898 = vadd.f32 0.0, %v897
      %v899 = vpop.f32.mrb[0].mxu0
      %900 = vmatprep.mubr.bf16.mxu0 0
      %901 = vmatmul.mubr.bf16.gmra.mrb[0].mxu0 %v566
      %v902 = vpop.f32.mrb[0].mxu0
      %v903 = vadd.f32 0.0, %v902
      %v904 = vpop.f32.mrb[0].mxu0
      %v905 = vpop.f32.mrb[0].mxu0
      %v906 = vadd.f32 0.0, %v905
      %v907 = vpop.f32.mrb[0].mxu0
      %908 = vmatprep.mubr.bf16.mxu0 0
      %909 = vmatmul.mubr.bf16.gmra.mrb[0].mxu0 %v567
      %v910 = vpop.f32.mrb[0].mxu0
      %v911 = vadd.f32 0.0, %v910
      %v912 = vpop.f32.mrb[0].mxu0
      %v913 = vpop.f32.mrb[0].mxu0
      %v914 = vadd.f32 0.0, %v913
      %v915 = vpop.f32.mrb[0].mxu0
      %916 = vmatprep.mubr.bf16.mxu0 0
      %917 = vmatmul.mubr.bf16.gmra.mrb[0].mxu0 %v568
      %v918 = vpop.f32.mrb[0].mxu0
      %v919 = vadd.f32 0.0, %v918
      %v920 = vpop.f32.mrb[0].mxu0
      %v921 = vpop.f32.mrb[0].mxu0
      %v922 = vadd.f32 0.0, %v921
      %v923 = vpop.f32.mrb[0].mxu0
      %924 = vmatprep.mubr.bf16.mxu0 0
      %925 = vmatmul.mubr.bf16.gmra.mrb[0].mxu0 %v569
      %v926 = vpop.f32.mrb[0].mxu0
      %v927 = vadd.f32 0.0, %v926
      %v928 = vpop.f32.mrb[0].mxu0
      %v929 = vpop.f32.mrb[0].mxu0
      %v930 = vadd.f32 0.0, %v929
      %v931 = vpop.f32.mrb[0].mxu0
      %932 = vmatprep.mubr.bf16.mxu0 0
      %933 = vmatmul.mubr.bf16.gmra.mrb[0].mxu0 %v570
      %v934 = vpop.f32.mrb[0].mxu0
      %v935 = vadd.f32 0.0, %v934
      %v936 = vpop.f32.mrb[0].mxu0
      %v937 = vpop.f32.mrb[0].mxu0
      %v938 = vadd.f32 0.0, %v937
      %v939 = vpop.f32.mrb[0].mxu0
      %940 = vmatprep.mubr.bf16.mxu0 0
      %941 = vmatmul.mubr.bf16.gmra.mrb[0].mxu0 %v571
      %v942 = vpop.f32.mrb[0].mxu0
      %v943 = vadd.f32 0.0, %v942
      %v944 = vpop.f32.mrb[0].mxu0
      %v945 = vpop.f32.mrb[0].mxu0
      %v946 = vadd.f32 0.0, %v945
      %v947 = vpop.f32.mrb[0].mxu0
      %948 = vmatprep.mubr.bf16.mxu0 0
      %949 = vmatmul.mubr.bf16.gmra.mrb[0].mxu0 %v572
      %v950 = vpop.f32.mrb[0].mxu0
      %v951 = vadd.f32 0.0, %v950
      %v952 = vpop.f32.mrb[0].mxu0
      %v953 = vpop.f32.mrb[0].mxu0
      %v954 = vadd.f32 0.0, %v953
      %v955 = vpop.f32.mrb[0].mxu0
      %956 = vmatprep.mubr.bf16.mxu0 0
      %957 = vmatmul.mubr.bf16.gmra.mrb[0].mxu0 %v573
      %v958 = vpop.f32.mrb[0].mxu0
      %v959 = vadd.f32 0.0, %v958
      %v960 = vpop.f32.mrb[0].mxu0
      %v961 = vpop.f32.mrb[0].mxu0
      %v962 = vadd.f32 0.0, %v961
      %v963 = vpop.f32.mrb[0].mxu0
      %964 = vmatprep.mubr.bf16.mxu0 0
      %965 = vmatmul.mubr.bf16.gmra.mrb[0].mxu0 %v574
      %v966 = vpop.f32.mrb[0].mxu0
      %v967 = vadd.f32 0.0, %v966
      %v968 = vpop.f32.mrb[0].mxu0
      %v969 = vpop.f32.mrb[0].mxu0
      %v970 = vadd.f32 0.0, %v969
      %v971 = vpop.f32.mrb[0].mxu0
      %972 = vmatprep.mubr.bf16.mxu0 0
      %973 = vmatmul.mubr.bf16.gmra.mrb[0].mxu0 %v575
      %v974 = vpop.f32.mrb[0].mxu0
      %v975 = vadd.f32 0.0, %v974
      %v976 = vpop.f32.mrb[0].mxu0
      %v977 = vpop.f32.mrb[0].mxu0
      %v978 = vadd.f32 0.0, %v977
      %v979 = vpop.f32.mrb[0].mxu0
      %980 = vmatprep.mubr.bf16.mxu0 0
      %981 = vmatmul.mubr.bf16.gmra.mrb[0].mxu0 %v576
      %v982 = vpop.f32.mrb[0].mxu0
      %v983 = vadd.f32 0.0, %v982
      %v984 = vpop.f32.mrb[0].mxu0
      %v985 = vpop.f32.mrb[0].mxu0
      %v986 = vadd.f32 0.0, %v985
      %v987 = vpop.f32.mrb[0].mxu0
      %988 = vmatprep.mubr.bf16.mxu0 0
      %989 = vmatmul.mubr.bf16.gmra.mrb[0].mxu0 %v577
      %v990 = vpop.f32.mrb[0].mxu0
      %v991 = vadd.f32 0.0, %v990
      %v992 = vpop.f32.mrb[0].mxu0
      %v993 = vpop.f32.mrb[0].mxu0
      %v994 = vadd.f32 0.0, %v993
      %v995 = vpop.f32.mrb[0].mxu0
      %996 = vmatprep.mubr.bf16.mxu0 0
      %997 = vmatmul.mubr.bf16.gmra.mrb[0].mxu0 %v578
      %v998 = vpop.f32.mrb[0].mxu0
      %v999 = vadd.f32 0.0, %v998
      %v1000 = vpop.f32.mrb[0].mxu0
      %v1001 = vpop.f32.mrb[0].mxu0
      %v1002 = vadd.f32 0.0, %v1001
      %v1003 = vpop.f32.mrb[0].mxu0
      %1004 = vmatprep.mubr.bf16.mxu0 0
      %1005 = vmatmul.mubr.bf16.gmra.mrb[0].mxu0 %v579
      %v1006 = vpop.f32.mrb[0].mxu0
      %v1007 = vadd.f32 0.0, %v1006
      %v1008 = vpop.f32.mrb[0].mxu0
      %v1009 = vpop.f32.mrb[0].mxu0
      %v1010 = vadd.f32 0.0, %v1009
      %v1011 = vpop.f32.mrb[0].mxu0
      %1012 = vmatprep.mubr.bf16.mxu0 0
      %1013 = vmatmul.mubr.bf16.gmra.mrb[0].mxu0 %v580
      %v1014 = vpop.f32.mrb[0].mxu0
      %v1015 = vadd.f32 0.0, %v1014
      %v1016 = vpop.f32.mrb[0].mxu0
      %v1017 = vpop.f32.mrb[0].mxu0
      %v1018 = vadd.f32 0.0, %v1017
      %v1019 = vpop.f32.mrb[0].mxu0
      %1020 = vmatprep.mubr.bf16.mxu0 0
      %1021 = vmatmul.mubr.bf16.gmra.mrb[0].mxu0 %v581
      %v1022 = vpop.f32.mrb[0].mxu0
      %v1023 = vadd.f32 0.0, %v1022
      %v1024 = vpop.f32.mrb[0].mxu0
      %v1025 = vpop.f32.mrb[0].mxu0
      %v1026 = vadd.f32 0.0, %v1025
      %v1027 = vpop.f32.mrb[0].mxu0
      %1028 = vmatprep.mubr.bf16.mxu0 0
      %1029 = vmatmul.mubr.bf16.gmra.mrb[0].mxu0 %v582
      %v1030 = vpop.f32.mrb[0].mxu0
      %v1031 = vadd.f32 0.0, %v1030
      %v1032 = vpop.f32.mrb[0].mxu0
      %v1033 = vpop.f32.mrb[0].mxu0
      %v1034 = vadd.f32 0.0, %v1033
      %v1035 = vpop.f32.mrb[0].mxu0
      %1036 = vmatprep.mubr.bf16.mxu0 0
      %1037 = vmatmul.mubr.bf16.gmra.mrb[0].mxu0 %v583
      %v1038 = vpop.f32.mrb[0].mxu0
      %v1039 = vadd.f32 0.0, %v1038
      %v1040 = vpop.f32.mrb[0].mxu0
      %v1041 = vpop.f32.mrb[0].mxu0
      %v1042 = vadd.f32 0.0, %v1041
      %v1043 = vpop.f32.mrb[0].mxu0
      %1044 = vmatprep.mubr.bf16.mxu0 0
      %1045 = vmatmul.mubr.bf16.gmra.mrb[0].mxu0 %v584
      %v1046 = vpop.f32.mrb[0].mxu0
      %v1047 = vadd.f32 0.0, %v1046
      %v1048 = vpop.f32.mrb[0].mxu0
      %v1049 = vpop.f32.mrb[0].mxu0
      %v1050 = vadd.f32 0.0, %v1049
      %v1051 = vpop.f32.mrb[0].mxu0
      %1052 = vmatprep.mubr.bf16.mxu0 0
      %1053 = vmatmul.mubr.bf16.gmra.mrb[0].mxu0 %v585
      %v1054 = vpop.f32.mrb[0].mxu0
      %v1055 = vadd.f32 0.0, %v1054
      %v1056 = vpop.f32.mrb[0].mxu0
      %v1057 = vpop.f32.mrb[0].mxu0
      %v1058 = vadd.f32 0.0, %v1057
      %v1059 = vpop.f32.mrb[0].mxu0
      %1060 = vmatprep.mubr.bf16.mxu0 0
      %1061 = vmatmul.mubr.bf16.gmra.mrb[0].mxu0 %v586
      %v1062 = vpop.f32.mrb[0].mxu0
      %v1063 = vadd.f32 0.0, %v1062
      %v1064 = vpop.f32.mrb[0].mxu0
      %v1065 = vpop.f32.mrb[0].mxu0
      %v1066 = vadd.f32 0.0, %v1065
      %v1067 = vpop.f32.mrb[0].mxu0
      %1068 = vmatprep.mubr.bf16.mxu0 0
      %1069 = vmatmul.mubr.bf16.gmra.mrb[0].mxu0 %v587
      %v1070 = vpop.f32.mrb[0].mxu0
      %v1071 = vadd.f32 0.0, %v1070
      %v1072 = vpop.f32.mrb[0].mxu0
      %v1073 = vpop.f32.mrb[0].mxu0
      %v1074 = vadd.f32 0.0, %v1073
      %v1075 = vpop.f32.mrb[0].mxu0
      %1076 = vmatprep.mubr.bf16.mxu0 0
      %1077 = vmatmul.mubr.bf16.gmra.mrb[0].mxu0 %v588
      %v1078 = vpop.f32.mrb[0].mxu0
      %v1079 = vadd.f32 0.0, %v1078
      %v1080 = vpop.f32.mrb[0].mxu0
      %v1081 = vpop.f32.mrb[0].mxu0
      %v1082 = vadd.f32 0.0, %v1081
      %v1083 = vpop.f32.mrb[0].mxu0
      %1084 = vmatprep.mubr.bf16.mxu0 0
      %1085 = vmatmul.mubr.bf16.gmra.mrb[0].mxu0 %v589
      %v1086 = vpop.f32.mrb[0].mxu0
      %v1087 = vadd.f32 0.0, %v1086
      %v1088 = vpop.f32.mrb[0].mxu0
      %v1089 = vpop.f32.mrb[0].mxu0
      %v1090 = vadd.f32 0.0, %v1089
      %v1091 = vpop.f32.mrb[0].mxu0
      %1092 = vmatprep.mubr.bf16.mxu0 0
      %1093 = vmatmul.mubr.bf16.gmra.mrb[0].mxu0 %v590
      %v1094 = vpop.f32.mrb[0].mxu0
      %v1095 = vadd.f32 0.0, %v1094
      %v1096 = vpop.f32.mrb[0].mxu0
      %v1097 = vpop.f32.mrb[0].mxu0
      %v1098 = vadd.f32 0.0, %v1097
      %v1099 = vpop.f32.mrb[0].mxu0
      %1100 = vmatprep.mubr.bf16.mxu0 0
      %1101 = vmatmul.mubr.bf16.gmra.mrb[0].mxu0 %v591
      %v1102 = vpop.f32.mrb[0].mxu0
      %v1103 = vadd.f32 0.0, %v1102
      %v1104 = vpop.f32.mrb[0].mxu0
      %v1105 = vpop.f32.mrb[0].mxu0
      %v1106 = vadd.f32 0.0, %v1105
      %v1107 = vpop.f32.mrb[0].mxu0
      %1108 = vmatprep.mubr.bf16.mxu0 0
      %1109 = vmatmul.mubr.bf16.gmra.mrb[0].mxu0 %v592
      %v1110 = vpop.f32.mrb[0].mxu0
      %v1111 = vadd.f32 0.0, %v1110
      %v1112 = vpop.f32.mrb[0].mxu0
      %v1113 = vpop.f32.mrb[0].mxu0
      %v1114 = vadd.f32 0.0, %v1113
      %v1115 = vpop.f32.mrb[0].mxu0
      %1116 = vmatprep.mubr.bf16.mxu0 0
      %1117 = vmatmul.mubr.bf16.gmra.mrb[0].mxu0 %v593
      %v1118 = vpop.f32.mrb[0].mxu0
      %v1119 = vadd.f32 0.0, %v1118
      %v1120 = vpop.f32.mrb[0].mxu0
      %v1121 = vpop.f32.mrb[0].mxu0
      %v1122 = vadd.f32 0.0, %v1121
      %v1123 = vpop.f32.mrb[0].mxu0
      %1124 = vmatprep.mubr.bf16.mxu0 0
      %1125 = vmatmul.mubr.bf16.gmra.mrb[0].mxu0 %v594
      %v1126 = vpop.f32.mrb[0].mxu0
      %v1127 = vadd.f32 0.0, %v1126
      %v1128 = vpop.f32.mrb[0].mxu0
      %v1129 = vpop.f32.mrb[0].mxu0
      %v1130 = vadd.f32 0.0, %v1129
      %v1131 = vpop.f32.mrb[0].mxu0
      %1132 = vmatprep.mubr.bf16.mxu0 0
      %1133 = vmatmul.mubr.bf16.gmra.mrb[0].mxu0 %v595
      %v1134 = vpop.f32.mrb[0].mxu0
      %v1135 = vadd.f32 0.0, %v1134
      %v1136 = vpop.f32.mrb[0].mxu0
      %v1137 = vpop.f32.mrb[0].mxu0
      %v1138 = vadd.f32 0.0, %v1137
      %v1139 = vpop.f32.mrb[0].mxu0
      %1140 = vmatprep.mubr.bf16.mxu0 0
      %1141 = vmatmul.mubr.bf16.gmra.mrb[0].mxu0 %v596
      %v1142 = vpop.f32.mrb[0].mxu0
      %v1143 = vadd.f32 0.0, %v1142
      %v1144 = vpop.f32.mrb[0].mxu0
      %v1145 = vpop.f32.mrb[0].mxu0
      %v1146 = vadd.f32 0.0, %v1145
      %v1147 = vpop.f32.mrb[0].mxu0
      %1148 = vmatprep.mubr.bf16.mxu0 0
      %1149 = vmatmul.mubr.bf16.gmra.mrb[0].mxu0 %v597
      %v1150 = vpop.f32.mrb[0].mxu0
      %v1151 = vadd.f32 0.0, %v1150
      %v1152 = vpop.f32.mrb[0].mxu0
      %v1153 = vpop.f32.mrb[0].mxu0
      %v1154 = vadd.f32 0.0, %v1153
      %v1155 = vpop.f32.mrb[0].mxu0
      %1156 = vmatprep.mubr.bf16.mxu0 0
      %1157 = vmatmul.mubr.bf16.gmra.mrb[0].mxu0 %v598
      %v1158 = vpop.f32.mrb[0].mxu0
      %v1159 = vadd.f32 0.0, %v1158
      %v1160 = vpop.f32.mrb[0].mxu0
      %v1161 = vpop.f32.mrb[0].mxu0
      %v1162 = vadd.f32 0.0, %v1161
      %v1163 = vpop.f32.mrb[0].mxu0
      %1164 = vmatprep.mubr.bf16.mxu0 0
      %1165 = vmatmul.mubr.bf16.gmra.mrb[0].mxu0 %v599
      %v1166 = vpop.f32.mrb[0].mxu0
      %v1167 = vadd.f32 0.0, %v1166
      %v1168 = vpop.f32.mrb[0].mxu0
      %v1169 = vpop.f32.mrb[0].mxu0
      %v1170 = vadd.f32 0.0, %v1169
      %v1171 = vpop.f32.mrb[0].mxu0
      %1172 = vmatprep.mubr.bf16.mxu0 0
      %1173 = vmatmul.mubr.bf16.gmra.mrb[0].mxu0 %v600
      %v1174 = vpop.f32.mrb[0].mxu0
      %v1175 = vadd.f32 0.0, %v1174
      %v1176 = vpop.f32.mrb[0].mxu0
      %v1177 = vpop.f32.mrb[0].mxu0
      %v1178 = vadd.f32 0.0, %v1177
      %v1179 = vpop.f32.mrb[0].mxu0
      %1180 = vmatprep.mubr.bf16.mxu0 0
      %1181 = vmatmul.mubr.bf16.gmra.mrb[0].mxu0 %v601
      %v1182 = vpop.f32.mrb[0].mxu0
      %v1183 = vadd.f32 0.0, %v1182
      %v1184 = vpop.f32.mrb[0].mxu0
      %v1185 = vpop.f32.mrb[0].mxu0
      %v1186 = vadd.f32 0.0, %v1185
      %v1187 = vpop.f32.mrb[0].mxu0
      %1188 = vmatprep.mubr.bf16.mxu0 0
      %1189 = vmatmul.mubr.bf16.gmra.mrb[0].mxu0 %v602
      %v1190 = vpop.f32.mrb[0].mxu0
      %v1191 = vadd.f32 0.0, %v1190
      %v1192 = vpop.f32.mrb[0].mxu0
      %v1193 = vpop.f32.mrb[0].mxu0
      %v1194 = vadd.f32 0.0, %v1193
      %v1195 = vpop.f32.mrb[0].mxu0
      %1196 = vmatprep.mubr.bf16.mxu0 0
      %1197 = vmatmul.mubr.bf16.gmra.mrb[0].mxu0 %v603
      %v1198 = vpop.f32.mrb[0].mxu0
      %v1199 = vadd.f32 0.0, %v1198
      %v1200 = vpop.f32.mrb[0].mxu0
      %v1201 = vpop.f32.mrb[0].mxu0
      %v1202 = vadd.f32 0.0, %v1201
      %v1203 = vpop.f32.mrb[0].mxu0
      %1204 = vmatprep.mubr.bf16.mxu0 0
      %1205 = vmatmul.mubr.bf16.gmra.mrb[0].mxu0 %v604
      %v1206 = vpop.f32.mrb[0].mxu0
      %v1207 = vadd.f32 0.0, %v1206
      %v1208 = vpop.f32.mrb[0].mxu0
      %v1209 = vpop.f32.mrb[0].mxu0
      %v1210 = vadd.f32 0.0, %v1209
      %v1211 = vpop.f32.mrb[0].mxu0
      %1212 = vmatprep.mubr.bf16.mxu0 0
      %1213 = vmatmul.mubr.bf16.gmra.mrb[0].mxu0 %v605
      %v1214 = vpop.f32.mrb[0].mxu0
      %v1215 = vadd.f32 0.0, %v1214
      %v1216 = vpop.f32.mrb[0].mxu0
      %v1217 = vpop.f32.mrb[0].mxu0
      %v1218 = vadd.f32 0.0, %v1217
      %v1219 = vpop.f32.mrb[0].mxu0
      %1220 = vmatprep.mubr.bf16.mxu0 0
      %1221 = vmatmul.mubr.bf16.gmra.mrb[0].mxu0 %v606
      %v1222 = vpop.f32.mrb[0].mxu0
      %v1223 = vadd.f32 0.0, %v1222
      %v1224 = vpop.f32.mrb[0].mxu0
      %v1225 = vpop.f32.mrb[0].mxu0
      %v1226 = vadd.f32 0.0, %v1225
      %v1227 = vpop.f32.mrb[0].mxu0
      %1228 = vmatprep.mubr.bf16.mxu0 0
      %1229 = vmatmul.mubr.bf16.gmra.mrb[0].mxu0 %v607
      %v1230 = vpop.f32.mrb[0].mxu0
      %v1231 = vadd.f32 0.0, %v1230
      %v1232 = vpop.f32.mrb[0].mxu0
      %v1233 = vpop.f32.mrb[0].mxu0
      %v1234 = vadd.f32 0.0, %v1233
      %v1235 = vpop.f32.mrb[0].mxu0
      %1236 = vmatprep.mubr.bf16.mxu0 0
      %1237 = vmatmul.mubr.bf16.gmra.mrb[0].mxu0 %v608
      %v1238 = vpop.f32.mrb[0].mxu0
      %v1239 = vadd.f32 0.0, %v1238
      %v1240 = vpop.f32.mrb[0].mxu0
      %v1241 = vpop.f32.mrb[0].mxu0
      %v1242 = vadd.f32 0.0, %v1241
      %v1243 = vpop.f32.mrb[0].mxu0
      %1244 = vmatprep.mubr.bf16.mxu0 0
      %1245 = vmatmul.mubr.bf16.gmra.mrb[0].mxu0 %v609
      %v1246 = vpop.f32.mrb[0].mxu0
      %v1247 = vadd.f32 0.0, %v1246
      %v1248 = vpop.f32.mrb[0].mxu0
      %v1249 = vpop.f32.mrb[0].mxu0
      %v1250 = vadd.f32 0.0, %v1249
      %v1251 = vpop.f32.mrb[0].mxu0
      %1252 = vmatprep.mubr.bf16.mxu0 0
      %1253 = vmatmul.mubr.bf16.gmra.mrb[0].mxu0 %v610
      %v1254 = vpop.f32.mrb[0].mxu0
      %v1255 = vadd.f32 0.0, %v1254
      %v1256 = vpop.f32.mrb[0].mxu0
      %v1257 = vpop.f32.mrb[0].mxu0
      %v1258 = vadd.f32 0.0, %v1257
      %v1259 = vpop.f32.mrb[0].mxu0
      %1260 = vmatprep.mubr.bf16.mxu0 0
      %1261 = vmatmul.mubr.bf16.gmra.mrb[0].mxu0 %v611
      %v1262 = vpop.f32.mrb[0].mxu0
      %v1263 = vadd.f32 0.0, %v1262
      %v1264 = vpop.f32.mrb[0].mxu0
      %v1265 = vpop.f32.mrb[0].mxu0
      %v1266 = vadd.f32 0.0, %v1265
      %v1267 = vpop.f32.mrb[0].mxu0
      %1268 = vdwg.mxu0
      %vm1269 = vcmp.ge.f32.partialorder %v759, 0.0
      %vm1270 = vcmp.ge.f32.partialorder %v762, 0.0
      %vm1271 = vcmp.ge.f32.partialorder %v767, 0.0
      %vm1272 = vcmp.ge.f32.partialorder %v770, 0.0
      %vm1273 = vcmp.ge.f32.partialorder %v775, 0.0
      %vm1274 = vcmp.ge.f32.partialorder %v778, 0.0
      %vm1275 = vcmp.ge.f32.partialorder %v783, 0.0
      %vm1276 = vcmp.ge.f32.partialorder %v786, 0.0
      %vm1277 = vcmp.ge.f32.partialorder %v791, 0.0
      %vm1278 = vcmp.ge.f32.partialorder %v794, 0.0
      %vm1279 = vcmp.ge.f32.partialorder %v799, 0.0
      %vm1280 = vcmp.ge.f32.partialorder %v802, 0.0
      %vm1281 = vcmp.ge.f32.partialorder %v807, 0.0
      %vm1282 = vcmp.ge.f32.partialorder %v810, 0.0
      %vm1283 = vcmp.ge.f32.partialorder %v815, 0.0
      %vm1284 = vcmp.ge.f32.partialorder %v818, 0.0
      %vm1285 = vcmp.ge.f32.partialorder %v823, 0.0
      %vm1286 = vcmp.ge.f32.partialorder %v826, 0.0
      %vm1287 = vcmp.ge.f32.partialorder %v831, 0.0
      %vm1288 = vcmp.ge.f32.partialorder %v834, 0.0
      %vm1289 = vcmp.ge.f32.partialorder %v839, 0.0
      %vm1290 = vcmp.ge.f32.partialorder %v842, 0.0
      %vm1291 = vcmp.ge.f32.partialorder %v847, 0.0
      %vm1292 = vcmp.ge.f32.partialorder %v850, 0.0
      %vm1293 = vcmp.ge.f32.partialorder %v855, 0.0
      %vm1294 = vcmp.ge.f32.partialorder %v858, 0.0
      %vm1295 = vcmp.ge.f32.partialorder %v863, 0.0
      %vm1296 = vcmp.ge.f32.partialorder %v866, 0.0
      %vm1297 = vcmp.ge.f32.partialorder %v871, 0.0
      %vm1298 = vcmp.ge.f32.partialorder %v874, 0.0
      %vm1299 = vcmp.ge.f32.partialorder %v879, 0.0
      %vm1300 = vcmp.ge.f32.partialorder %v882, 0.0
      %vm1301 = vcmp.ge.f32.partialorder %v887, 0.0
      %vm1302 = vcmp.ge.f32.partialorder %v890, 0.0
      %vm1303 = vcmp.ge.f32.partialorder %v895, 0.0
      %vm1304 = vcmp.ge.f32.partialorder %v898, 0.0
      %vm1305 = vcmp.ge.f32.partialorder %v903, 0.0
      %vm1306 = vcmp.ge.f32.partialorder %v906, 0.0
      %vm1307 = vcmp.ge.f32.partialorder %v911, 0.0
      %vm1308 = vcmp.ge.f32.partialorder %v914, 0.0
      %vm1309 = vcmp.ge.f32.partialorder %v919, 0.0
      %vm1310 = vcmp.ge.f32.partialorder %v922, 0.0
      %vm1311 = vcmp.ge.f32.partialorder %v927, 0.0
      %vm1312 = vcmp.ge.f32.partialorder %v930, 0.0
      %vm1313 = vcmp.ge.f32.partialorder %v935, 0.0
      %vm1314 = vcmp.ge.f32.partialorder %v938, 0.0
      %vm1315 = vcmp.ge.f32.partialorder %v943, 0.0
      %vm1316 = vcmp.ge.f32.partialorder %v946, 0.0
      %vm1317 = vcmp.ge.f32.partialorder %v951, 0.0
      %vm1318 = vcmp.ge.f32.partialorder %v954, 0.0
      %vm1319 = vcmp.ge.f32.partialorder %v959, 0.0
      %vm1320 = vcmp.ge.f32.partialorder %v962, 0.0
      %vm1321 = vcmp.ge.f32.partialorder %v967, 0.0
      %vm1322 = vcmp.ge.f32.partialorder %v970, 0.0
      %vm1323 = vcmp.ge.f32.partialorder %v975, 0.0
      %vm1324 = vcmp.ge.f32.partialorder %v978, 0.0
      %vm1325 = vcmp.ge.f32.partialorder %v983, 0.0
      %vm1326 = vcmp.ge.f32.partialorder %v986, 0.0
      %vm1327 = vcmp.ge.f32.partialorder %v991, 0.0
      %vm1328 = vcmp.ge.f32.partialorder %v994, 0.0
      %vm1329 = vcmp.ge.f32.partialorder %v999, 0.0
      %vm1330 = vcmp.ge.f32.partialorder %v1002, 0.0
      %vm1331 = vcmp.ge.f32.partialorder %v1007, 0.0
      %vm1332 = vcmp.ge.f32.partialorder %v1010, 0.0
      %vm1333 = vcmp.ge.f32.partialorder %v1015, 0.0
      %vm1334 = vcmp.ge.f32.partialorder %v1018, 0.0
      %vm1335 = vcmp.ge.f32.partialorder %v1023, 0.0
      %vm1336 = vcmp.ge.f32.partialorder %v1026, 0.0
      %vm1337 = vcmp.ge.f32.partialorder %v1031, 0.0
      %vm1338 = vcmp.ge.f32.partialorder %v1034, 0.0
      %vm1339 = vcmp.ge.f32.partialorder %v1039, 0.0
      %vm1340 = vcmp.ge.f32.partialorder %v1042, 0.0
      %vm1341 = vcmp.ge.f32.partialorder %v1047, 0.0
      %vm1342 = vcmp.ge.f32.partialorder %v1050, 0.0
      %vm1343 = vcmp.ge.f32.partialorder %v1055, 0.0
      %vm1344 = vcmp.ge.f32.partialorder %v1058, 0.0
      %vm1345 = vcmp.ge.f32.partialorder %v1063, 0.0
      %vm1346 = vcmp.ge.f32.partialorder %v1066, 0.0
      %vm1347 = vcmp.ge.f32.partialorder %v1071, 0.0
      %vm1348 = vcmp.ge.f32.partialorder %v1074, 0.0
      %vm1349 = vcmp.ge.f32.partialorder %v1079, 0.0
      %vm1350 = vcmp.ge.f32.partialorder %v1082, 0.0
      %vm1351 = vcmp.ge.f32.partialorder %v1087, 0.0
      %vm1352 = vcmp.ge.f32.partialorder %v1090, 0.0
      %vm1353 = vcmp.ge.f32.partialorder %v1095, 0.0
      %vm1354 = vcmp.ge.f32.partialorder %v1098, 0.0
      %vm1355 = vcmp.ge.f32.partialorder %v1103, 0.0
      %vm1356 = vcmp.ge.f32.partialorder %v1106, 0.0
      %vm1357 = vcmp.ge.f32.partialorder %v1111, 0.0
      %vm1358 = vcmp.ge.f32.partialorder %v1114, 0.0
      %vm1359 = vcmp.ge.f32.partialorder %v1119, 0.0
      %vm1360 = vcmp.ge.f32.partialorder %v1122, 0.0
      %vm1361 = vcmp.ge.f32.partialorder %v1127, 0.0
      %vm1362 = vcmp.ge.f32.partialorder %v1130, 0.0
      %vm1363 = vcmp.ge.f32.partialorder %v1135, 0.0
      %vm1364 = vcmp.ge.f32.partialorder %v1138, 0.0
      %vm1365 = vcmp.ge.f32.partialorder %v1143, 0.0
      %vm1366 = vcmp.ge.f32.partialorder %v1146, 0.0
      %vm1367 = vcmp.ge.f32.partialorder %v1151, 0.0
      %vm1368 = vcmp.ge.f32.partialorder %v1154, 0.0
      %vm1369 = vcmp.ge.f32.partialorder %v1159, 0.0
      %vm1370 = vcmp.ge.f32.partialorder %v1162, 0.0
      %vm1371 = vcmp.ge.f32.partialorder %v1167, 0.0
      %vm1372 = vcmp.ge.f32.partialorder %v1170, 0.0
      %vm1373 = vcmp.ge.f32.partialorder %v1175, 0.0
      %vm1374 = vcmp.ge.f32.partialorder %v1178, 0.0
      %vm1375 = vcmp.ge.f32.partialorder %v1183, 0.0
      %vm1376 = vcmp.ge.f32.partialorder %v1186, 0.0
      %vm1377 = vcmp.ge.f32.partialorder %v1191, 0.0
      %vm1378 = vcmp.ge.f32.partialorder %v1194, 0.0
      %vm1379 = vcmp.ge.f32.partialorder %v1199, 0.0
      %vm1380 = vcmp.ge.f32.partialorder %v1202, 0.0
      %vm1381 = vcmp.ge.f32.partialorder %v1207, 0.0
      %vm1382 = vcmp.ge.f32.partialorder %v1210, 0.0
      %vm1383 = vcmp.ge.f32.partialorder %v1215, 0.0
      %vm1384 = vcmp.ge.f32.partialorder %v1218, 0.0
      %vm1385 = vcmp.ge.f32.partialorder %v1223, 0.0
      %vm1386 = vcmp.ge.f32.partialorder %v1226, 0.0
      %vm1387 = vcmp.ge.f32.partialorder %v1231, 0.0
      %vm1388 = vcmp.ge.f32.partialorder %v1234, 0.0
      %vm1389 = vcmp.ge.f32.partialorder %v1239, 0.0
      %vm1390 = vcmp.ge.f32.partialorder %v1242, 0.0
      %vm1391 = vcmp.ge.f32.partialorder %v1247, 0.0
      %vm1392 = vcmp.ge.f32.partialorder %v1250, 0.0
      %vm1393 = vcmp.ge.f32.partialorder %v1255, 0.0
      %vm1394 = vcmp.ge.f32.partialorder %v1258, 0.0
      %vm1395 = vcmp.ge.f32.partialorder %v1263, 0.0
      %vm1396 = vcmp.ge.f32.partialorder %v1266, 0.0
      %v1397 = vmul.f32 %v759, 0.2
      %v1398 = vmul.f32 %v762, 0.2
      %v1399 = vmul.f32 %v767, 0.2
      %v1400 = vmul.f32 %v770, 0.2
      %v1401 = vmul.f32 %v775, 0.2
      %v1402 = vmul.f32 %v778, 0.2
      %v1403 = vmul.f32 %v783, 0.2
      %v1404 = vmul.f32 %v786, 0.2
      %v1405 = vmul.f32 %v791, 0.2
      %v1406 = vmul.f32 %v794, 0.2
      %v1407 = vmul.f32 %v799, 0.2
      %v1408 = vmul.f32 %v802, 0.2
      %v1409 = vmul.f32 %v807, 0.2
      %v1410 = vmul.f32 %v810, 0.2
      %v1411 = vmul.f32 %v815, 0.2
      %v1412 = vmul.f32 %v818, 0.2
      %v1413 = vmul.f32 %v823, 0.2
      %v1414 = vmul.f32 %v826, 0.2
      %v1415 = vmul.f32 %v831, 0.2
      %v1416 = vmul.f32 %v834, 0.2
      %v1417 = vmul.f32 %v839, 0.2
      %v1418 = vmul.f32 %v842, 0.2
      %v1419 = vmul.f32 %v847, 0.2
      %v1420 = vmul.f32 %v850, 0.2
      %v1421 = vmul.f32 %v855, 0.2
      %v1422 = vmul.f32 %v858, 0.2
      %v1423 = vmul.f32 %v863, 0.2
      %v1424 = vmul.f32 %v866, 0.2
      %v1425 = vmul.f32 %v871, 0.2
      %v1426 = vmul.f32 %v874, 0.2
      %v1427 = vmul.f32 %v879, 0.2
      %v1428 = vmul.f32 %v882, 0.2
      %v1429 = vmul.f32 %v887, 0.2
      %v1430 = vmul.f32 %v890, 0.2
      %v1431 = vmul.f32 %v895, 0.2
      %v1432 = vmul.f32 %v898, 0.2
      %v1433 = vmul.f32 %v903, 0.2
      %v1434 = vmul.f32 %v906, 0.2
      %v1435 = vmul.f32 %v911, 0.2
      %v1436 = vmul.f32 %v914, 0.2
      %v1437 = vmul.f32 %v919, 0.2
      %v1438 = vmul.f32 %v922, 0.2
      %v1439 = vmul.f32 %v927, 0.2
      %v1440 = vmul.f32 %v930, 0.2
      %v1441 = vmul.f32 %v935, 0.2
      %v1442 = vmul.f32 %v938, 0.2
      %v1443 = vmul.f32 %v943, 0.2
      %v1444 = vmul.f32 %v946, 0.2
      %v1445 = vmul.f32 %v951, 0.2
      %v1446 = vmul.f32 %v954, 0.2
      %v1447 = vmul.f32 %v959, 0.2
      %v1448 = vmul.f32 %v962, 0.2
      %v1449 = vmul.f32 %v967, 0.2
      %v1450 = vmul.f32 %v970, 0.2
      %v1451 = vmul.f32 %v975, 0.2
      %v1452 = vmul.f32 %v978, 0.2
      %v1453 = vmul.f32 %v983, 0.2
      %v1454 = vmul.f32 %v986, 0.2
      %v1455 = vmul.f32 %v991, 0.2
      %v1456 = vmul.f32 %v994, 0.2
      %v1457 = vmul.f32 %v999, 0.2
      %v1458 = vmul.f32 %v1002, 0.2
      %v1459 = vmul.f32 %v1007, 0.2
      %v1460 = vmul.f32 %v1010, 0.2
      %v1461 = vmul.f32 %v1015, 0.2
      %v1462 = vmul.f32 %v1018, 0.2
      %v1463 = vmul.f32 %v1023, 0.2
      %v1464 = vmul.f32 %v1026, 0.2
      %v1465 = vmul.f32 %v1031, 0.2
      %v1466 = vmul.f32 %v1034, 0.2
      %v1467 = vmul.f32 %v1039, 0.2
      %v1468 = vmul.f32 %v1042, 0.2
      %v1469 = vmul.f32 %v1047, 0.2
      %v1470 = vmul.f32 %v1050, 0.2
      %v1471 = vmul.f32 %v1055, 0.2
      %v1472 = vmul.f32 %v1058, 0.2
      %v1473 = vmul.f32 %v1063, 0.2
      %v1474 = vmul.f32 %v1066, 0.2
      %v1475 = vmul.f32 %v1071, 0.2
      %v1476 = vmul.f32 %v1074, 0.2
      %v1477 = vmul.f32 %v1079, 0.2
      %v1478 = vmul.f32 %v1082, 0.2
      %v1479 = vmul.f32 %v1087, 0.2
      %v1480 = vmul.f32 %v1090, 0.2
      %v1481 = vmul.f32 %v1095, 0.2
      %v1482 = vmul.f32 %v1098, 0.2
      %v1483 = vmul.f32 %v1103, 0.2
      %v1484 = vmul.f32 %v1106, 0.2
      %v1485 = vmul.f32 %v1111, 0.2
      %v1486 = vmul.f32 %v1114, 0.2
      %v1487 = vmul.f32 %v1119, 0.2
      %v1488 = vmul.f32 %v1122, 0.2
      %v1489 = vmul.f32 %v1127, 0.2
      %v1490 = vmul.f32 %v1130, 0.2
      %v1491 = vmul.f32 %v1135, 0.2
      %v1492 = vmul.f32 %v1138, 0.2
      %v1493 = vmul.f32 %v1143, 0.2
      %v1494 = vmul.f32 %v1146, 0.2
      %v1495 = vmul.f32 %v1151, 0.2
      %v1496 = vmul.f32 %v1154, 0.2
      %v1497 = vmul.f32 %v1159, 0.2
      %v1498 = vmul.f32 %v1162, 0.2
      %v1499 = vmul.f32 %v1167, 0.2
      %v1500 = vmul.f32 %v1170, 0.2
      %v1501 = vmul.f32 %v1175, 0.2
      %v1502 = vmul.f32 %v1178, 0.2
      %v1503 = vmul.f32 %v1183, 0.2
      %v1504 = vmul.f32 %v1186, 0.2
      %v1505 = vmul.f32 %v1191, 0.2
      %v1506 = vmul.f32 %v1194, 0.2
      %v1507 = vmul.f32 %v1199, 0.2
      %v1508 = vmul.f32 %v1202, 0.2
      %v1509 = vmul.f32 %v1207, 0.2
      %v1510 = vmul.f32 %v1210, 0.2
      %v1511 = vmul.f32 %v1215, 0.2
      %v1512 = vmul.f32 %v1218, 0.2
      %v1513 = vmul.f32 %v1223, 0.2
      %v1514 = vmul.f32 %v1226, 0.2
      %v1515 = vmul.f32 %v1231, 0.2
      %v1516 = vmul.f32 %v1234, 0.2
      %v1517 = vmul.f32 %v1239, 0.2
      %v1518 = vmul.f32 %v1242, 0.2
      %v1519 = vmul.f32 %v1247, 0.2
      %v1520 = vmul.f32 %v1250, 0.2
      %v1521 = vmul.f32 %v1255, 0.2
      %v1522 = vmul.f32 %v1258, 0.2
      %v1523 = vmul.f32 %v1263, 0.2
      %v1524 = vmul.f32 %v1266, 0.2
      %v1525 = vsel %vm1269, %v759, %v1397
      %v1526 = vsel %vm1270, %v762, %v1398
      %v1527 = vsel %vm1271, %v767, %v1399
      %v1528 = vsel %vm1272, %v770, %v1400
      %v1529 = vsel %vm1273, %v775, %v1401
      %v1530 = vsel %vm1274, %v778, %v1402
      %v1531 = vsel %vm1275, %v783, %v1403
      %v1532 = vsel %vm1276, %v786, %v1404
      %v1533 = vsel %vm1277, %v791, %v1405
      %v1534 = vsel %vm1278, %v794, %v1406
      %v1535 = vsel %vm1279, %v799, %v1407
      %v1536 = vsel %vm1280, %v802, %v1408
      %v1537 = vsel %vm1281, %v807, %v1409
      %v1538 = vsel %vm1282, %v810, %v1410
      %v1539 = vsel %vm1283, %v815, %v1411
      %v1540 = vsel %vm1284, %v818, %v1412
      %v1541 = vsel %vm1285, %v823, %v1413
      %v1542 = vsel %vm1286, %v826, %v1414
      %v1543 = vsel %vm1287, %v831, %v1415
      %v1544 = vsel %vm1288, %v834, %v1416
      %v1545 = vsel %vm1289, %v839, %v1417
      %v1546 = vsel %vm1290, %v842, %v1418
      %v1547 = vsel %vm1291, %v847, %v1419
      %v1548 = vsel %vm1292, %v850, %v1420
      %v1549 = vsel %vm1293, %v855, %v1421
      %v1550 = vsel %vm1294, %v858, %v1422
      %v1551 = vsel %vm1295, %v863, %v1423
      %v1552 = vsel %vm1296, %v866, %v1424
      %v1553 = vsel %vm1297, %v871, %v1425
      %v1554 = vsel %vm1298, %v874, %v1426
      %v1555 = vsel %vm1299, %v879, %v1427
      %v1556 = vsel %vm1300, %v882, %v1428
      %v1557 = vsel %vm1301, %v887, %v1429
      %v1558 = vsel %vm1302, %v890, %v1430
      %v1559 = vsel %vm1303, %v895, %v1431
      %v1560 = vsel %vm1304, %v898, %v1432
      %v1561 = vsel %vm1305, %v903, %v1433
      %v1562 = vsel %vm1306, %v906, %v1434
      %v1563 = vsel %vm1307, %v911, %v1435
      %v1564 = vsel %vm1308, %v914, %v1436
      %v1565 = vsel %vm1309, %v919, %v1437
      %v1566 = vsel %vm1310, %v922, %v1438
      %v1567 = vsel %vm1311, %v927, %v1439
      %v1568 = vsel %vm1312, %v930, %v1440
      %v1569 = vsel %vm1313, %v935, %v1441
      %v1570 = vsel %vm1314, %v938, %v1442
      %v1571 = vsel %vm1315, %v943, %v1443
      %v1572 = vsel %vm1316, %v946, %v1444
      %v1573 = vsel %vm1317, %v951, %v1445
      %v1574 = vsel %vm1318, %v954, %v1446
      %v1575 = vsel %vm1319, %v959, %v1447
      %v1576 = vsel %vm1320, %v962, %v1448
      %v1577 = vsel %vm1321, %v967, %v1449
      %v1578 = vsel %vm1322, %v970, %v1450
      %v1579 = vsel %vm1323, %v975, %v1451
      %v1580 = vsel %vm1324, %v978, %v1452
      %v1581 = vsel %vm1325, %v983, %v1453
      %v1582 = vsel %vm1326, %v986, %v1454
      %v1583 = vsel %vm1327, %v991, %v1455
      %v1584 = vsel %vm1328, %v994, %v1456
      %v1585 = vsel %vm1329, %v999, %v1457
      %v1586 = vsel %vm1330, %v1002, %v1458
      %v1587 = vsel %vm1331, %v1007, %v1459
      %v1588 = vsel %vm1332, %v1010, %v1460
      %v1589 = vsel %vm1333, %v1015, %v1461
      %v1590 = vsel %vm1334, %v1018, %v1462
      %v1591 = vsel %vm1335, %v1023, %v1463
      %v1592 = vsel %vm1336, %v1026, %v1464
      %v1593 = vsel %vm1337, %v1031, %v1465
      %v1594 = vsel %vm1338, %v1034, %v1466
      %v1595 = vsel %vm1339, %v1039, %v1467
      %v1596 = vsel %vm1340, %v1042, %v1468
      %v1597 = vsel %vm1341, %v1047, %v1469
      %v1598 = vsel %vm1342, %v1050, %v1470
      %v1599 = vsel %vm1343, %v1055, %v1471
      %v1600 = vsel %vm1344, %v1058, %v1472
      %v1601 = vsel %vm1345, %v1063, %v1473
      %v1602 = vsel %vm1346, %v1066, %v1474
      %v1603 = vsel %vm1347, %v1071, %v1475
      %v1604 = vsel %vm1348, %v1074, %v1476
      %v1605 = vsel %vm1349, %v1079, %v1477
      %v1606 = vsel %vm1350, %v1082, %v1478
      %v1607 = vsel %vm1351, %v1087, %v1479
      %v1608 = vsel %vm1352, %v1090, %v1480
      %v1609 = vsel %vm1353, %v1095, %v1481
      %v1610 = vsel %vm1354, %v1098, %v1482
      %v1611 = vsel %vm1355, %v1103, %v1483
      %v1612 = vsel %vm1356, %v1106, %v1484
      %v1613 = vsel %vm1357, %v1111, %v1485
      %v1614 = vsel %vm1358, %v1114, %v1486
      %v1615 = vsel %vm1359, %v1119, %v1487
      %v1616 = vsel %vm1360, %v1122, %v1488
      %v1617 = vsel %vm1361, %v1127, %v1489
      %v1618 = vsel %vm1362, %v1130, %v1490
      %v1619 = vsel %vm1363, %v1135, %v1491
      %v1620 = vsel %vm1364, %v1138, %v1492
      %v1621 = vsel %vm1365, %v1143, %v1493
      %v1622 = vsel %vm1366, %v1146, %v1494
      %v1623 = vsel %vm1367, %v1151, %v1495
      %v1624 = vsel %vm1368, %v1154, %v1496
      %v1625 = vsel %vm1369, %v1159, %v1497
      %v1626 = vsel %vm1370, %v1162, %v1498
      %v1627 = vsel %vm1371, %v1167, %v1499
      %v1628 = vsel %vm1372, %v1170, %v1500
      %v1629 = vsel %vm1373, %v1175, %v1501
      %v1630 = vsel %vm1374, %v1178, %v1502
      %v1631 = vsel %vm1375, %v1183, %v1503
      %v1632 = vsel %vm1376, %v1186, %v1504
      %v1633 = vsel %vm1377, %v1191, %v1505
      %v1634 = vsel %vm1378, %v1194, %v1506
      %v1635 = vsel %vm1379, %v1199, %v1507
      %v1636 = vsel %vm1380, %v1202, %v1508
      %v1637 = vsel %vm1381, %v1207, %v1509
      %v1638 = vsel %vm1382, %v1210, %v1510
      %v1639 = vsel %vm1383, %v1215, %v1511
      %v1640 = vsel %vm1384, %v1218, %v1512
      %v1641 = vsel %vm1385, %v1223, %v1513
      %v1642 = vsel %vm1386, %v1226, %v1514
      %v1643 = vsel %vm1387, %v1231, %v1515
      %v1644 = vsel %vm1388, %v1234, %v1516
      %v1645 = vsel %vm1389, %v1239, %v1517
      %v1646 = vsel %vm1390, %v1242, %v1518
      %v1647 = vsel %vm1391, %v1247, %v1519
      %v1648 = vsel %vm1392, %v1250, %v1520
      %v1649 = vsel %vm1393, %v1255, %v1521
      %v1650 = vsel %vm1394, %v1258, %v1522
      %v1651 = vsel %vm1395, %v1263, %v1523
      %v1652 = vsel %vm1396, %v1266, %v1524
      %v1653 = vpack.c.bf16 %v1526, %v1525
      %v1654 = vpack.c.bf16 %v1528, %v1527
      %v1655 = vpack.c.bf16 %v1530, %v1529
      %v1656 = vpack.c.bf16 %v1532, %v1531
      %v1657 = vpack.c.bf16 %v1534, %v1533
      %v1658 = vpack.c.bf16 %v1536, %v1535
      %v1659 = vpack.c.bf16 %v1538, %v1537
      %v1660 = vpack.c.bf16 %v1540, %v1539
      %v1661 = vpack.c.bf16 %v1542, %v1541
      %v1662 = vpack.c.bf16 %v1544, %v1543
      %v1663 = vpack.c.bf16 %v1546, %v1545
      %v1664 = vpack.c.bf16 %v1548, %v1547
      %v1665 = vpack.c.bf16 %v1550, %v1549
      %v1666 = vpack.c.bf16 %v1552, %v1551
      %v1667 = vpack.c.bf16 %v1554, %v1553
      %v1668 = vpack.c.bf16 %v1556, %v1555
      %v1669 = vpack.c.bf16 %v1558, %v1557
      %v1670 = vpack.c.bf16 %v1560, %v1559
      %v1671 = vpack.c.bf16 %v1562, %v1561
      %v1672 = vpack.c.bf16 %v1564, %v1563
      %v1673 = vpack.c.bf16 %v1566, %v1565
      %v1674 = vpack.c.bf16 %v1568, %v1567
      %v1675 = vpack.c.bf16 %v1570, %v1569
      %v1676 = vpack.c.bf16 %v1572, %v1571
      %v1677 = vpack.c.bf16 %v1574, %v1573
      %v1678 = vpack.c.bf16 %v1576, %v1575
      %v1679 = vpack.c.bf16 %v1578, %v1577
      %v1680 = vpack.c.bf16 %v1580, %v1579
      %v1681 = vpack.c.bf16 %v1582, %v1581
      %v1682 = vpack.c.bf16 %v1584, %v1583
      %v1683 = vpack.c.bf16 %v1586, %v1585
      %v1684 = vpack.c.bf16 %v1588, %v1587
      %v1685 = vpack.c.bf16 %v1590, %v1589
      %v1686 = vpack.c.bf16 %v1592, %v1591
      %v1687 = vpack.c.bf16 %v1594, %v1593
      %v1688 = vpack.c.bf16 %v1596, %v1595
      %v1689 = vpack.c.bf16 %v1598, %v1597
      %v1690 = vpack.c.bf16 %v1600, %v1599
      %v1691 = vpack.c.bf16 %v1602, %v1601
      %v1692 = vpack.c.bf16 %v1604, %v1603
      %v1693 = vpack.c.bf16 %v1606, %v1605
      %v1694 = vpack.c.bf16 %v1608, %v1607
      %v1695 = vpack.c.bf16 %v1610, %v1609
      %v1696 = vpack.c.bf16 %v1612, %v1611
      %v1697 = vpack.c.bf16 %v1614, %v1613
      %v1698 = vpack.c.bf16 %v1616, %v1615
      %v1699 = vpack.c.bf16 %v1618, %v1617
      %v1700 = vpack.c.bf16 %v1620, %v1619
      %v1701 = vpack.c.bf16 %v1622, %v1621
      %v1702 = vpack.c.bf16 %v1624, %v1623
      %v1703 = vpack.c.bf16 %v1626, %v1625
      %v1704 = vpack.c.bf16 %v1628, %v1627
      %v1705 = vpack.c.bf16 %v1630, %v1629
      %v1706 = vpack.c.bf16 %v1632, %v1631
      %v1707 = vpack.c.bf16 %v1634, %v1633
      %v1708 = vpack.c.bf16 %v1636, %v1635
      %v1709 = vpack.c.bf16 %v1638, %v1637
      %v1710 = vpack.c.bf16 %v1640, %v1639
      %v1711 = vpack.c.bf16 %v1642, %v1641
      %v1712 = vpack.c.bf16 %v1644, %v1643
      %v1713 = vpack.c.bf16 %v1646, %v1645
      %v1714 = vpack.c.bf16 %v1648, %v1647
      %v1715 = vpack.c.bf16 %v1650, %v1649
      %v1716 = vpack.c.bf16 %v1652, %v1651
      %v1781 = vunpack.c.l.b16 %v1653
      %v1782 = vunpack.c.h.b16 %v1653
      %v1783 = vunpack.c.l.b16 %v1654
      %v1784 = vunpack.c.h.b16 %v1654
      %v1785 = vunpack.c.l.b16 %v1655
      %v1786 = vunpack.c.h.b16 %v1655
      %v1787 = vunpack.c.l.b16 %v1656
      %v1788 = vunpack.c.h.b16 %v1656
      %v1789 = vunpack.c.l.b16 %v1657
      %v1790 = vunpack.c.h.b16 %v1657
      %v1791 = vunpack.c.l.b16 %v1658
      %v1792 = vunpack.c.h.b16 %v1658
      %v1793 = vunpack.c.l.b16 %v1659
      %v1794 = vunpack.c.h.b16 %v1659
      %v1795 = vunpack.c.l.b16 %v1660
      %v1796 = vunpack.c.h.b16 %v1660
      %v1797 = vunpack.c.l.b16 %v1661
      %v1798 = vunpack.c.h.b16 %v1661
      %v1799 = vunpack.c.l.b16 %v1662
      %v1800 = vunpack.c.h.b16 %v1662
      %v1801 = vunpack.c.l.b16 %v1663
      %v1802 = vunpack.c.h.b16 %v1663
      %v1803 = vunpack.c.l.b16 %v1664
      %v1804 = vunpack.c.h.b16 %v1664
      %v1805 = vunpack.c.l.b16 %v1665
      %v1806 = vunpack.c.h.b16 %v1665
      %v1807 = vunpack.c.l.b16 %v1666
      %v1808 = vunpack.c.h.b16 %v1666
      %v1809 = vunpack.c.l.b16 %v1667
      %v1810 = vunpack.c.h.b16 %v1667
      %v1811 = vunpack.c.l.b16 %v1668
      %v1812 = vunpack.c.h.b16 %v1668
      %v1813 = vunpack.c.l.b16 %v1669
      %v1814 = vunpack.c.h.b16 %v1669
      %v1815 = vunpack.c.l.b16 %v1670
      %v1816 = vunpack.c.h.b16 %v1670
      %v1817 = vunpack.c.l.b16 %v1671
      %v1818 = vunpack.c.h.b16 %v1671
      %v1819 = vunpack.c.l.b16 %v1672
      %v1820 = vunpack.c.h.b16 %v1672
      %v1821 = vunpack.c.l.b16 %v1673
      %v1822 = vunpack.c.h.b16 %v1673
      %v1823 = vunpack.c.l.b16 %v1674
      %v1824 = vunpack.c.h.b16 %v1674
      %v1825 = vunpack.c.l.b16 %v1675
      %v1826 = vunpack.c.h.b16 %v1675
      %v1827 = vunpack.c.l.b16 %v1676
      %v1828 = vunpack.c.h.b16 %v1676
      %v1829 = vunpack.c.l.b16 %v1677
      %v1830 = vunpack.c.h.b16 %v1677
      %v1831 = vunpack.c.l.b16 %v1678
      %v1832 = vunpack.c.h.b16 %v1678
      %v1833 = vunpack.c.l.b16 %v1679
      %v1834 = vunpack.c.h.b16 %v1679
      %v1835 = vunpack.c.l.b16 %v1680
      %v1836 = vunpack.c.h.b16 %v1680
      %v1837 = vunpack.c.l.b16 %v1681
      %v1838 = vunpack.c.h.b16 %v1681
      %v1839 = vunpack.c.l.b16 %v1682
      %v1840 = vunpack.c.h.b16 %v1682
      %v1841 = vunpack.c.l.b16 %v1683
      %v1842 = vunpack.c.h.b16 %v1683
      %v1843 = vunpack.c.l.b16 %v1684
      %v1844 = vunpack.c.h.b16 %v1684
      %v1845 = vunpack.c.l.b16 %v1685
      %v1846 = vunpack.c.h.b16 %v1685
      %v1847 = vunpack.c.l.b16 %v1686
      %v1848 = vunpack.c.h.b16 %v1686
      %v1849 = vunpack.c.l.b16 %v1687
      %v1850 = vunpack.c.h.b16 %v1687
      %v1851 = vunpack.c.l.b16 %v1688
      %v1852 = vunpack.c.h.b16 %v1688
      %v1853 = vunpack.c.l.b16 %v1689
      %v1854 = vunpack.c.h.b16 %v1689
      %v1855 = vunpack.c.l.b16 %v1690
      %v1856 = vunpack.c.h.b16 %v1690
      %v1857 = vunpack.c.l.b16 %v1691
      %v1858 = vunpack.c.h.b16 %v1691
      %v1859 = vunpack.c.l.b16 %v1692
      %v1860 = vunpack.c.h.b16 %v1692
      %v1861 = vunpack.c.l.b16 %v1693
      %v1862 = vunpack.c.h.b16 %v1693
      %v1863 = vunpack.c.l.b16 %v1694
      %v1864 = vunpack.c.h.b16 %v1694
      %v1865 = vunpack.c.l.b16 %v1695
      %v1866 = vunpack.c.h.b16 %v1695
      %v1867 = vunpack.c.l.b16 %v1696
      %v1868 = vunpack.c.h.b16 %v1696
      %v1869 = vunpack.c.l.b16 %v1697
      %v1870 = vunpack.c.h.b16 %v1697
      %v1871 = vunpack.c.l.b16 %v1698
      %v1872 = vunpack.c.h.b16 %v1698
      %v1873 = vunpack.c.l.b16 %v1699
      %v1874 = vunpack.c.h.b16 %v1699
      %v1875 = vunpack.c.l.b16 %v1700
      %v1876 = vunpack.c.h.b16 %v1700
      %v1877 = vunpack.c.l.b16 %v1701
      %v1878 = vunpack.c.h.b16 %v1701
      %v1879 = vunpack.c.l.b16 %v1702
      %v1880 = vunpack.c.h.b16 %v1702
      %v1881 = vunpack.c.l.b16 %v1703
      %v1882 = vunpack.c.h.b16 %v1703
      %v1883 = vunpack.c.l.b16 %v1704
      %v1884 = vunpack.c.h.b16 %v1704
      %v1885 = vunpack.c.l.b16 %v1705
      %v1886 = vunpack.c.h.b16 %v1705
      %v1887 = vunpack.c.l.b16 %v1706
      %v1888 = vunpack.c.h.b16 %v1706
      %v1889 = vunpack.c.l.b16 %v1707
      %v1890 = vunpack.c.h.b16 %v1707
      %v1891 = vunpack.c.l.b16 %v1708
      %v1892 = vunpack.c.h.b16 %v1708
      %v1893 = vunpack.c.l.b16 %v1709
      %v1894 = vunpack.c.h.b16 %v1709
      %v1895 = vunpack.c.l.b16 %v1710
      %v1896 = vunpack.c.h.b16 %v1710
      %v1897 = vunpack.c.l.b16 %v1711
      %v1898 = vunpack.c.h.b16 %v1711
      %v1899 = vunpack.c.l.b16 %v1712
      %v1900 = vunpack.c.h.b16 %v1712
      %v1901 = vunpack.c.l.b16 %v1713
      %v1902 = vunpack.c.h.b16 %v1713
      %v1903 = vunpack.c.l.b16 %v1714
      %v1904 = vunpack.c.h.b16 %v1714
      %v1905 = vunpack.c.l.b16 %v1715
      %v1906 = vunpack.c.h.b16 %v1715
      %v1907 = vunpack.c.l.b16 %v1716
      %v1908 = vunpack.c.h.b16 %v1716
      %v1909 = vpack.c.b16 %v1781, %v1781
      %v1910 = vpack.c.b16 %v1782, %v1782
      %v1911 = vpack.c.b16 %v1783, %v1783
      %v1912 = vpack.c.b16 %v1784, %v1784
      %v1913 = vpack.c.b16 %v1785, %v1785
      %v1914 = vpack.c.b16 %v1786, %v1786
      %v1915 = vpack.c.b16 %v1787, %v1787
      %v1916 = vpack.c.b16 %v1788, %v1788
      %v1917 = vpack.c.b16 %v1789, %v1789
      %v1918 = vpack.c.b16 %v1790, %v1790
      %v1919 = vpack.c.b16 %v1791, %v1791
      %v1920 = vpack.c.b16 %v1792, %v1792
      %v1921 = vpack.c.b16 %v1793, %v1793
      %v1922 = vpack.c.b16 %v1794, %v1794
      %v1923 = vpack.c.b16 %v1795, %v1795
      %v1924 = vpack.c.b16 %v1796, %v1796
      %v1925 = vpack.c.b16 %v1797, %v1797
      %v1926 = vpack.c.b16 %v1798, %v1798
      %v1927 = vpack.c.b16 %v1799, %v1799
      %v1928 = vpack.c.b16 %v1800, %v1800
      %v1929 = vpack.c.b16 %v1801, %v1801
      %v1930 = vpack.c.b16 %v1802, %v1802
      %v1931 = vpack.c.b16 %v1803, %v1803
      %v1932 = vpack.c.b16 %v1804, %v1804
      %v1933 = vpack.c.b16 %v1805, %v1805
      %v1934 = vpack.c.b16 %v1806, %v1806
      %v1935 = vpack.c.b16 %v1807, %v1807
      %v1936 = vpack.c.b16 %v1808, %v1808
      %v1937 = vpack.c.b16 %v1809, %v1809
      %v1938 = vpack.c.b16 %v1810, %v1810
      %v1939 = vpack.c.b16 %v1811, %v1811
      %v1940 = vpack.c.b16 %v1812, %v1812
      %v1941 = vpack.c.b16 %v1813, %v1813
      %v1942 = vpack.c.b16 %v1814, %v1814
      %v1943 = vpack.c.b16 %v1815, %v1815
      %v1944 = vpack.c.b16 %v1816, %v1816
      %v1945 = vpack.c.b16 %v1817, %v1817
      %v1946 = vpack.c.b16 %v1818, %v1818
      %v1947 = vpack.c.b16 %v1819, %v1819
      %v1948 = vpack.c.b16 %v1820, %v1820
      %v1949 = vpack.c.b16 %v1821, %v1821
      %v1950 = vpack.c.b16 %v1822, %v1822
      %v1951 = vpack.c.b16 %v1823, %v1823
      %v1952 = vpack.c.b16 %v1824, %v1824
      %v1953 = vpack.c.b16 %v1825, %v1825
      %v1954 = vpack.c.b16 %v1826, %v1826
      %v1955 = vpack.c.b16 %v1827, %v1827
      %v1956 = vpack.c.b16 %v1828, %v1828
      %v1957 = vpack.c.b16 %v1829, %v1829
      %v1958 = vpack.c.b16 %v1830, %v1830
      %v1959 = vpack.c.b16 %v1831, %v1831
      %v1960 = vpack.c.b16 %v1832, %v1832
      %v1961 = vpack.c.b16 %v1833, %v1833
      %v1962 = vpack.c.b16 %v1834, %v1834
      %v1963 = vpack.c.b16 %v1835, %v1835
      %v1964 = vpack.c.b16 %v1836, %v1836
      %v1965 = vpack.c.b16 %v1837, %v1837
      %v1966 = vpack.c.b16 %v1838, %v1838
      %v1967 = vpack.c.b16 %v1839, %v1839
      %v1968 = vpack.c.b16 %v1840, %v1840
      %v1969 = vpack.c.b16 %v1841, %v1841
      %v1970 = vpack.c.b16 %v1842, %v1842
      %v1971 = vpack.c.b16 %v1843, %v1843
      %v1972 = vpack.c.b16 %v1844, %v1844
      %v1973 = vpack.c.b16 %v1845, %v1845
      %v1974 = vpack.c.b16 %v1846, %v1846
      %v1975 = vpack.c.b16 %v1847, %v1847
      %v1976 = vpack.c.b16 %v1848, %v1848
      %v1977 = vpack.c.b16 %v1849, %v1849
      %v1978 = vpack.c.b16 %v1850, %v1850
      %v1979 = vpack.c.b16 %v1851, %v1851
      %v1980 = vpack.c.b16 %v1852, %v1852
      %v1981 = vpack.c.b16 %v1853, %v1853
      %v1982 = vpack.c.b16 %v1854, %v1854
      %v1983 = vpack.c.b16 %v1855, %v1855
      %v1984 = vpack.c.b16 %v1856, %v1856
      %v1985 = vpack.c.b16 %v1857, %v1857
      %v1986 = vpack.c.b16 %v1858, %v1858
      %v1987 = vpack.c.b16 %v1859, %v1859
      %v1988 = vpack.c.b16 %v1860, %v1860
      %v1989 = vpack.c.b16 %v1861, %v1861
      %v1990 = vpack.c.b16 %v1862, %v1862
      %v1991 = vpack.c.b16 %v1863, %v1863
      %v1992 = vpack.c.b16 %v1864, %v1864
      %v1993 = vpack.c.b16 %v1865, %v1865
      %v1994 = vpack.c.b16 %v1866, %v1866
      %v1995 = vpack.c.b16 %v1867, %v1867
      %v1996 = vpack.c.b16 %v1868, %v1868
      %v1997 = vpack.c.b16 %v1869, %v1869
      %v1998 = vpack.c.b16 %v1870, %v1870
      %v1999 = vpack.c.b16 %v1871, %v1871
      %v2000 = vpack.c.b16 %v1872, %v1872
      %v2001 = vpack.c.b16 %v1873, %v1873
      %v2002 = vpack.c.b16 %v1874, %v1874
      %v2003 = vpack.c.b16 %v1875, %v1875
      %v2004 = vpack.c.b16 %v1876, %v1876
      %v2005 = vpack.c.b16 %v1877, %v1877
      %v2006 = vpack.c.b16 %v1878, %v1878
      %v2007 = vpack.c.b16 %v1879, %v1879
      %v2008 = vpack.c.b16 %v1880, %v1880
      %v2009 = vpack.c.b16 %v1881, %v1881
      %v2010 = vpack.c.b16 %v1882, %v1882
      %v2011 = vpack.c.b16 %v1883, %v1883
      %v2012 = vpack.c.b16 %v1884, %v1884
      %v2013 = vpack.c.b16 %v1885, %v1885
      %v2014 = vpack.c.b16 %v1886, %v1886
      %v2015 = vpack.c.b16 %v1887, %v1887
      %v2016 = vpack.c.b16 %v1888, %v1888
      %v2017 = vpack.c.b16 %v1889, %v1889
      %v2018 = vpack.c.b16 %v1890, %v1890
      %v2019 = vpack.c.b16 %v1891, %v1891
      %v2020 = vpack.c.b16 %v1892, %v1892
      %v2021 = vpack.c.b16 %v1893, %v1893
      %v2022 = vpack.c.b16 %v1894, %v1894
      %v2023 = vpack.c.b16 %v1895, %v1895
      %v2024 = vpack.c.b16 %v1896, %v1896
      %v2025 = vpack.c.b16 %v1897, %v1897
      %v2026 = vpack.c.b16 %v1898, %v1898
      %v2027 = vpack.c.b16 %v1899, %v1899
      %v2028 = vpack.c.b16 %v1900, %v1900
      %v2029 = vpack.c.b16 %v1901, %v1901
      %v2030 = vpack.c.b16 %v1902, %v1902
      %v2031 = vpack.c.b16 %v1903, %v1903
      %v2032 = vpack.c.b16 %v1904, %v1904
      %v2033 = vpack.c.b16 %v1905, %v1905
      %v2034 = vpack.c.b16 %v1906, %v1906
      %v2035 = vpack.c.b16 %v1907, %v1907
      %v2036 = vpack.c.b16 %v1908, %v1908
      %2165 = vst [vmem:[%s145] sm:$0xf] %v1909
      %2166 = vst [vmem:[%s145 + $0x4] sm:$0xf] %v1910
      %2167 = vst [vmem:[%s145 + $0x8] sm:$0xf] %v1911
      %2168 = vst [vmem:[%s145 + $0xc] sm:$0xf] %v1912
      %2169 = vst [vmem:[%s145 + $0x10] sm:$0xf] %v1913
      %2170 = vst [vmem:[%s145 + $0x14] sm:$0xf] %v1914
      %2171 = vst [vmem:[%s145 + $0x18] sm:$0xf] %v1915
      %2172 = vst [vmem:[%s145 + $0x1c] sm:$0xf] %v1916
      %2173 = vst [vmem:[%s145 + $0x20] sm:$0xf] %v1917
      %2174 = vst [vmem:[%s145 + $0x24] sm:$0xf] %v1918
      %2175 = vst [vmem:[%s145 + $0x28] sm:$0xf] %v1919
      %2176 = vst [vmem:[%s145 + $0x2c] sm:$0xf] %v1920
      %2177 = vst [vmem:[%s145 + $0x30] sm:$0xf] %v1921
      %2178 = vst [vmem:[%s145 + $0x34] sm:$0xf] %v1922
      %2179 = vst [vmem:[%s145 + $0x38] sm:$0xf] %v1923
      %2180 = vst [vmem:[%s145 + $0x3c] sm:$0xf] %v1924
      %2181 = vst [vmem:[%s145 + $0x40] sm:$0xf] %v1925
      %2182 = vst [vmem:[%s145 + $0x44] sm:$0xf] %v1926
      %2183 = vst [vmem:[%s145 + $0x48] sm:$0xf] %v1927
      %2184 = vst [vmem:[%s145 + $0x4c] sm:$0xf] %v1928
      %2185 = vst [vmem:[%s145 + $0x50] sm:$0xf] %v1929
      %2186 = vst [vmem:[%s145 + $0x54] sm:$0xf] %v1930
      %2187 = vst [vmem:[%s145 + $0x58] sm:$0xf] %v1931
      %2188 = vst [vmem:[%s145 + $0x5c] sm:$0xf] %v1932
      %2189 = vst [vmem:[%s145 + $0x60] sm:$0xf] %v1933
      %2190 = vst [vmem:[%s145 + $0x64] sm:$0xf] %v1934
      %2191 = vst [vmem:[%s145 + $0x68] sm:$0xf] %v1935
      %2192 = vst [vmem:[%s145 + $0x6c] sm:$0xf] %v1936
      %2193 = vst [vmem:[%s145 + $0x70] sm:$0xf] %v1937
      %2194 = vst [vmem:[%s145 + $0x74] sm:$0xf] %v1938
      %2195 = vst [vmem:[%s145 + $0x78] sm:$0xf] %v1939
      %2196 = vst [vmem:[%s145 + $0x7c] sm:$0xf] %v1940
      %2197 = vst [vmem:[%s145 + $0x80] sm:$0xf] %v1941
      %2198 = vst [vmem:[%s145 + $0x84] sm:$0xf] %v1942
      %2199 = vst [vmem:[%s145 + $0x88] sm:$0xf] %v1943
      %2200 = vst [vmem:[%s145 + $0x8c] sm:$0xf] %v1944
      %2201 = vst [vmem:[%s145 + $0x90] sm:$0xf] %v1945
      %2202 = vst [vmem:[%s145 + $0x94] sm:$0xf] %v1946
      %2203 = vst [vmem:[%s145 + $0x98] sm:$0xf] %v1947
      %2204 = vst [vmem:[%s145 + $0x9c] sm:$0xf] %v1948
      %2205 = vst [vmem:[%s145 + $0xa0] sm:$0xf] %v1949
      %2206 = vst [vmem:[%s145 + $0xa4] sm:$0xf] %v1950
      %2207 = vst [vmem:[%s145 + $0xa8] sm:$0xf] %v1951
      %2208 = vst [vmem:[%s145 + $0xac] sm:$0xf] %v1952
      %2209 = vst [vmem:[%s145 + $0xb0] sm:$0xf] %v1953
      %2210 = vst [vmem:[%s145 + $0xb4] sm:$0xf] %v1954
      %2211 = vst [vmem:[%s145 + $0xb8] sm:$0xf] %v1955
      %2212 = vst [vmem:[%s145 + $0xbc] sm:$0xf] %v1956
      %2213 = vst [vmem:[%s145 + $0xc0] sm:$0xf] %v1957
      %2214 = vst [vmem:[%s145 + $0xc4] sm:$0xf] %v1958
      %2215 = vst [vmem:[%s145 + $0xc8] sm:$0xf] %v1959
      %2216 = vst [vmem:[%s145 + $0xcc] sm:$0xf] %v1960
      %2217 = vst [vmem:[%s145 + $0xd0] sm:$0xf] %v1961
      %2218 = vst [vmem:[%s145 + $0xd4] sm:$0xf] %v1962
      %2219 = vst [vmem:[%s145 + $0xd8] sm:$0xf] %v1963
      %2220 = vst [vmem:[%s145 + $0xdc] sm:$0xf] %v1964
      %2221 = vst [vmem:[%s145 + $0xe0] sm:$0xf] %v1965
      %2222 = vst [vmem:[%s145 + $0xe4] sm:$0xf] %v1966
      %2223 = vst [vmem:[%s145 + $0xe8] sm:$0xf] %v1967
      %2224 = vst [vmem:[%s145 + $0xec] sm:$0xf] %v1968
      %2225 = vst [vmem:[%s145 + $0xf0] sm:$0xf] %v1969
      %2226 = vst [vmem:[%s145 + $0xf4] sm:$0xf] %v1970
      %2227 = vst [vmem:[%s145 + $0xf8] sm:$0xf] %v1971
      %2228 = vst [vmem:[%s145 + $0xfc] sm:$0xf] %v1972
      %2229 = vst [vmem:[%s145 + $0x100] sm:$0xf] %v1973
      %2230 = vst [vmem:[%s145 + $0x104] sm:$0xf] %v1974
      %2231 = vst [vmem:[%s145 + $0x108] sm:$0xf] %v1975
      %2232 = vst [vmem:[%s145 + $0x10c] sm:$0xf] %v1976
      %2233 = vst [vmem:[%s145 + $0x110] sm:$0xf] %v1977
      %2234 = vst [vmem:[%s145 + $0x114] sm:$0xf] %v1978
      %2235 = vst [vmem:[%s145 + $0x118] sm:$0xf] %v1979
      %2236 = vst [vmem:[%s145 + $0x11c] sm:$0xf] %v1980
      %2237 = vst [vmem:[%s145 + $0x120] sm:$0xf] %v1981
      %2238 = vst [vmem:[%s145 + $0x124] sm:$0xf] %v1982
      %2239 = vst [vmem:[%s145 + $0x128] sm:$0xf] %v1983
      %2240 = vst [vmem:[%s145 + $0x12c] sm:$0xf] %v1984
      %2241 = vst [vmem:[%s145 + $0x130] sm:$0xf] %v1985
      %2242 = vst [vmem:[%s145 + $0x134] sm:$0xf] %v1986
      %2243 = vst [vmem:[%s145 + $0x138] sm:$0xf] %v1987
      %2244 = vst [vmem:[%s145 + $0x13c] sm:$0xf] %v1988
      %2245 = vst [vmem:[%s145 + $0x140] sm:$0xf] %v1989
      %2246 = vst [vmem:[%s145 + $0x144] sm:$0xf] %v1990
      %2247 = vst [vmem:[%s145 + $0x148] sm:$0xf] %v1991
      %2248 = vst [vmem:[%s145 + $0x14c] sm:$0xf] %v1992
      %2249 = vst [vmem:[%s145 + $0x150] sm:$0xf] %v1993
      %2250 = vst [vmem:[%s145 + $0x154] sm:$0xf] %v1994
      %2251 = vst [vmem:[%s145 + $0x158] sm:$0xf] %v1995
      %2252 = vst [vmem:[%s145 + $0x15c] sm:$0xf] %v1996
      %2253 = vst [vmem:[%s145 + $0x160] sm:$0xf] %v1997
      %2254 = vst [vmem:[%s145 + $0x164] sm:$0xf] %v1998
      %2255 = vst [vmem:[%s145 + $0x168] sm:$0xf] %v1999
      %2256 = vst [vmem:[%s145 + $0x16c] sm:$0xf] %v2000
      %2257 = vst [vmem:[%s145 + $0x170] sm:$0xf] %v2001
      %2258 = vst [vmem:[%s145 + $0x174] sm:$0xf] %v2002
      %2259 = vst [vmem:[%s145 + $0x178] sm:$0xf] %v2003
      %2260 = vst [vmem:[%s145 + $0x17c] sm:$0xf] %v2004
      %2261 = vst [vmem:[%s145 + $0x180] sm:$0xf] %v2005
      %2262 = vst [vmem:[%s145 + $0x184] sm:$0xf] %v2006
      %2263 = vst [vmem:[%s145 + $0x188] sm:$0xf] %v2007
      %2264 = vst [vmem:[%s145 + $0x18c] sm:$0xf] %v2008
      %2265 = vst [vmem:[%s145 + $0x190] sm:$0xf] %v2009
      %2266 = vst [vmem:[%s145 + $0x194] sm:$0xf] %v2010
      %2267 = vst [vmem:[%s145 + $0x198] sm:$0xf] %v2011
      %2268 = vst [vmem:[%s145 + $0x19c] sm:$0xf] %v2012
      %2269 = vst [vmem:[%s145 + $0x1a0] sm:$0xf] %v2013
      %2270 = vst [vmem:[%s145 + $0x1a4] sm:$0xf] %v2014
      %2271 = vst [vmem:[%s145 + $0x1a8] sm:$0xf] %v2015
      %2272 = vst [vmem:[%s145 + $0x1ac] sm:$0xf] %v2016
      %2273 = vst [vmem:[%s145 + $0x1b0] sm:$0xf] %v2017
      %2274 = vst [vmem:[%s145 + $0x1b4] sm:$0xf] %v2018
      %2275 = vst [vmem:[%s145 + $0x1b8] sm:$0xf] %v2019
      %2276 = vst [vmem:[%s145 + $0x1bc] sm:$0xf] %v2020
      %2277 = vst [vmem:[%s145 + $0x1c0] sm:$0xf] %v2021
      %2278 = vst [vmem:[%s145 + $0x1c4] sm:$0xf] %v2022
      %2279 = vst [vmem:[%s145 + $0x1c8] sm:$0xf] %v2023
      %2280 = vst [vmem:[%s145 + $0x1cc] sm:$0xf] %v2024
      %2281 = vst [vmem:[%s145 + $0x1d0] sm:$0xf] %v2025
      %2282 = vst [vmem:[%s145 + $0x1d4] sm:$0xf] %v2026
      %2283 = vst [vmem:[%s145 + $0x1d8] sm:$0xf] %v2027
      %2284 = vst [vmem:[%s145 + $0x1dc] sm:$0xf] %v2028
      %2285 = vst [vmem:[%s145 + $0x1e0] sm:$0xf] %v2029
      %2286 = vst [vmem:[%s145 + $0x1e4] sm:$0xf] %v2030
      %2287 = vst [vmem:[%s145 + $0x1e8] sm:$0xf] %v2031
      %2288 = vst [vmem:[%s145 + $0x1ec] sm:$0xf] %v2032
      %2289 = vst [vmem:[%s145 + $0x1f0] sm:$0xf] %v2033
      %2290 = vst [vmem:[%s145 + $0x1f4] sm:$0xf] %v2034
      %2291 = vst [vmem:[%s145 + $0x1f8] sm:$0xf] %v2035
      %2292 = vst [vmem:[%s145 + $0x1fc] sm:$0xf] %v2036
      %s2293 = smul.u32 128, %s13
      %p2294 = scmp.lt.s32.totalorder %s2293, 255
      %s2295 = scalar_select %p2294, %s2293, 255
      %s2296 = smul.addr %s2295, 4
      %s2297 = scalar_lea.vmem %s2, %s2296
      // Predicated region
      $region29: #{netd_forward.5} parent=27 // pred_check
        %p2298 = pneg %p78
      $region30: #{netd_forward.5} parent=27 // pred_check_branch
        %2300 = sbr.rel (%p2298) target = $region32
      $region31: #{netd_forward.5} parent=27 // pred_region
        %s2301 = smul.u32 128, %s13
      $region32: #{netd_forward.5} parent=27 // pred_fallthru
        _
    $region28: #{netd_forward.5} parent=5 // pred_fallthru
      _
    %p2302 = scmp.le.s32.totalorder 2, %s8
    // Predicated region
    $region33: #{netd_forward.5} parent=5 // pred_check
      %p2303 = pneg %p2302
    $region34: #{netd_forward.5} parent=5 // pred_check_branch
      %2305 = sbr.rel (%p2303) target = $region36
    $region35: #{netd_forward.5} parent=5 // pred_region
      %s2306 = ssub.s32 %s8, 2
      // Predicated region
      $region37: #{netd_forward.5} parent=35 // pred_check
        %p2307 = pneg %p84
      $region38: #{netd_forward.5} parent=35 // pred_check_branch
        %2309 = sbr.rel (%p2307) target = $region40
      $region39: #{netd_forward.5} parent=35 // pred_region
        %s2310 = smul.u32 128, %s14
        %p2311 = scmp.lt.s32.totalorder %s2310, 255
        %s2312 = scalar_select %p2311, %s2310, 255
        %s2313 = smul.addr %s2312, 4
        %s2314 = scalar_lea.vmem %s2, %s2313
      $region40: #{netd_forward.5} parent=35 // pred_fallthru
        _
    $region36: #{netd_forward.5} parent=5 // pred_fallthru
      _
  $region6: #{netd_forward.5} parent=0 // loop_footer
    %s12 = sadd.s32 1, %s8
  $region7: #{netd_forward.5} parent=0 // loop_footer_branch
    %7 = sbr.rel target = $region3
  $region8: #{netd_forward.5} parent=0 // loop_exit
    _

// kernel: netd_forward.6
$region0: #{netd_forward.6}
  #allocation0 [shape = 'u32[]', space=smem, size = 0x4, offset = 0x4, fixed_abs, tag = 'smem constant byte address 0x4 - core index']
  #allocation1 [shape = 'u32[144,128]{1,0:T(1,128)}', space=vmem, size = 0x12000, scoped, tag = 'internal scratch']
  %s0 = inlined_call_operand.vmem [shape: bf16[512,128], index: 0, kind: input, shape index: {}]
  %s1 = inlined_call_operand.vmem [shape: bf16[128,128], index: 1, kind: input, shape index: {}]
  %s2 = inlined_call_operand.vmem [shape: bf16[512,128], index: 2, kind: output, shape index: {}]
  %s3 = sld [smem:[#allocation0]]
  $region18: #{netd_forward.6} parent=0
    _
  %s5 = ssub.s32 1, %s3
  %s6 = scalar_select 0, %s5, %s3
  // Predicated region
  $region2: #{netd_forward.6} parent=0 // pred_check
    _
  $region3: #{netd_forward.6} parent=0 // pred_check_branch
    %8 = sbr.rel (0) target = $region5
  $region4: #{netd_forward.6} parent=0 // pred_region
    _
  $region5: #{netd_forward.6} parent=0 // pred_fallthru
    _
  // Predicated region
  $region6: #{netd_forward.6} parent=0 // pred_check
    _
  $region7: #{netd_forward.6} parent=0 // pred_check_branch
    %10 = sbr.rel (0) target = $region9
  $region8: #{netd_forward.6} parent=0 // pred_region
    _
  $region9: #{netd_forward.6} parent=0 // pred_fallthru
    _
  %v12 = vld [vmem:[%s0] sm:$0xf]
  %v13 = vld [vmem:[%s0 + $0x4] sm:$0xf]
  %v14 = vld [vmem:[%s0 + $0x8] sm:$0xf]
  %v15 = vld [vmem:[%s0 + $0xc] sm:$0xf]
  %v16 = vld [vmem:[%s0 + $0x10] sm:$0xf]
  %v17 = vld [vmem:[%s0 + $0x14] sm:$0xf]
  %v18 = vld [vmem:[%s0 + $0x18] sm:$0xf]
  %v19 = vld [vmem:[%s0 + $0x1c] sm:$0xf]
  %v20 = vld [vmem:[%s0 + $0x20] sm:$0xf]
  %v21 = vld [vmem:[%s0 + $0x24] sm:$0xf]
  %v22 = vld [vmem:[%s0 + $0x28] sm:$0xf]
  %v23 = vld [vmem:[%s0 + $0x2c] sm:$0xf]
  %v24 = vld [vmem:[%s0 + $0x30] sm:$0xf]
  %v25 = vld [vmem:[%s0 + $0x34] sm:$0xf]
  %v26 = vld [vmem:[%s0 + $0x38] sm:$0xf]
  %v27 = vld [vmem:[%s0 + $0x3c] sm:$0xf]
  %v28 = vld [vmem:[%s0 + $0x40] sm:$0xf]
  %v29 = vld [vmem:[%s0 + $0x44] sm:$0xf]
  %v30 = vld [vmem:[%s0 + $0x48] sm:$0xf]
  %v31 = vld [vmem:[%s0 + $0x4c] sm:$0xf]
  %v32 = vld [vmem:[%s0 + $0x50] sm:$0xf]
  %v33 = vld [vmem:[%s0 + $0x54] sm:$0xf]
  %v34 = vld [vmem:[%s0 + $0x58] sm:$0xf]
  %v35 = vld [vmem:[%s0 + $0x5c] sm:$0xf]
  %v36 = vld [vmem:[%s0 + $0x60] sm:$0xf]
  %v37 = vld [vmem:[%s0 + $0x64] sm:$0xf]
  %v38 = vld [vmem:[%s0 + $0x68] sm:$0xf]
  %v39 = vld [vmem:[%s0 + $0x6c] sm:$0xf]
  %v40 = vld [vmem:[%s0 + $0x70] sm:$0xf]
  %v41 = vld [vmem:[%s0 + $0x74] sm:$0xf]
  %v42 = vld [vmem:[%s0 + $0x78] sm:$0xf]
  %v43 = vld [vmem:[%s0 + $0x7c] sm:$0xf]
  %v44 = vld [vmem:[%s0 + $0x80] sm:$0xf]
  %v45 = vld [vmem:[%s0 + $0x84] sm:$0xf]
  %v46 = vld [vmem:[%s0 + $0x88] sm:$0xf]
  %v47 = vld [vmem:[%s0 + $0x8c] sm:$0xf]
  %v48 = vld [vmem:[%s0 + $0x90] sm:$0xf]
  %v49 = vld [vmem:[%s0 + $0x94] sm:$0xf]
  %v50 = vld [vmem:[%s0 + $0x98] sm:$0xf]
  %v51 = vld [vmem:[%s0 + $0x9c] sm:$0xf]
  %v52 = vld [vmem:[%s0 + $0xa0] sm:$0xf]
  %v53 = vld [vmem:[%s0 + $0xa4] sm:$0xf]
  %v54 = vld [vmem:[%s0 + $0xa8] sm:$0xf]
  %v55 = vld [vmem:[%s0 + $0xac] sm:$0xf]
  %v56 = vld [vmem:[%s0 + $0xb0] sm:$0xf]
  %v57 = vld [vmem:[%s0 + $0xb4] sm:$0xf]
  %v58 = vld [vmem:[%s0 + $0xb8] sm:$0xf]
  %v59 = vld [vmem:[%s0 + $0xbc] sm:$0xf]
  %v60 = vld [vmem:[%s0 + $0xc0] sm:$0xf]
  %v61 = vld [vmem:[%s0 + $0xc4] sm:$0xf]
  %v62 = vld [vmem:[%s0 + $0xc8] sm:$0xf]
  %v63 = vld [vmem:[%s0 + $0xcc] sm:$0xf]
  %v64 = vld [vmem:[%s0 + $0xd0] sm:$0xf]
  %v65 = vld [vmem:[%s0 + $0xd4] sm:$0xf]
  %v66 = vld [vmem:[%s0 + $0xd8] sm:$0xf]
  %v67 = vld [vmem:[%s0 + $0xdc] sm:$0xf]
  %v68 = vld [vmem:[%s0 + $0xe0] sm:$0xf]
  %v69 = vld [vmem:[%s0 + $0xe4] sm:$0xf]
  %v70 = vld [vmem:[%s0 + $0xe8] sm:$0xf]
  %v71 = vld [vmem:[%s0 + $0xec] sm:$0xf]
  %v72 = vld [vmem:[%s0 + $0xf0] sm:$0xf]
  %v73 = vld [vmem:[%s0 + $0xf4] sm:$0xf]
  %v74 = vld [vmem:[%s0 + $0xf8] sm:$0xf]
  %v75 = vld [vmem:[%s0 + $0xfc] sm:$0xf]
  %v76 = vld [vmem:[%s1] sm:$0xf]
  %v77 = vld [vmem:[%s1 + $0x4] sm:$0xf]
  %v78 = vld [vmem:[%s1 + $0x8] sm:$0xf]
  %v79 = vld [vmem:[%s1 + $0xc] sm:$0xf]
  %v80 = vld [vmem:[%s1 + $0x10] sm:$0xf]
  %v81 = vld [vmem:[%s1 + $0x14] sm:$0xf]
  %v82 = vld [vmem:[%s1 + $0x18] sm:$0xf]
  %v83 = vld [vmem:[%s1 + $0x1c] sm:$0xf]
  %v84 = vld [vmem:[%s1 + $0x20] sm:$0xf]
  %v85 = vld [vmem:[%s1 + $0x24] sm:$0xf]
  %v86 = vld [vmem:[%s1 + $0x28] sm:$0xf]
  %v87 = vld [vmem:[%s1 + $0x2c] sm:$0xf]
  %v88 = vld [vmem:[%s1 + $0x30] sm:$0xf]
  %v89 = vld [vmem:[%s1 + $0x34] sm:$0xf]
  %v90 = vld [vmem:[%s1 + $0x38] sm:$0xf]
  %v91 = vld [vmem:[%s1 + $0x3c] sm:$0xf]
  %v156 = vunpack.c.l.b16 %v12
  %v157 = vunpack.c.l.b16 %v13
  %v158 = vunpack.c.l.b16 %v14
  %v159 = vunpack.c.l.b16 %v15
  %v160 = vunpack.c.l.b16 %v16
  %v161 = vunpack.c.l.b16 %v17
  %v162 = vunpack.c.l.b16 %v18
  %v163 = vunpack.c.l.b16 %v19
  %v164 = vunpack.c.l.b16 %v20
  %v165 = vunpack.c.l.b16 %v21
  %v166 = vunpack.c.l.b16 %v22
  %v167 = vunpack.c.l.b16 %v23
  %v168 = vunpack.c.l.b16 %v24
  %v169 = vunpack.c.l.b16 %v25
  %v170 = vunpack.c.l.b16 %v26
  %v171 = vunpack.c.l.b16 %v27
  %v172 = vunpack.c.l.b16 %v28
  %v173 = vunpack.c.l.b16 %v29
  %v174 = vunpack.c.l.b16 %v30
  %v175 = vunpack.c.l.b16 %v31
  %v176 = vunpack.c.l.b16 %v32
  %v177 = vunpack.c.l.b16 %v33
  %v178 = vunpack.c.l.b16 %v34
  %v179 = vunpack.c.l.b16 %v35
  %v180 = vunpack.c.l.b16 %v36
  %v181 = vunpack.c.l.b16 %v37
  %v182 = vunpack.c.l.b16 %v38
  %v183 = vunpack.c.l.b16 %v39
  %v184 = vunpack.c.l.b16 %v40
  %v185 = vunpack.c.l.b16 %v41
  %v186 = vunpack.c.l.b16 %v42
  %v187 = vunpack.c.l.b16 %v43
  %v188 = vunpack.c.l.b16 %v44
  %v189 = vunpack.c.l.b16 %v45
  %v190 = vunpack.c.l.b16 %v46
  %v191 = vunpack.c.l.b16 %v47
  %v192 = vunpack.c.l.b16 %v48
  %v193 = vunpack.c.l.b16 %v49
  %v194 = vunpack.c.l.b16 %v50
  %v195 = vunpack.c.l.b16 %v51
  %v196 = vunpack.c.l.b16 %v52
  %v197 = vunpack.c.l.b16 %v53
  %v198 = vunpack.c.l.b16 %v54
  %v199 = vunpack.c.l.b16 %v55
  %v200 = vunpack.c.l.b16 %v56
  %v201 = vunpack.c.l.b16 %v57
  %v202 = vunpack.c.l.b16 %v58
  %v203 = vunpack.c.l.b16 %v59
  %v204 = vunpack.c.l.b16 %v60
  %v205 = vunpack.c.l.b16 %v61
  %v206 = vunpack.c.l.b16 %v62
  %v207 = vunpack.c.l.b16 %v63
  %v208 = vunpack.c.l.b16 %v64
  %v209 = vunpack.c.l.b16 %v65
  %v210 = vunpack.c.l.b16 %v66
  %v211 = vunpack.c.l.b16 %v67
  %v212 = vunpack.c.l.b16 %v68
  %v213 = vunpack.c.l.b16 %v69
  %v214 = vunpack.c.l.b16 %v70
  %v215 = vunpack.c.l.b16 %v71
  %v216 = vunpack.c.l.b16 %v72
  %v217 = vunpack.c.l.b16 %v73
  %v218 = vunpack.c.l.b16 %v74
  %v219 = vunpack.c.l.b16 %v75
  %v220 = vpack.c.b16 %v157, %v156
  %v221 = vpack.c.b16 %v159, %v158
  %v222 = vpack.c.b16 %v161, %v160
  %v223 = vpack.c.b16 %v163, %v162
  %v224 = vpack.c.b16 %v165, %v164
  %v225 = vpack.c.b16 %v167, %v166
  %v226 = vpack.c.b16 %v169, %v168
  %v227 = vpack.c.b16 %v171, %v170
  %v228 = vpack.c.b16 %v173, %v172
  %v229 = vpack.c.b16 %v175, %v174
  %v230 = vpack.c.b16 %v177, %v176
  %v231 = vpack.c.b16 %v179, %v178
  %v232 = vpack.c.b16 %v181, %v180
  %v233 = vpack.c.b16 %v183, %v182
  %v234 = vpack.c.b16 %v185, %v184
  %v235 = vpack.c.b16 %v187, %v186
  %v236 = vpack.c.b16 %v189, %v188
  %v237 = vpack.c.b16 %v191, %v190
  %v238 = vpack.c.b16 %v193, %v192
  %v239 = vpack.c.b16 %v195, %v194
  %v240 = vpack.c.b16 %v197, %v196
  %v241 = vpack.c.b16 %v199, %v198
  %v242 = vpack.c.b16 %v201, %v200
  %v243 = vpack.c.b16 %v203, %v202
  %v244 = vpack.c.b16 %v205, %v204
  %v245 = vpack.c.b16 %v207, %v206
  %v246 = vpack.c.b16 %v209, %v208
  %v247 = vpack.c.b16 %v211, %v210
  %v248 = vpack.c.b16 %v213, %v212
  %v249 = vpack.c.b16 %v215, %v214
  %v250 = vpack.c.b16 %v217, %v216
  %v251 = vpack.c.b16 %v219, %v218
  %v300 = vunpack.c.l.b16 %v76
  %v301 = vunpack.c.l.b16 %v77
  %v302 = vunpack.c.l.b16 %v78
  %v303 = vunpack.c.l.b16 %v79
  %v304 = vunpack.c.l.b16 %v80
  %v305 = vunpack.c.l.b16 %v81
  %v306 = vunpack.c.l.b16 %v82
  %v307 = vunpack.c.l.b16 %v83
  %v308 = vunpack.c.l.b16 %v84
  %v309 = vunpack.c.l.b16 %v85
  %v310 = vunpack.c.l.b16 %v86
  %v311 = vunpack.c.l.b16 %v87
  %v312 = vunpack.c.l.b16 %v88
  %v313 = vunpack.c.l.b16 %v89
  %v314 = vunpack.c.l.b16 %v90
  %v315 = vunpack.c.l.b16 %v91
  %v316 = vpack.c.b16 %v301, %v300
  %v317 = vpack.c.b16 %v303, %v302
  %v318 = vpack.c.b16 %v305, %v304
  %v319 = vpack.c.b16 %v307, %v306
  %v320 = vpack.c.b16 %v309, %v308
  %v321 = vpack.c.b16 %v311, %v310
  %v322 = vpack.c.b16 %v313, %v312
  %v323 = vpack.c.b16 %v315, %v314
  %332 = vmatprep.subr.bf16.mxu0 0
  %333 = vmatpush1.bf16.msra.mxu0 %v316
  %334 = vmatprep.subr.bf16.mxu0 0
  %335 = vmatpush1.bf16.msra.mxu0 %v317
  %336 = vmatprep.subr.bf16.mxu0 0
  %337 = vmatpush1.bf16.msra.mxu0 %v318
  %338 = vmatprep.subr.bf16.mxu0 0
  %339 = vmatpush1.bf16.msra.mxu0 %v319
  %340 = vmatprep.subr.bf16.mxu0 0
  %341 = vmatpush1.bf16.msra.mxu0 %v320
  %342 = vmatprep.subr.bf16.mxu0 0
  %343 = vmatpush1.bf16.msra.mxu0 %v321
  %344 = vmatprep.subr.bf16.mxu0 0
  %345 = vmatpush1.bf16.msra.mxu0 %v322
  %346 = vmatprep.subr.bf16.mxu0 0
  %347 = vmatpush1.bf16.msra.mxu0 %v323
  %348 = vmatprep.subr.bf16.mxu0 0
  %349 = vmatpush1.bf16.msra.mxu0 0
  %350 = vmatprep.subr.bf16.mxu0 0
  %351 = vmatpush1.bf16.msra.mxu0 0
  %352 = vmatprep.subr.bf16.mxu0 0
  %353 = vmatpush1.bf16.msra.mxu0 0
  %354 = vmatprep.subr.bf16.mxu0 0
  %355 = vmatpush1.bf16.msra.mxu0 0
  %356 = vmatprep.subr.bf16.mxu0 0
  %357 = vmatpush1.bf16.msra.mxu0 0
  %358 = vmatprep.subr.bf16.mxu0 0
  %359 = vmatpush1.bf16.msra.mxu0 0
  %360 = vmatprep.subr.bf16.mxu0 0
  %361 = vmatpush1.bf16.msra.mxu0 0
  %362 = vmatprep.subr.bf16.mxu0 0
  %363 = vmatpush1.bf16.msra.mxu0 0
  %364 = vmatprep.mubr.bf16.mxu0 0
  %365 = vmatmul.mubr.bf16.gmra.mrb[0].mxu0 %v220
  %v366 = vpop.f32.mrb[0].mxu0
  %v367 = vadd.f32 0.0, %v366
  %v368 = vpop.f32.mrb[0].mxu0
  %v369 = vpop.f32.mrb[0].mxu0
  %v370 = vadd.f32 0.0, %v369
  %v371 = vpop.f32.mrb[0].mxu0
  %372 = vmatprep.mubr.bf16.mxu0 0
  %373 = vmatmul.mubr.bf16.gmra.mrb[0].mxu0 %v221
  %v374 = vpop.f32.mrb[0].mxu0
  %v375 = vadd.f32 0.0, %v374
  %v376 = vpop.f32.mrb[0].mxu0
  %v377 = vpop.f32.mrb[0].mxu0
  %v378 = vadd.f32 0.0, %v377
  %v379 = vpop.f32.mrb[0].mxu0
  %380 = vmatprep.mubr.bf16.mxu0 0
  %381 = vmatmul.mubr.bf16.gmra.mrb[0].mxu0 %v222
  %v382 = vpop.f32.mrb[0].mxu0
  %v383 = vadd.f32 0.0, %v382
  %v384 = vpop.f32.mrb[0].mxu0
  %v385 = vpop.f32.mrb[0].mxu0
  %v386 = vadd.f32 0.0, %v385
  %v387 = vpop.f32.mrb[0].mxu0
  %388 = vmatprep.mubr.bf16.mxu0 0
  %389 = vmatmul.mubr.bf16.gmra.mrb[0].mxu0 %v223
  %v390 = vpop.f32.mrb[0].mxu0
  %v391 = vadd.f32 0.0, %v390
  %v392 = vpop.f32.mrb[0].mxu0
  %v393 = vpop.f32.mrb[0].mxu0
  %v394 = vadd.f32 0.0, %v393
  %v395 = vpop.f32.mrb[0].mxu0
  %396 = vmatprep.mubr.bf16.mxu0 0
  %397 = vmatmul.mubr.bf16.gmra.mrb[0].mxu0 %v224
  %v398 = vpop.f32.mrb[0].mxu0
  %v399 = vadd.f32 0.0, %v398
  %v400 = vpop.f32.mrb[0].mxu0
  %v401 = vpop.f32.mrb[0].mxu0
  %v402 = vadd.f32 0.0, %v401
  %v403 = vpop.f32.mrb[0].mxu0
  %404 = vmatprep.mubr.bf16.mxu0 0
  %405 = vmatmul.mubr.bf16.gmra.mrb[0].mxu0 %v225
  %v406 = vpop.f32.mrb[0].mxu0
  %v407 = vadd.f32 0.0, %v406
  %v408 = vpop.f32.mrb[0].mxu0
  %v409 = vpop.f32.mrb[0].mxu0
  %v410 = vadd.f32 0.0, %v409
  %v411 = vpop.f32.mrb[0].mxu0
  %412 = vmatprep.mubr.bf16.mxu0 0
  %413 = vmatmul.mubr.bf16.gmra.mrb[0].mxu0 %v226
  %v414 = vpop.f32.mrb[0].mxu0
  %v415 = vadd.f32 0.0, %v414
  %v416 = vpop.f32.mrb[0].mxu0
  %v417 = vpop.f32.mrb[0].mxu0
  %v418 = vadd.f32 0.0, %v417
  %v419 = vpop.f32.mrb[0].mxu0
  %420 = vmatprep.mubr.bf16.mxu0 0
  %421 = vmatmul.mubr.bf16.gmra.mrb[0].mxu0 %v227
  %v422 = vpop.f32.mrb[0].mxu0
  %v423 = vadd.f32 0.0, %v422
  %v424 = vpop.f32.mrb[0].mxu0
  %v425 = vpop.f32.mrb[0].mxu0
  %v426 = vadd.f32 0.0, %v425
  %v427 = vpop.f32.mrb[0].mxu0
  %428 = vmatprep.mubr.bf16.mxu0 0
  %429 = vmatmul.mubr.bf16.gmra.mrb[0].mxu0 %v228
  %v430 = vpop.f32.mrb[0].mxu0
  %v431 = vadd.f32 0.0, %v430
  %v432 = vpop.f32.mrb[0].mxu0
  %v433 = vpop.f32.mrb[0].mxu0
  %v434 = vadd.f32 0.0, %v433
  %v435 = vpop.f32.mrb[0].mxu0
  %436 = vmatprep.mubr.bf16.mxu0 0
  %437 = vmatmul.mubr.bf16.gmra.mrb[0].mxu0 %v229
  %v438 = vpop.f32.mrb[0].mxu0
  %v439 = vadd.f32 0.0, %v438
  %v440 = vpop.f32.mrb[0].mxu0
  %v441 = vpop.f32.mrb[0].mxu0
  %v442 = vadd.f32 0.0, %v441
  %v443 = vpop.f32.mrb[0].mxu0
  %444 = vmatprep.mubr.bf16.mxu0 0
  %445 = vmatmul.mubr.bf16.gmra.mrb[0].mxu0 %v230
  %v446 = vpop.f32.mrb[0].mxu0
  %v447 = vadd.f32 0.0, %v446
  %v448 = vpop.f32.mrb[0].mxu0
  %v449 = vpop.f32.mrb[0].mxu0
  %v450 = vadd.f32 0.0, %v449
  %v451 = vpop.f32.mrb[0].mxu0
  %452 = vmatprep.mubr.bf16.mxu0 0
  %453 = vmatmul.mubr.bf16.gmra.mrb[0].mxu0 %v231
  %v454 = vpop.f32.mrb[0].mxu0
  %v455 = vadd.f32 0.0, %v454
  %v456 = vpop.f32.mrb[0].mxu0
  %v457 = vpop.f32.mrb[0].mxu0
  %v458 = vadd.f32 0.0, %v457
  %v459 = vpop.f32.mrb[0].mxu0
  %460 = vmatprep.mubr.bf16.mxu0 0
  %461 = vmatmul.mubr.bf16.gmra.mrb[0].mxu0 %v232
  %v462 = vpop.f32.mrb[0].mxu0
  %v463 = vadd.f32 0.0, %v462
  %v464 = vpop.f32.mrb[0].mxu0
  %v465 = vpop.f32.mrb[0].mxu0
  %v466 = vadd.f32 0.0, %v465
  %v467 = vpop.f32.mrb[0].mxu0
  %468 = vmatprep.mubr.bf16.mxu0 0
  %469 = vmatmul.mubr.bf16.gmra.mrb[0].mxu0 %v233
  %v470 = vpop.f32.mrb[0].mxu0
  %v471 = vadd.f32 0.0, %v470
  %v472 = vpop.f32.mrb[0].mxu0
  %v473 = vpop.f32.mrb[0].mxu0
  %v474 = vadd.f32 0.0, %v473
  %v475 = vpop.f32.mrb[0].mxu0
  %476 = vmatprep.mubr.bf16.mxu0 0
  %477 = vmatmul.mubr.bf16.gmra.mrb[0].mxu0 %v234
  %v478 = vpop.f32.mrb[0].mxu0
  %v479 = vadd.f32 0.0, %v478
  %v480 = vpop.f32.mrb[0].mxu0
  %v481 = vpop.f32.mrb[0].mxu0
  %v482 = vadd.f32 0.0, %v481
  %v483 = vpop.f32.mrb[0].mxu0
  %484 = vmatprep.mubr.bf16.mxu0 0
  %485 = vmatmul.mubr.bf16.gmra.mrb[0].mxu0 %v235
  %v486 = vpop.f32.mrb[0].mxu0
  %v487 = vadd.f32 0.0, %v486
  %v488 = vpop.f32.mrb[0].mxu0
  %v489 = vpop.f32.mrb[0].mxu0
  %v490 = vadd.f32 0.0, %v489
  %v491 = vpop.f32.mrb[0].mxu0
  %492 = vmatprep.mubr.bf16.mxu0 0
  %493 = vmatmul.mubr.bf16.gmra.mrb[0].mxu0 %v236
  %v494 = vpop.f32.mrb[0].mxu0
  %v495 = vadd.f32 0.0, %v494
  %v496 = vpop.f32.mrb[0].mxu0
  %v497 = vpop.f32.mrb[0].mxu0
  %v498 = vadd.f32 0.0, %v497
  %v499 = vpop.f32.mrb[0].mxu0
  %500 = vmatprep.mubr.bf16.mxu0 0
  %501 = vmatmul.mubr.bf16.gmra.mrb[0].mxu0 %v237
  %v502 = vpop.f32.mrb[0].mxu0
  %v503 = vadd.f32 0.0, %v502
  %v504 = vpop.f32.mrb[0].mxu0
  %v505 = vpop.f32.mrb[0].mxu0
  %v506 = vadd.f32 0.0, %v505
  %v507 = vpop.f32.mrb[0].mxu0
  %508 = vmatprep.mubr.bf16.mxu0 0
  %509 = vmatmul.mubr.bf16.gmra.mrb[0].mxu0 %v238
  %v510 = vpop.f32.mrb[0].mxu0
  %v511 = vadd.f32 0.0, %v510
  %v512 = vpop.f32.mrb[0].mxu0
  %v513 = vpop.f32.mrb[0].mxu0
  %v514 = vadd.f32 0.0, %v513
  %v515 = vpop.f32.mrb[0].mxu0
  %516 = vmatprep.mubr.bf16.mxu0 0
  %517 = vmatmul.mubr.bf16.gmra.mrb[0].mxu0 %v239
  %v518 = vpop.f32.mrb[0].mxu0
  %v519 = vadd.f32 0.0, %v518
  %v520 = vpop.f32.mrb[0].mxu0
  %v521 = vpop.f32.mrb[0].mxu0
  %v522 = vadd.f32 0.0, %v521
  %v523 = vpop.f32.mrb[0].mxu0
  %524 = vmatprep.mubr.bf16.mxu0 0
  %525 = vmatmul.mubr.bf16.gmra.mrb[0].mxu0 %v240
  %v526 = vpop.f32.mrb[0].mxu0
  %v527 = vadd.f32 0.0, %v526
  %v528 = vpop.f32.mrb[0].mxu0
  %v529 = vpop.f32.mrb[0].mxu0
  %v530 = vadd.f32 0.0, %v529
  %v531 = vpop.f32.mrb[0].mxu0
  %532 = vmatprep.mubr.bf16.mxu0 0
  %533 = vmatmul.mubr.bf16.gmra.mrb[0].mxu0 %v241
  %v534 = vpop.f32.mrb[0].mxu0
  %v535 = vadd.f32 0.0, %v534
  %v536 = vpop.f32.mrb[0].mxu0
  %v537 = vpop.f32.mrb[0].mxu0
  %v538 = vadd.f32 0.0, %v537
  %v539 = vpop.f32.mrb[0].mxu0
  %540 = vmatprep.mubr.bf16.mxu0 0
  %541 = vmatmul.mubr.bf16.gmra.mrb[0].mxu0 %v242
  %v542 = vpop.f32.mrb[0].mxu0
  %v543 = vadd.f32 0.0, %v542
  %v544 = vpop.f32.mrb[0].mxu0
  %v545 = vpop.f32.mrb[0].mxu0
  %v546 = vadd.f32 0.0, %v545
  %v547 = vpop.f32.mrb[0].mxu0
  %548 = vmatprep.mubr.bf16.mxu0 0
  %549 = vmatmul.mubr.bf16.gmra.mrb[0].mxu0 %v243
  %v550 = vpop.f32.mrb[0].mxu0
  %v551 = vadd.f32 0.0, %v550
  %v552 = vpop.f32.mrb[0].mxu0
  %v553 = vpop.f32.mrb[0].mxu0
  %v554 = vadd.f32 0.0, %v553
  %v555 = vpop.f32.mrb[0].mxu0
  %556 = vmatprep.mubr.bf16.mxu0 0
  %557 = vmatmul.mubr.bf16.gmra.mrb[0].mxu0 %v244
  %v558 = vpop.f32.mrb[0].mxu0
  %v559 = vadd.f32 0.0, %v558
  %v560 = vpop.f32.mrb[0].mxu0
  %v561 = vpop.f32.mrb[0].mxu0
  %v562 = vadd.f32 0.0, %v561
  %v563 = vpop.f32.mrb[0].mxu0
  %564 = vmatprep.mubr.bf16.mxu0 0
  %565 = vmatmul.mubr.bf16.gmra.mrb[0].mxu0 %v245
  %v566 = vpop.f32.mrb[0].mxu0
  %v567 = vadd.f32 0.0, %v566
  %v568 = vpop.f32.mrb[0].mxu0
  %v569 = vpop.f32.mrb[0].mxu0
  %v570 = vadd.f32 0.0, %v569
  %v571 = vpop.f32.mrb[0].mxu0
  %572 = vmatprep.mubr.bf16.mxu0 0
  %573 = vmatmul.mubr.bf16.gmra.mrb[0].mxu0 %v246
  %v574 = vpop.f32.mrb[0].mxu0
  %v575 = vadd.f32 0.0, %v574
  %v576 = vpop.f32.mrb[0].mxu0
  %v577 = vpop.f32.mrb[0].mxu0
  %v578 = vadd.f32 0.0, %v577
  %v579 = vpop.f32.mrb[0].mxu0
  %580 = vmatprep.mubr.bf16.mxu0 0
  %581 = vmatmul.mubr.bf16.gmra.mrb[0].mxu0 %v247
  %v582 = vpop.f32.mrb[0].mxu0
  %v583 = vadd.f32 0.0, %v582
  %v584 = vpop.f32.mrb[0].mxu0
  %v585 = vpop.f32.mrb[0].mxu0
  %v586 = vadd.f32 0.0, %v585
  %v587 = vpop.f32.mrb[0].mxu0
  %588 = vmatprep.mubr.bf16.mxu0 0
  %589 = vmatmul.mubr.bf16.gmra.mrb[0].mxu0 %v248
  %v590 = vpop.f32.mrb[0].mxu0
  %v591 = vadd.f32 0.0, %v590
  %v592 = vpop.f32.mrb[0].mxu0
  %v593 = vpop.f32.mrb[0].mxu0
  %v594 = vadd.f32 0.0, %v593
  %v595 = vpop.f32.mrb[0].mxu0
  %596 = vmatprep.mubr.bf16.mxu0 0
  %597 = vmatmul.mubr.bf16.gmra.mrb[0].mxu0 %v249
  %v598 = vpop.f32.mrb[0].mxu0
  %v599 = vadd.f32 0.0, %v598
  %v600 = vpop.f32.mrb[0].mxu0
  %v601 = vpop.f32.mrb[0].mxu0
  %v602 = vadd.f32 0.0, %v601
  %v603 = vpop.f32.mrb[0].mxu0
  %604 = vmatprep.mubr.bf16.mxu0 0
  %605 = vmatmul.mubr.bf16.gmra.mrb[0].mxu0 %v250
  %v606 = vpop.f32.mrb[0].mxu0
  %v607 = vadd.f32 0.0, %v606
  %v608 = vpop.f32.mrb[0].mxu0
  %v609 = vpop.f32.mrb[0].mxu0
  %v610 = vadd.f32 0.0, %v609
  %v611 = vpop.f32.mrb[0].mxu0
  %612 = vmatprep.mubr.bf16.mxu0 0
  %613 = vmatmul.mubr.bf16.gmra.mrb[0].mxu0 %v251
  %v614 = vpop.f32.mrb[0].mxu0
  %v615 = vadd.f32 0.0, %v614
  %v616 = vpop.f32.mrb[0].mxu0
  %v617 = vpop.f32.mrb[0].mxu0
  %v618 = vadd.f32 0.0, %v617
  %v619 = vpop.f32.mrb[0].mxu0
  %620 = vdwg.mxu0
  %v621 = vadd.f32 %v367, %v370
  %v622 = vadd.f32 %v621, %v375
  %v623 = vadd.f32 %v622, %v378
  %v624 = vadd.f32 %v623, %v383
  %v625 = vadd.f32 %v624, %v386
  %v626 = vadd.f32 %v625, %v391
  %v627 = vadd.f32 %v626, %v394
  %v628 = vadd.f32 %v627, %v399
  %v629 = vadd.f32 %v628, %v402
  %v630 = vadd.f32 %v629, %v407
  %v631 = vadd.f32 %v630, %v410
  %v632 = vadd.f32 %v631, %v415
  %v633 = vadd.f32 %v632, %v418
  %v634 = vadd.f32 %v633, %v423
  %v635 = vadd.f32 %v634, %v426
  %v636 = vadd.f32 %v635, %v431
  %v637 = vadd.f32 %v636, %v434
  %v638 = vadd.f32 %v637, %v439
  %v639 = vadd.f32 %v638, %v442
  %v640 = vadd.f32 %v639, %v447
  %v641 = vadd.f32 %v640, %v450
  %v642 = vadd.f32 %v641, %v455
  %v643 = vadd.f32 %v642, %v458
  %v644 = vadd.f32 %v643, %v463
  %v645 = vadd.f32 %v644, %v466
  %v646 = vadd.f32 %v645, %v471
  %v647 = vadd.f32 %v646, %v474
  %v648 = vadd.f32 %v647, %v479
  %v649 = vadd.f32 %v648, %v482
  %v650 = vadd.f32 %v649, %v487
  %v651 = vadd.f32 %v650, %v490
  %v652 = vadd.f32 %v651, %v495
  %v653 = vadd.f32 %v652, %v498
  %v654 = vadd.f32 %v653, %v503
  %v655 = vadd.f32 %v654, %v506
  %v656 = vadd.f32 %v655, %v511
  %v657 = vadd.f32 %v656, %v514
  %v658 = vadd.f32 %v657, %v519
  %v659 = vadd.f32 %v658, %v522
  %v660 = vadd.f32 %v659, %v527
  %v661 = vadd.f32 %v660, %v530
  %v662 = vadd.f32 %v661, %v535
  %v663 = vadd.f32 %v662, %v538
  %v664 = vadd.f32 %v663, %v543
  %v665 = vadd.f32 %v664, %v546
  %v666 = vadd.f32 %v665, %v551
  %v667 = vadd.f32 %v666, %v554
  %v668 = vadd.f32 %v667, %v559
  %v669 = vadd.f32 %v668, %v562
  %v670 = vadd.f32 %v669, %v567
  %v671 = vadd.f32 %v670, %v570
  %v672 = vadd.f32 %v671, %v575
  %v673 = vadd.f32 %v672, %v578
  %v674 = vadd.f32 %v673, %v583
  %v675 = vadd.f32 %v674, %v586
  %v676 = vadd.f32 %v675, %v591
  %v677 = vadd.f32 %v676, %v594
  %v678 = vadd.f32 %v677, %v599
  %v679 = vadd.f32 %v678, %v602
  %v680 = vadd.f32 %v679, %v607
  %v681 = vadd.f32 %v680, %v610
  %v682 = vadd.f32 %v681, %v615
  %v683 = vadd.f32 %v682, %v618
  %v684 = vrot.slane %v683, 4
  %v685 = vadd.f32 %v683, %v684
  %v686 = vrot.slane %v685, 2
  %v687 = vadd.f32 %v685, %v686
  %v688 = vrot.slane %v687, 1
  %v689 = vadd.f32 %v687, %v688
  %v690 = vmul.f32 %v689, 0.001953125
  %v691 = vsub.f32 %v367, %v690
  %v692 = vsub.f32 %v370, %v690
  %v693 = vsub.f32 %v375, %v690
  %v694 = vsub.f32 %v378, %v690
  %v695 = vsub.f32 %v383, %v690
  %v696 = vsub.f32 %v386, %v690
  %v697 = vsub.f32 %v391, %v690
  %v698 = vsub.f32 %v394, %v690
  %v699 = vsub.f32 %v399, %v690
  %v700 = vsub.f32 %v402, %v690
  %v701 = vsub.f32 %v407, %v690
  %v702 = vsub.f32 %v410, %v690
  %v703 = vsub.f32 %v415, %v690
  %v704 = vsub.f32 %v418, %v690
  %v705 = vsub.f32 %v423, %v690
  %v706 = vsub.f32 %v426, %v690
  %v707 = vsub.f32 %v431, %v690
  %v708 = vsub.f32 %v434, %v690
  %v709 = vsub.f32 %v439, %v690
  %v710 = vsub.f32 %v442, %v690
  %v711 = vsub.f32 %v447, %v690
  %v712 = vsub.f32 %v450, %v690
  %v713 = vsub.f32 %v455, %v690
  %v714 = vsub.f32 %v458, %v690
  %v715 = vsub.f32 %v463, %v690
  %v716 = vsub.f32 %v466, %v690
  %v717 = vsub.f32 %v471, %v690
  %v718 = vsub.f32 %v474, %v690
  %v719 = vsub.f32 %v479, %v690
  %v720 = vsub.f32 %v482, %v690
  %v721 = vsub.f32 %v487, %v690
  %v722 = vsub.f32 %v490, %v690
  %v723 = vsub.f32 %v495, %v690
  %v724 = vsub.f32 %v498, %v690
  %v725 = vsub.f32 %v503, %v690
  %v726 = vsub.f32 %v506, %v690
  %v727 = vsub.f32 %v511, %v690
  %v728 = vsub.f32 %v514, %v690
  %v729 = vsub.f32 %v519, %v690
  %v730 = vsub.f32 %v522, %v690
  %v731 = vsub.f32 %v527, %v690
  %v732 = vsub.f32 %v530, %v690
  %v733 = vsub.f32 %v535, %v690
  %v734 = vsub.f32 %v538, %v690
  %v735 = vsub.f32 %v543, %v690
  %v736 = vsub.f32 %v546, %v690
  %v737 = vsub.f32 %v551, %v690
  %v738 = vsub.f32 %v554, %v690
  %v739 = vsub.f32 %v559, %v690
  %v740 = vsub.f32 %v562, %v690
  %v741 = vsub.f32 %v567, %v690
  %v742 = vsub.f32 %v570, %v690
  %v743 = vsub.f32 %v575, %v690
  %v744 = vsub.f32 %v578, %v690
  %v745 = vsub.f32 %v583, %v690
  %v746 = vsub.f32 %v586, %v690
  %v747 = vsub.f32 %v591, %v690
  %v748 = vsub.f32 %v594, %v690
  %v749 = vsub.f32 %v599, %v690
  %v750 = vsub.f32 %v602, %v690
  %v751 = vsub.f32 %v607, %v690
  %v752 = vsub.f32 %v610, %v690
  %v753 = vsub.f32 %v615, %v690
  %v754 = vsub.f32 %v618, %v690
  %v755 = vmul.f32 %v691, %v691
  %v756 = vmul.f32 %v692, %v692
  %v757 = vmul.f32 %v693, %v693
  %v758 = vmul.f32 %v694, %v694
  %v759 = vmul.f32 %v695, %v695
  %v760 = vmul.f32 %v696, %v696
  %v761 = vmul.f32 %v697, %v697
  %v762 = vmul.f32 %v698, %v698
  %v763 = vmul.f32 %v699, %v699
  %v764 = vmul.f32 %v700, %v700
  %v765 = vmul.f32 %v701, %v701
  %v766 = vmul.f32 %v702, %v702
  %v767 = vmul.f32 %v703, %v703
  %v768 = vmul.f32 %v704, %v704
  %v769 = vmul.f32 %v705, %v705
  %v770 = vmul.f32 %v706, %v706
  %v771 = vmul.f32 %v707, %v707
  %v772 = vmul.f32 %v708, %v708
  %v773 = vmul.f32 %v709, %v709
  %v774 = vmul.f32 %v710, %v710
  %v775 = vmul.f32 %v711, %v711
  %v776 = vmul.f32 %v712, %v712
  %v777 = vmul.f32 %v713, %v713
  %v778 = vmul.f32 %v714, %v714
  %v779 = vmul.f32 %v715, %v715
  %v780 = vmul.f32 %v716, %v716
  %v781 = vmul.f32 %v717, %v717
  %v782 = vmul.f32 %v718, %v718
  %v783 = vmul.f32 %v719, %v719
  %v784 = vmul.f32 %v720, %v720
  %v785 = vmul.f32 %v721, %v721
  %v786 = vmul.f32 %v722, %v722
  %v787 = vmul.f32 %v723, %v723
  %v788 = vmul.f32 %v724, %v724
  %v789 = vmul.f32 %v725, %v725
  %v790 = vmul.f32 %v726, %v726
  %v791 = vmul.f32 %v727, %v727
  %v792 = vmul.f32 %v728, %v728
  %v793 = vmul.f32 %v729, %v729
  %v794 = vmul.f32 %v730, %v730
  %v795 = vmul.f32 %v731, %v731
  %v796 = vmul.f32 %v732, %v732
  %v797 = vmul.f32 %v733, %v733
  %v798 = vmul.f32 %v734, %v734
  %v799 = vmul.f32 %v735, %v735
  %v800 = vmul.f32 %v736, %v736
  %v801 = vmul.f32 %v737, %v737
  %v802 = vmul.f32 %v738, %v738
  %v803 = vmul.f32 %v739, %v739
  %v804 = vmul.f32 %v740, %v740
  %v805 = vmul.f32 %v741, %v741
  %v806 = vmul.f32 %v742, %v742
  %v807 = vmul.f32 %v743, %v743
  %v808 = vmul.f32 %v744, %v744
  %v809 = vmul.f32 %v745, %v745
  %v810 = vmul.f32 %v746, %v746
  %v811 = vmul.f32 %v747, %v747
  %v812 = vmul.f32 %v748, %v748
  %v813 = vmul.f32 %v749, %v749
  %v814 = vmul.f32 %v750, %v750
  %v815 = vmul.f32 %v751, %v751
  %v816 = vmul.f32 %v752, %v752
  %v817 = vmul.f32 %v753, %v753
  %v818 = vmul.f32 %v754, %v754
  %v819 = vadd.f32 %v755, %v756
  %v820 = vadd.f32 %v819, %v757
  %v821 = vadd.f32 %v820, %v758
  %v822 = vadd.f32 %v821, %v759
  %v823 = vadd.f32 %v822, %v760
  %v824 = vadd.f32 %v823, %v761
  %v825 = vadd.f32 %v824, %v762
  %v826 = vadd.f32 %v825, %v763
  %v827 = vadd.f32 %v826, %v764
  %v828 = vadd.f32 %v827, %v765
  %v829 = vadd.f32 %v828, %v766
  %v830 = vadd.f32 %v829, %v767
  %v831 = vadd.f32 %v830, %v768
  %v832 = vadd.f32 %v831, %v769
  %v833 = vadd.f32 %v832, %v770
  %v834 = vadd.f32 %v833, %v771
  %v835 = vadd.f32 %v834, %v772
  %v836 = vadd.f32 %v835, %v773
  %v837 = vadd.f32 %v836, %v774
  %v838 = vadd.f32 %v837, %v775
  %v839 = vadd.f32 %v838, %v776
  %v840 = vadd.f32 %v839, %v777
  %v841 = vadd.f32 %v840, %v778
  %v842 = vadd.f32 %v841, %v779
  %v843 = vadd.f32 %v842, %v780
  %v844 = vadd.f32 %v843, %v781
  %v845 = vadd.f32 %v844, %v782
  %v846 = vadd.f32 %v845, %v783
  %v847 = vadd.f32 %v846, %v784
  %v848 = vadd.f32 %v847, %v785
  %v849 = vadd.f32 %v848, %v786
  %v850 = vadd.f32 %v849, %v787
  %v851 = vadd.f32 %v850, %v788
  %v852 = vadd.f32 %v851, %v789
  %v853 = vadd.f32 %v852, %v790
  %v854 = vadd.f32 %v853, %v791
  %v855 = vadd.f32 %v854, %v792
  %v856 = vadd.f32 %v855, %v793
  %v857 = vadd.f32 %v856, %v794
  %v858 = vadd.f32 %v857, %v795
  %v859 = vadd.f32 %v858, %v796
  %v860 = vadd.f32 %v859, %v797
  %v861 = vadd.f32 %v860, %v798
  %v862 = vadd.f32 %v861, %v799
  %v863 = vadd.f32 %v862, %v800
  %v864 = vadd.f32 %v863, %v801
  %v865 = vadd.f32 %v864, %v802
  %v866 = vadd.f32 %v865, %v803
  %v867 = vadd.f32 %v866, %v804
  %v868 = vadd.f32 %v867, %v805
  %v869 = vadd.f32 %v868, %v806
  %v870 = vadd.f32 %v869, %v807
  %v871 = vadd.f32 %v870, %v808
  %v872 = vadd.f32 %v871, %v809
  %v873 = vadd.f32 %v872, %v810
  %v874 = vadd.f32 %v873, %v811
  %v875 = vadd.f32 %v874, %v812
  %v876 = vadd.f32 %v875, %v813
  %v877 = vadd.f32 %v876, %v814
  %v878 = vadd.f32 %v877, %v815
  %v879 = vadd.f32 %v878, %v816
  %v880 = vadd.f32 %v879, %v817
  %v881 = vadd.f32 %v880, %v818
  %v882 = vrot.slane %v881, 4
  %v883 = vadd.f32 %v881, %v882
  %v884 = vrot.slane %v883, 2
  %v885 = vadd.f32 %v883, %v884
  %v886 = vrot.slane %v885, 1
  %v887 = vadd.f32 %v885, %v886
  %v888 = vmul.f32 %v887, 0.001953125
  %v889 = vadd.f32 %v888, 1e-05
  %v890 = vrsqrt.pop %v889
  %v891 = vmul.f32 %v691, %v890
  %v892 = vmul.f32 %v692, %v890
  %v893 = vmul.f32 %v693, %v890
  %v894 = vmul.f32 %v694, %v890
  %v895 = vmul.f32 %v695, %v890
  %v896 = vmul.f32 %v696, %v890
  %v897 = vmul.f32 %v697, %v890
  %v898 = vmul.f32 %v698, %v890
  %v899 = vmul.f32 %v699, %v890
  %v900 = vmul.f32 %v700, %v890
  %v901 = vmul.f32 %v701, %v890
  %v902 = vmul.f32 %v702, %v890
  %v903 = vmul.f32 %v703, %v890
  %v904 = vmul.f32 %v704, %v890
  %v905 = vmul.f32 %v705, %v890
  %v906 = vmul.f32 %v706, %v890
  %v907 = vmul.f32 %v707, %v890
  %v908 = vmul.f32 %v708, %v890
  %v909 = vmul.f32 %v709, %v890
  %v910 = vmul.f32 %v710, %v890
  %v911 = vmul.f32 %v711, %v890
  %v912 = vmul.f32 %v712, %v890
  %v913 = vmul.f32 %v713, %v890
  %v914 = vmul.f32 %v714, %v890
  %v915 = vmul.f32 %v715, %v890
  %v916 = vmul.f32 %v716, %v890
  %v917 = vmul.f32 %v717, %v890
  %v918 = vmul.f32 %v718, %v890
  %v919 = vmul.f32 %v719, %v890
  %v920 = vmul.f32 %v720, %v890
  %v921 = vmul.f32 %v721, %v890
  %v922 = vmul.f32 %v722, %v890
  %v923 = vmul.f32 %v723, %v890
  %v924 = vmul.f32 %v724, %v890
  %v925 = vmul.f32 %v725, %v890
  %v926 = vmul.f32 %v726, %v890
  %v927 = vmul.f32 %v727, %v890
  %v928 = vmul.f32 %v728, %v890
  %v929 = vmul.f32 %v729, %v890
  %v930 = vmul.f32 %v730, %v890
  %v931 = vmul.f32 %v731, %v890
  %v932 = vmul.f32 %v732, %v890
  %v933 = vmul.f32 %v733, %v890
  %v934 = vmul.f32 %v734, %v890
  %v935 = vmul.f32 %v735, %v890
  %v936 = vmul.f32 %v736, %v890
  %v937 = vmul.f32 %v737, %v890
  %v938 = vmul.f32 %v738, %v890
  %v939 = vmul.f32 %v739, %v890
  %v940 = vmul.f32 %v740, %v890
  %v941 = vmul.f32 %v741, %v890
  %v942 = vmul.f32 %v742, %v890
  %v943 = vmul.f32 %v743, %v890
  %v944 = vmul.f32 %v744, %v890
  %v945 = vmul.f32 %v745, %v890
  %v946 = vmul.f32 %v746, %v890
  %v947 = vmul.f32 %v747, %v890
  %v948 = vmul.f32 %v748, %v890
  %v949 = vmul.f32 %v749, %v890
  %v950 = vmul.f32 %v750, %v890
  %v951 = vmul.f32 %v751, %v890
  %v952 = vmul.f32 %v752, %v890
  %v953 = vmul.f32 %v753, %v890
  %v954 = vmul.f32 %v754, %v890
  %vm955 = vcmp.ge.f32.partialorder %v891, 0.0
  %vm956 = vcmp.ge.f32.partialorder %v892, 0.0
  %vm957 = vcmp.ge.f32.partialorder %v893, 0.0
  %vm958 = vcmp.ge.f32.partialorder %v894, 0.0
  %vm959 = vcmp.ge.f32.partialorder %v895, 0.0
  %vm960 = vcmp.ge.f32.partialorder %v896, 0.0
  %vm961 = vcmp.ge.f32.partialorder %v897, 0.0
  %vm962 = vcmp.ge.f32.partialorder %v898, 0.0
  %vm963 = vcmp.ge.f32.partialorder %v899, 0.0
  %vm964 = vcmp.ge.f32.partialorder %v900, 0.0
  %vm965 = vcmp.ge.f32.partialorder %v901, 0.0
  %vm966 = vcmp.ge.f32.partialorder %v902, 0.0
  %vm967 = vcmp.ge.f32.partialorder %v903, 0.0
  %vm968 = vcmp.ge.f32.partialorder %v904, 0.0
  %vm969 = vcmp.ge.f32.partialorder %v905, 0.0
  %vm970 = vcmp.ge.f32.partialorder %v906, 0.0
  %vm971 = vcmp.ge.f32.partialorder %v907, 0.0
  %vm972 = vcmp.ge.f32.partialorder %v908, 0.0
  %vm973 = vcmp.ge.f32.partialorder %v909, 0.0
  %vm974 = vcmp.ge.f32.partialorder %v910, 0.0
  %vm975 = vcmp.ge.f32.partialorder %v911, 0.0
  %vm976 = vcmp.ge.f32.partialorder %v912, 0.0
  %vm977 = vcmp.ge.f32.partialorder %v913, 0.0
  %vm978 = vcmp.ge.f32.partialorder %v914, 0.0
  %vm979 = vcmp.ge.f32.partialorder %v915, 0.0
  %vm980 = vcmp.ge.f32.partialorder %v916, 0.0
  %vm981 = vcmp.ge.f32.partialorder %v917, 0.0
  %vm982 = vcmp.ge.f32.partialorder %v918, 0.0
  %vm983 = vcmp.ge.f32.partialorder %v919, 0.0
  %vm984 = vcmp.ge.f32.partialorder %v920, 0.0
  %vm985 = vcmp.ge.f32.partialorder %v921, 0.0
  %vm986 = vcmp.ge.f32.partialorder %v922, 0.0
  %vm987 = vcmp.ge.f32.partialorder %v923, 0.0
  %vm988 = vcmp.ge.f32.partialorder %v924, 0.0
  %vm989 = vcmp.ge.f32.partialorder %v925, 0.0
  %vm990 = vcmp.ge.f32.partialorder %v926, 0.0
  %vm991 = vcmp.ge.f32.partialorder %v927, 0.0
  %vm992 = vcmp.ge.f32.partialorder %v928, 0.0
  %vm993 = vcmp.ge.f32.partialorder %v929, 0.0
  %vm994 = vcmp.ge.f32.partialorder %v930, 0.0
  %vm995 = vcmp.ge.f32.partialorder %v931, 0.0
  %vm996 = vcmp.ge.f32.partialorder %v932, 0.0
  %vm997 = vcmp.ge.f32.partialorder %v933, 0.0
  %vm998 = vcmp.ge.f32.partialorder %v934, 0.0
  %vm999 = vcmp.ge.f32.partialorder %v935, 0.0
  %vm1000 = vcmp.ge.f32.partialorder %v936, 0.0
  %vm1001 = vcmp.ge.f32.partialorder %v937, 0.0
  %vm1002 = vcmp.ge.f32.partialorder %v938, 0.0
  %vm1003 = vcmp.ge.f32.partialorder %v939, 0.0
  %vm1004 = vcmp.ge.f32.partialorder %v940, 0.0
  %vm1005 = vcmp.ge.f32.partialorder %v941, 0.0
  %vm1006 = vcmp.ge.f32.partialorder %v942, 0.0
  %vm1007 = vcmp.ge.f32.partialorder %v943, 0.0
  %vm1008 = vcmp.ge.f32.partialorder %v944, 0.0
  %vm1009 = vcmp.ge.f32.partialorder %v945, 0.0
  %vm1010 = vcmp.ge.f32.partialorder %v946, 0.0
  %vm1011 = vcmp.ge.f32.partialorder %v947, 0.0
  %vm1012 = vcmp.ge.f32.partialorder %v948, 0.0
  %vm1013 = vcmp.ge.f32.partialorder %v949, 0.0
  %vm1014 = vcmp.ge.f32.partialorder %v950, 0.0
  %vm1015 = vcmp.ge.f32.partialorder %v951, 0.0
  %vm1016 = vcmp.ge.f32.partialorder %v952, 0.0
  %vm1017 = vcmp.ge.f32.partialorder %v953, 0.0
  %vm1018 = vcmp.ge.f32.partialorder %v954, 0.0
  %v1019 = vmul.f32 %v891, 0.2
  %v1020 = vmul.f32 %v892, 0.2
  %v1021 = vmul.f32 %v893, 0.2
  %v1022 = vmul.f32 %v894, 0.2
  %v1023 = vmul.f32 %v895, 0.2
  %v1024 = vmul.f32 %v896, 0.2
  %v1025 = vmul.f32 %v897, 0.2
  %v1026 = vmul.f32 %v898, 0.2
  %v1027 = vmul.f32 %v899, 0.2
  %v1028 = vmul.f32 %v900, 0.2
  %v1029 = vmul.f32 %v901, 0.2
  %v1030 = vmul.f32 %v902, 0.2
  %v1031 = vmul.f32 %v903, 0.2
  %v1032 = vmul.f32 %v904, 0.2
  %v1033 = vmul.f32 %v905, 0.2
  %v1034 = vmul.f32 %v906, 0.2
  %v1035 = vmul.f32 %v907, 0.2
  %v1036 = vmul.f32 %v908, 0.2
  %v1037 = vmul.f32 %v909, 0.2
  %v1038 = vmul.f32 %v910, 0.2
  %v1039 = vmul.f32 %v911, 0.2
  %v1040 = vmul.f32 %v912, 0.2
  %v1041 = vmul.f32 %v913, 0.2
  %v1042 = vmul.f32 %v914, 0.2
  %v1043 = vmul.f32 %v915, 0.2
  %v1044 = vmul.f32 %v916, 0.2
  %v1045 = vmul.f32 %v917, 0.2
  %v1046 = vmul.f32 %v918, 0.2
  %v1047 = vmul.f32 %v919, 0.2
  %v1048 = vmul.f32 %v920, 0.2
  %v1049 = vmul.f32 %v921, 0.2
  %v1050 = vmul.f32 %v922, 0.2
  %v1051 = vmul.f32 %v923, 0.2
  %v1052 = vmul.f32 %v924, 0.2
  %v1053 = vmul.f32 %v925, 0.2
  %v1054 = vmul.f32 %v926, 0.2
  %v1055 = vmul.f32 %v927, 0.2
  %v1056 = vmul.f32 %v928, 0.2
  %v1057 = vmul.f32 %v929, 0.2
  %v1058 = vmul.f32 %v930, 0.2
  %v1059 = vmul.f32 %v931, 0.2
  %v1060 = vmul.f32 %v932, 0.2
  %v1061 = vmul.f32 %v933, 0.2
  %v1062 = vmul.f32 %v934, 0.2
  %v1063 = vmul.f32 %v935, 0.2
  %v1064 = vmul.f32 %v936, 0.2
  %v1065 = vmul.f32 %v937, 0.2
  %v1066 = vmul.f32 %v938, 0.2
  %v1067 = vmul.f32 %v939, 0.2
  %v1068 = vmul.f32 %v940, 0.2
  %v1069 = vmul.f32 %v941, 0.2
  %v1070 = vmul.f32 %v942, 0.2
  %v1071 = vmul.f32 %v943, 0.2
  %v1072 = vmul.f32 %v944, 0.2
  %v1073 = vmul.f32 %v945, 0.2
  %v1074 = vmul.f32 %v946, 0.2
  %v1075 = vmul.f32 %v947, 0.2
  %v1076 = vmul.f32 %v948, 0.2
  %v1077 = vmul.f32 %v949, 0.2
  %v1078 = vmul.f32 %v950, 0.2
  %v1079 = vmul.f32 %v951, 0.2
  %v1080 = vmul.f32 %v952, 0.2
  %v1081 = vmul.f32 %v953, 0.2
  %v1082 = vmul.f32 %v954, 0.2
  %v1083 = vsel %vm955, %v891, %v1019
  %v1084 = vsel %vm956, %v892, %v1020
  %v1085 = vsel %vm957, %v893, %v1021
  %v1086 = vsel %vm958, %v894, %v1022
  %v1087 = vsel %vm959, %v895, %v1023
  %v1088 = vsel %vm960, %v896, %v1024
  %v1089 = vsel %vm961, %v897, %v1025
  %v1090 = vsel %vm962, %v898, %v1026
  %v1091 = vsel %vm963, %v899, %v1027
  %v1092 = vsel %vm964, %v900, %v1028
  %v1093 = vsel %vm965, %v901, %v1029
  %v1094 = vsel %vm966, %v902, %v1030
  %v1095 = vsel %vm967, %v903, %v1031
  %v1096 = vsel %vm968, %v904, %v1032
  %v1097 = vsel %vm969, %v905, %v1033
  %v1098 = vsel %vm970, %v906, %v1034
  %v1099 = vsel %vm971, %v907, %v1035
  %v1100 = vsel %vm972, %v908, %v1036
  %v1101 = vsel %vm973, %v909, %v1037
  %v1102 = vsel %vm974, %v910, %v1038
  %v1103 = vsel %vm975, %v911, %v1039
  %v1104 = vsel %vm976, %v912, %v1040
  %v1105 = vsel %vm977, %v913, %v1041
  %v1106 = vsel %vm978, %v914, %v1042
  %v1107 = vsel %vm979, %v915, %v1043
  %v1108 = vsel %vm980, %v916, %v1044
  %v1109 = vsel %vm981, %v917, %v1045
  %v1110 = vsel %vm982, %v918, %v1046
  %v1111 = vsel %vm983, %v919, %v1047
  %v1112 = vsel %vm984, %v920, %v1048
  %v1113 = vsel %vm985, %v921, %v1049
  %v1114 = vsel %vm986, %v922, %v1050
  %v1115 = vsel %vm987, %v923, %v1051
  %v1116 = vsel %vm988, %v924, %v1052
  %v1117 = vsel %vm989, %v925, %v1053
  %v1118 = vsel %vm990, %v926, %v1054
  %v1119 = vsel %vm991, %v927, %v1055
  %v1120 = vsel %vm992, %v928, %v1056
  %v1121 = vsel %vm993, %v929, %v1057
  %v1122 = vsel %vm994, %v930, %v1058
  %v1123 = vsel %vm995, %v931, %v1059
  %v1124 = vsel %vm996, %v932, %v1060
  %v1125 = vsel %vm997, %v933, %v1061
  %v1126 = vsel %vm998, %v934, %v1062
  %v1127 = vsel %vm999, %v935, %v1063
  %v1128 = vsel %vm1000, %v936, %v1064
  %v1129 = vsel %vm1001, %v937, %v1065
  %v1130 = vsel %vm1002, %v938, %v1066
  %v1131 = vsel %vm1003, %v939, %v1067
  %v1132 = vsel %vm1004, %v940, %v1068
  %v1133 = vsel %vm1005, %v941, %v1069
  %v1134 = vsel %vm1006, %v942, %v1070
  %v1135 = vsel %vm1007, %v943, %v1071
  %v1136 = vsel %vm1008, %v944, %v1072
  %v1137 = vsel %vm1009, %v945, %v1073
  %v1138 = vsel %vm1010, %v946, %v1074
  %v1139 = vsel %vm1011, %v947, %v1075
  %v1140 = vsel %vm1012, %v948, %v1076
  %v1141 = vsel %vm1013, %v949, %v1077
  %v1142 = vsel %vm1014, %v950, %v1078
  %v1143 = vsel %vm1015, %v951, %v1079
  %v1144 = vsel %vm1016, %v952, %v1080
  %v1145 = vsel %vm1017, %v953, %v1081
  %v1146 = vsel %vm1018, %v954, %v1082
  %v1147 = vpack.c.bf16 %v1084, %v1083
  %v1148 = vpack.c.bf16 %v1086, %v1085
  %v1149 = vpack.c.bf16 %v1088, %v1087
  %v1150 = vpack.c.bf16 %v1090, %v1089
  %v1151 = vpack.c.bf16 %v1092, %v1091
  %v1152 = vpack.c.bf16 %v1094, %v1093
  %v1153 = vpack.c.bf16 %v1096, %v1095
  %v1154 = vpack.c.bf16 %v1098, %v1097
  %v1155 = vpack.c.bf16 %v1100, %v1099
  %v1156 = vpack.c.bf16 %v1102, %v1101
  %v1157 = vpack.c.bf16 %v1104, %v1103
  %v1158 = vpack.c.bf16 %v1106, %v1105
  %v1159 = vpack.c.bf16 %v1108, %v1107
  %v1160 = vpack.c.bf16 %v1110, %v1109
  %v1161 = vpack.c.bf16 %v1112, %v1111
  %v1162 = vpack.c.bf16 %v1114, %v1113
  %v1163 = vpack.c.bf16 %v1116, %v1115
  %v1164 = vpack.c.bf16 %v1118, %v1117
  %v1165 = vpack.c.bf16 %v1120, %v1119
  %v1166 = vpack.c.bf16 %v1122, %v1121
  %v1167 = vpack.c.bf16 %v1124, %v1123
  %v1168 = vpack.c.bf16 %v1126, %v1125
  %v1169 = vpack.c.bf16 %v1128, %v1127
  %v1170 = vpack.c.bf16 %v1130, %v1129
  %v1171 = vpack.c.bf16 %v1132, %v1131
  %v1172 = vpack.c.bf16 %v1134, %v1133
  %v1173 = vpack.c.bf16 %v1136, %v1135
  %v1174 = vpack.c.bf16 %v1138, %v1137
  %v1175 = vpack.c.bf16 %v1140, %v1139
  %v1176 = vpack.c.bf16 %v1142, %v1141
  %v1177 = vpack.c.bf16 %v1144, %v1143
  %v1178 = vpack.c.bf16 %v1146, %v1145
  %v1211 = vunpack.c.l.b16 %v1147
  %v1212 = vunpack.c.h.b16 %v1147
  %v1213 = vunpack.c.l.b16 %v1148
  %v1214 = vunpack.c.h.b16 %v1148
  %v1215 = vunpack.c.l.b16 %v1149
  %v1216 = vunpack.c.h.b16 %v1149
  %v1217 = vunpack.c.l.b16 %v1150
  %v1218 = vunpack.c.h.b16 %v1150
  %v1219 = vunpack.c.l.b16 %v1151
  %v1220 = vunpack.c.h.b16 %v1151
  %v1221 = vunpack.c.l.b16 %v1152
  %v1222 = vunpack.c.h.b16 %v1152
  %v1223 = vunpack.c.l.b16 %v1153
  %v1224 = vunpack.c.h.b16 %v1153
  %v1225 = vunpack.c.l.b16 %v1154
  %v1226 = vunpack.c.h.b16 %v1154
  %v1227 = vunpack.c.l.b16 %v1155
  %v1228 = vunpack.c.h.b16 %v1155
  %v1229 = vunpack.c.l.b16 %v1156
  %v1230 = vunpack.c.h.b16 %v1156
  %v1231 = vunpack.c.l.b16 %v1157
  %v1232 = vunpack.c.h.b16 %v1157
  %v1233 = vunpack.c.l.b16 %v1158
  %v1234 = vunpack.c.h.b16 %v1158
  %v1235 = vunpack.c.l.b16 %v1159
  %v1236 = vunpack.c.h.b16 %v1159
  %v1237 = vunpack.c.l.b16 %v1160
  %v1238 = vunpack.c.h.b16 %v1160
  %v1239 = vunpack.c.l.b16 %v1161
  %v1240 = vunpack.c.h.b16 %v1161
  %v1241 = vunpack.c.l.b16 %v1162
  %v1242 = vunpack.c.h.b16 %v1162
  %v1243 = vunpack.c.l.b16 %v1163
  %v1244 = vunpack.c.h.b16 %v1163
  %v1245 = vunpack.c.l.b16 %v1164
  %v1246 = vunpack.c.h.b16 %v1164
  %v1247 = vunpack.c.l.b16 %v1165
  %v1248 = vunpack.c.h.b16 %v1165
  %v1249 = vunpack.c.l.b16 %v1166
  %v1250 = vunpack.c.h.b16 %v1166
  %v1251 = vunpack.c.l.b16 %v1167
  %v1252 = vunpack.c.h.b16 %v1167
  %v1253 = vunpack.c.l.b16 %v1168
  %v1254 = vunpack.c.h.b16 %v1168
  %v1255 = vunpack.c.l.b16 %v1169
  %v1256 = vunpack.c.h.b16 %v1169
  %v1257 = vunpack.c.l.b16 %v1170
  %v1258 = vunpack.c.h.b16 %v1170
  %v1259 = vunpack.c.l.b16 %v1171
  %v1260 = vunpack.c.h.b16 %v1171
  %v1261 = vunpack.c.l.b16 %v1172
  %v1262 = vunpack.c.h.b16 %v1172
  %v1263 = vunpack.c.l.b16 %v1173
  %v1264 = vunpack.c.h.b16 %v1173
  %v1265 = vunpack.c.l.b16 %v1174
  %v1266 = vunpack.c.h.b16 %v1174
  %v1267 = vunpack.c.l.b16 %v1175
  %v1268 = vunpack.c.h.b16 %v1175
  %v1269 = vunpack.c.l.b16 %v1176
  %v1270 = vunpack.c.h.b16 %v1176
  %v1271 = vunpack.c.l.b16 %v1177
  %v1272 = vunpack.c.h.b16 %v1177
  %v1273 = vunpack.c.l.b16 %v1178
  %v1274 = vunpack.c.h.b16 %v1178
  %v1275 = vpack.c.b16 %v1211, %v1211
  %v1276 = vpack.c.b16 %v1212, %v1212
  %v1277 = vpack.c.b16 %v1213, %v1213
  %v1278 = vpack.c.b16 %v1214, %v1214
  %v1279 = vpack.c.b16 %v1215, %v1215
  %v1280 = vpack.c.b16 %v1216, %v1216
  %v1281 = vpack.c.b16 %v1217, %v1217
  %v1282 = vpack.c.b16 %v1218, %v1218
  %v1283 = vpack.c.b16 %v1219, %v1219
  %v1284 = vpack.c.b16 %v1220, %v1220
  %v1285 = vpack.c.b16 %v1221, %v1221
  %v1286 = vpack.c.b16 %v1222, %v1222
  %v1287 = vpack.c.b16 %v1223, %v1223
  %v1288 = vpack.c.b16 %v1224, %v1224
  %v1289 = vpack.c.b16 %v1225, %v1225
  %v1290 = vpack.c.b16 %v1226, %v1226
  %v1291 = vpack.c.b16 %v1227, %v1227
  %v1292 = vpack.c.b16 %v1228, %v1228
  %v1293 = vpack.c.b16 %v1229, %v1229
  %v1294 = vpack.c.b16 %v1230, %v1230
  %v1295 = vpack.c.b16 %v1231, %v1231
  %v1296 = vpack.c.b16 %v1232, %v1232
  %v1297 = vpack.c.b16 %v1233, %v1233
  %v1298 = vpack.c.b16 %v1234, %v1234
  %v1299 = vpack.c.b16 %v1235, %v1235
  %v1300 = vpack.c.b16 %v1236, %v1236
  %v1301 = vpack.c.b16 %v1237, %v1237
  %v1302 = vpack.c.b16 %v1238, %v1238
  %v1303 = vpack.c.b16 %v1239, %v1239
  %v1304 = vpack.c.b16 %v1240, %v1240
  %v1305 = vpack.c.b16 %v1241, %v1241
  %v1306 = vpack.c.b16 %v1242, %v1242
  %v1307 = vpack.c.b16 %v1243, %v1243
  %v1308 = vpack.c.b16 %v1244, %v1244
  %v1309 = vpack.c.b16 %v1245, %v1245
  %v1310 = vpack.c.b16 %v1246, %v1246
  %v1311 = vpack.c.b16 %v1247, %v1247
  %v1312 = vpack.c.b16 %v1248, %v1248
  %v1313 = vpack.c.b16 %v1249, %v1249
  %v1314 = vpack.c.b16 %v1250, %v1250
  %v1315 = vpack.c.b16 %v1251, %v1251
  %v1316 = vpack.c.b16 %v1252, %v1252
  %v1317 = vpack.c.b16 %v1253, %v1253
  %v1318 = vpack.c.b16 %v1254, %v1254
  %v1319 = vpack.c.b16 %v1255, %v1255
  %v1320 = vpack.c.b16 %v1256, %v1256
  %v1321 = vpack.c.b16 %v1257, %v1257
  %v1322 = vpack.c.b16 %v1258, %v1258
  %v1323 = vpack.c.b16 %v1259, %v1259
  %v1324 = vpack.c.b16 %v1260, %v1260
  %v1325 = vpack.c.b16 %v1261, %v1261
  %v1326 = vpack.c.b16 %v1262, %v1262
  %v1327 = vpack.c.b16 %v1263, %v1263
  %v1328 = vpack.c.b16 %v1264, %v1264
  %v1329 = vpack.c.b16 %v1265, %v1265
  %v1330 = vpack.c.b16 %v1266, %v1266
  %v1331 = vpack.c.b16 %v1267, %v1267
  %v1332 = vpack.c.b16 %v1268, %v1268
  %v1333 = vpack.c.b16 %v1269, %v1269
  %v1334 = vpack.c.b16 %v1270, %v1270
  %v1335 = vpack.c.b16 %v1271, %v1271
  %v1336 = vpack.c.b16 %v1272, %v1272
  %v1337 = vpack.c.b16 %v1273, %v1273
  %v1338 = vpack.c.b16 %v1274, %v1274
  %1403 = vst [vmem:[%s2] sm:$0xf] %v1275
  %1404 = vst [vmem:[%s2 + $0x4] sm:$0xf] %v1276
  %1405 = vst [vmem:[%s2 + $0x8] sm:$0xf] %v1277
  %1406 = vst [vmem:[%s2 + $0xc] sm:$0xf] %v1278
  %1407 = vst [vmem:[%s2 + $0x10] sm:$0xf] %v1279
  %1408 = vst [vmem:[%s2 + $0x14] sm:$0xf] %v1280
  %1409 = vst [vmem:[%s2 + $0x18] sm:$0xf] %v1281
  %1410 = vst [vmem:[%s2 + $0x1c] sm:$0xf] %v1282
  %1411 = vst [vmem:[%s2 + $0x20] sm:$0xf] %v1283
  %1412 = vst [vmem:[%s2 + $0x24] sm:$0xf] %v1284
  %1413 = vst [vmem:[%s2 + $0x28] sm:$0xf] %v1285
  %1414 = vst [vmem:[%s2 + $0x2c] sm:$0xf] %v1286
  %1415 = vst [vmem:[%s2 + $0x30] sm:$0xf] %v1287
  %1416 = vst [vmem:[%s2 + $0x34] sm:$0xf] %v1288
  %1417 = vst [vmem:[%s2 + $0x38] sm:$0xf] %v1289
  %1418 = vst [vmem:[%s2 + $0x3c] sm:$0xf] %v1290
  %1419 = vst [vmem:[%s2 + $0x40] sm:$0xf] %v1291
  %1420 = vst [vmem:[%s2 + $0x44] sm:$0xf] %v1292
  %1421 = vst [vmem:[%s2 + $0x48] sm:$0xf] %v1293
  %1422 = vst [vmem:[%s2 + $0x4c] sm:$0xf] %v1294
  %1423 = vst [vmem:[%s2 + $0x50] sm:$0xf] %v1295
  %1424 = vst [vmem:[%s2 + $0x54] sm:$0xf] %v1296
  %1425 = vst [vmem:[%s2 + $0x58] sm:$0xf] %v1297
  %1426 = vst [vmem:[%s2 + $0x5c] sm:$0xf] %v1298
  %1427 = vst [vmem:[%s2 + $0x60] sm:$0xf] %v1299
  %1428 = vst [vmem:[%s2 + $0x64] sm:$0xf] %v1300
  %1429 = vst [vmem:[%s2 + $0x68] sm:$0xf] %v1301
  %1430 = vst [vmem:[%s2 + $0x6c] sm:$0xf] %v1302
  %1431 = vst [vmem:[%s2 + $0x70] sm:$0xf] %v1303
  %1432 = vst [vmem:[%s2 + $0x74] sm:$0xf] %v1304
  %1433 = vst [vmem:[%s2 + $0x78] sm:$0xf] %v1305
  %1434 = vst [vmem:[%s2 + $0x7c] sm:$0xf] %v1306
  %1435 = vst [vmem:[%s2 + $0x80] sm:$0xf] %v1307
  %1436 = vst [vmem:[%s2 + $0x84] sm:$0xf] %v1308
  %1437 = vst [vmem:[%s2 + $0x88] sm:$0xf] %v1309
  %1438 = vst [vmem:[%s2 + $0x8c] sm:$0xf] %v1310
  %1439 = vst [vmem:[%s2 + $0x90] sm:$0xf] %v1311
  %1440 = vst [vmem:[%s2 + $0x94] sm:$0xf] %v1312
  %1441 = vst [vmem:[%s2 + $0x98] sm:$0xf] %v1313
  %1442 = vst [vmem:[%s2 + $0x9c] sm:$0xf] %v1314
  %1443 = vst [vmem:[%s2 + $0xa0] sm:$0xf] %v1315
  %1444 = vst [vmem:[%s2 + $0xa4] sm:$0xf] %v1316
  %1445 = vst [vmem:[%s2 + $0xa8] sm:$0xf] %v1317
  %1446 = vst [vmem:[%s2 + $0xac] sm:$0xf] %v1318
  %1447 = vst [vmem:[%s2 + $0xb0] sm:$0xf] %v1319
  %1448 = vst [vmem:[%s2 + $0xb4] sm:$0xf] %v1320
  %1449 = vst [vmem:[%s2 + $0xb8] sm:$0xf] %v1321
  %1450 = vst [vmem:[%s2 + $0xbc] sm:$0xf] %v1322
  %1451 = vst [vmem:[%s2 + $0xc0] sm:$0xf] %v1323
  %1452 = vst [vmem:[%s2 + $0xc4] sm:$0xf] %v1324
  %1453 = vst [vmem:[%s2 + $0xc8] sm:$0xf] %v1325
  %1454 = vst [vmem:[%s2 + $0xcc] sm:$0xf] %v1326
  %1455 = vst [vmem:[%s2 + $0xd0] sm:$0xf] %v1327
  %1456 = vst [vmem:[%s2 + $0xd4] sm:$0xf] %v1328
  %1457 = vst [vmem:[%s2 + $0xd8] sm:$0xf] %v1329
  %1458 = vst [vmem:[%s2 + $0xdc] sm:$0xf] %v1330
  %1459 = vst [vmem:[%s2 + $0xe0] sm:$0xf] %v1331
  %1460 = vst [vmem:[%s2 + $0xe4] sm:$0xf] %v1332
  %1461 = vst [vmem:[%s2 + $0xe8] sm:$0xf] %v1333
  %1462 = vst [vmem:[%s2 + $0xec] sm:$0xf] %v1334
  %1463 = vst [vmem:[%s2 + $0xf0] sm:$0xf] %v1335
  %1464 = vst [vmem:[%s2 + $0xf4] sm:$0xf] %v1336
  %1465 = vst [vmem:[%s2 + $0xf8] sm:$0xf] %v1337
  %1466 = vst [vmem:[%s2 + $0xfc] sm:$0xf] %v1338
  // Predicated region
  $region10: #{netd_forward.6} parent=0 // pred_check
    _
  $region11: #{netd_forward.6} parent=0 // pred_check_branch
    %1468 = sbr.rel (0) target = $region13
  $region12: #{netd_forward.6} parent=0 // pred_region
    _
  $region13: #{netd_forward.6} parent=0 // pred_fallthru
    _
  // Predicated region
  $region14: #{netd_forward.6} parent=0 // pred_check
    _
  $region15: #{netd_forward.6} parent=0 // pred_check_branch
    %1470 = sbr.rel (0) target = $region17
  $region16: #{netd_forward.6} parent=0 // pred_region
    _
  $region17: #{netd_forward.6} parent=0 // pred_fallthru
    _

// kernel: netd_forward.7
$region0: #{netd_forward.7}
  #allocation0 [shape = 'u32[]', space=smem, size = 0x4, offset = 0x4, fixed_abs, tag = 'smem constant byte address 0x4 - core index']
  #allocation1 [shape = 'u32[144,128]{1,0:T(1,128)}', space=vmem, size = 0x12000, scoped, tag = 'internal scratch']
  %s0 = inlined_call_operand.vmem [shape: bf16[128,256], index: 0, kind: input, shape index: {}]
  %s1 = inlined_call_operand.vmem [shape: bf16[256,128], index: 1, kind: input, shape index: {}]
  %s2 = inlined_call_operand.vmem [shape: bf16[128,128], index: 2, kind: output, shape index: {}]
  %s3 = sld [smem:[#allocation0]]
  $region18: #{netd_forward.7} parent=0
    _
  %s5 = ssub.s32 1, %s3
  %s6 = scalar_select 0, %s5, %s3
  // Predicated region
  $region2: #{netd_forward.7} parent=0 // pred_check
    _
  $region3: #{netd_forward.7} parent=0 // pred_check_branch
    %8 = sbr.rel (0) target = $region5
  $region4: #{netd_forward.7} parent=0 // pred_region
    _
  $region5: #{netd_forward.7} parent=0 // pred_fallthru
    _
  // Predicated region
  $region6: #{netd_forward.7} parent=0 // pred_check
    _
  $region7: #{netd_forward.7} parent=0 // pred_check_branch
    %10 = sbr.rel (0) target = $region9
  $region8: #{netd_forward.7} parent=0 // pred_region
    _
  $region9: #{netd_forward.7} parent=0 // pred_fallthru
    _
  %v12 = vld [vmem:[%s0] sm:$0xff]
  %v13 = vld [vmem:[%s0 + $0x8] sm:$0xff]
  %v14 = vld [vmem:[%s0 + $0x10] sm:$0xff]
  %v15 = vld [vmem:[%s0 + $0x18] sm:$0xff]
  %v16 = vld [vmem:[%s0 + $0x20] sm:$0xff]
  %v17 = vld [vmem:[%s0 + $0x28] sm:$0xff]
  %v18 = vld [vmem:[%s0 + $0x30] sm:$0xff]
  %v19 = vld [vmem:[%s0 + $0x38] sm:$0xff]
  %v20 = vld [vmem:[%s0 + $0x40] sm:$0xff]
  %v21 = vld [vmem:[%s0 + $0x48] sm:$0xff]
  %v22 = vld [vmem:[%s0 + $0x50] sm:$0xff]
  %v23 = vld [vmem:[%s0 + $0x58] sm:$0xff]
  %v24 = vld [vmem:[%s0 + $0x60] sm:$0xff]
  %v25 = vld [vmem:[%s0 + $0x68] sm:$0xff]
  %v26 = vld [vmem:[%s0 + $0x70] sm:$0xff]
  %v27 = vld [vmem:[%s0 + $0x78] sm:$0xff]
  %v28 = vld [vmem:[%s1] sm:$0xf]
  %v29 = vld [vmem:[%s1 + $0x4] sm:$0xf]
  %v30 = vld [vmem:[%s1 + $0x8] sm:$0xf]
  %v31 = vld [vmem:[%s1 + $0xc] sm:$0xf]
  %v32 = vld [vmem:[%s1 + $0x10] sm:$0xf]
  %v33 = vld [vmem:[%s1 + $0x14] sm:$0xf]
  %v34 = vld [vmem:[%s1 + $0x18] sm:$0xf]
  %v35 = vld [vmem:[%s1 + $0x1c] sm:$0xf]
  %v36 = vld [vmem:[%s1 + $0x20] sm:$0xf]
  %v37 = vld [vmem:[%s1 + $0x24] sm:$0xf]
  %v38 = vld [vmem:[%s1 + $0x28] sm:$0xf]
  %v39 = vld [vmem:[%s1 + $0x2c] sm:$0xf]
  %v40 = vld [vmem:[%s1 + $0x30] sm:$0xf]
  %v41 = vld [vmem:[%s1 + $0x34] sm:$0xf]
  %v42 = vld [vmem:[%s1 + $0x38] sm:$0xf]
  %v43 = vld [vmem:[%s1 + $0x3c] sm:$0xf]
  %v44 = vld [vmem:[%s1 + $0x40] sm:$0xf]
  %v45 = vld [vmem:[%s1 + $0x44] sm:$0xf]
  %v46 = vld [vmem:[%s1 + $0x48] sm:$0xf]
  %v47 = vld [vmem:[%s1 + $0x4c] sm:$0xf]
  %v48 = vld [vmem:[%s1 + $0x50] sm:$0xf]
  %v49 = vld [vmem:[%s1 + $0x54] sm:$0xf]
  %v50 = vld [vmem:[%s1 + $0x58] sm:$0xf]
  %v51 = vld [vmem:[%s1 + $0x5c] sm:$0xf]
  %v52 = vld [vmem:[%s1 + $0x60] sm:$0xf]
  %v53 = vld [vmem:[%s1 + $0x64] sm:$0xf]
  %v54 = vld [vmem:[%s1 + $0x68] sm:$0xf]
  %v55 = vld [vmem:[%s1 + $0x6c] sm:$0xf]
  %v56 = vld [vmem:[%s1 + $0x70] sm:$0xf]
  %v57 = vld [vmem:[%s1 + $0x74] sm:$0xf]
  %v58 = vld [vmem:[%s1 + $0x78] sm:$0xf]
  %v59 = vld [vmem:[%s1 + $0x7c] sm:$0xf]
  %v76 = vunpack.c.l.b16 %v12
  %v77 = vunpack.c.h.b16 %v12
  %v78 = vunpack.c.l.b16 %v13
  %v79 = vunpack.c.h.b16 %v13
  %v80 = vunpack.c.l.b16 %v14
  %v81 = vunpack.c.h.b16 %v14
  %v82 = vunpack.c.l.b16 %v15
  %v83 = vunpack.c.h.b16 %v15
  %v84 = vunpack.c.l.b16 %v16
  %v85 = vunpack.c.h.b16 %v16
  %v86 = vunpack.c.l.b16 %v17
  %v87 = vunpack.c.h.b16 %v17
  %v88 = vunpack.c.l.b16 %v18
  %v89 = vunpack.c.h.b16 %v18
  %v90 = vunpack.c.l.b16 %v19
  %v91 = vunpack.c.h.b16 %v19
  %v92 = vunpack.c.l.b16 %v20
  %v93 = vunpack.c.h.b16 %v20
  %v94 = vunpack.c.l.b16 %v21
  %v95 = vunpack.c.h.b16 %v21
  %v96 = vunpack.c.l.b16 %v22
  %v97 = vunpack.c.h.b16 %v22
  %v98 = vunpack.c.l.b16 %v23
  %v99 = vunpack.c.h.b16 %v23
  %v100 = vunpack.c.l.b16 %v24
  %v101 = vunpack.c.h.b16 %v24
  %v102 = vunpack.c.l.b16 %v25
  %v103 = vunpack.c.h.b16 %v25
  %v104 = vunpack.c.l.b16 %v26
  %v105 = vunpack.c.h.b16 %v26
  %v106 = vunpack.c.l.b16 %v27
  %v107 = vunpack.c.h.b16 %v27
  %v108 = vpack.c.b16 %v78, %v76
  %v109 = vpack.c.b16 %v79, %v77
  %v110 = vpack.c.b16 %v82, %v80
  %v111 = vpack.c.b16 %v83, %v81
  %v112 = vpack.c.b16 %v86, %v84
  %v113 = vpack.c.b16 %v87, %v85
  %v114 = vpack.c.b16 %v90, %v88
  %v115 = vpack.c.b16 %v91, %v89
  %v116 = vpack.c.b16 %v94, %v92
  %v117 = vpack.c.b16 %v95, %v93
  %v118 = vpack.c.b16 %v98, %v96
  %v119 = vpack.c.b16 %v99, %v97
  %v120 = vpack.c.b16 %v102, %v100
  %v121 = vpack.c.b16 %v103, %v101
  %v122 = vpack.c.b16 %v106, %v104
  %v123 = vpack.c.b16 %v107, %v105
  %v172 = vunpack.c.l.b16 %v28
  %v173 = vunpack.c.l.b16 %v29
  %v174 = vunpack.c.l.b16 %v30
  %v175 = vunpack.c.l.b16 %v31
  %v176 = vunpack.c.l.b16 %v32
  %v177 = vunpack.c.l.b16 %v33
  %v178 = vunpack.c.l.b16 %v34
  %v179 = vunpack.c.l.b16 %v35
  %v180 = vunpack.c.l.b16 %v36
  %v181 = vunpack.c.l.b16 %v37
  %v182 = vunpack.c.l.b16 %v38
  %v183 = vunpack.c.l.b16 %v39
  %v184 = vunpack.c.l.b16 %v40
  %v185 = vunpack.c.l.b16 %v41
  %v186 = vunpack.c.l.b16 %v42
  %v187 = vunpack.c.l.b16 %v43
  %v188 = vunpack.c.l.b16 %v44
  %v189 = vunpack.c.l.b16 %v45
  %v190 = vunpack.c.l.b16 %v46
  %v191 = vunpack.c.l.b16 %v47
  %v192 = vunpack.c.l.b16 %v48
  %v193 = vunpack.c.l.b16 %v49
  %v194 = vunpack.c.l.b16 %v50
  %v195 = vunpack.c.l.b16 %v51
  %v196 = vunpack.c.l.b16 %v52
  %v197 = vunpack.c.l.b16 %v53
  %v198 = vunpack.c.l.b16 %v54
  %v199 = vunpack.c.l.b16 %v55
  %v200 = vunpack.c.l.b16 %v56
  %v201 = vunpack.c.l.b16 %v57
  %v202 = vunpack.c.l.b16 %v58
  %v203 = vunpack.c.l.b16 %v59
  %v204 = vpack.c.b16 %v173, %v172
  %v205 = vpack.c.b16 %v175, %v174
  %v206 = vpack.c.b16 %v177, %v176
  %v207 = vpack.c.b16 %v179, %v178
  %v208 = vpack.c.b16 %v181, %v180
  %v209 = vpack.c.b16 %v183, %v182
  %v210 = vpack.c.b16 %v185, %v184
  %v211 = vpack.c.b16 %v187, %v186
  %v212 = vpack.c.b16 %v189, %v188
  %v213 = vpack.c.b16 %v191, %v190
  %v214 = vpack.c.b16 %v193, %v192
  %v215 = vpack.c.b16 %v195, %v194
  %v216 = vpack.c.b16 %v197, %v196
  %v217 = vpack.c.b16 %v199, %v198
  %v218 = vpack.c.b16 %v201, %v200
  %v219 = vpack.c.b16 %v203, %v202
  %236 = vmatprep.subr.bf16.mxu0 0
  %237 = vmatpush1.bf16.msra.mxu0 %v204
  %238 = vmatprep.subr.bf16.mxu0 0
  %239 = vmatpush1.bf16.msra.mxu0 %v205
  %240 = vmatprep.subr.bf16.mxu0 0
  %241 = vmatpush1.bf16.msra.mxu0 %v206
  %242 = vmatprep.subr.bf16.mxu0 0
  %243 = vmatpush1.bf16.msra.mxu0 %v207
  %244 = vmatprep.subr.bf16.mxu0 0
  %245 = vmatpush1.bf16.msra.mxu0 %v208
  %246 = vmatprep.subr.bf16.mxu0 0
  %247 = vmatpush1.bf16.msra.mxu0 %v209
  %248 = vmatprep.subr.bf16.mxu0 0
  %249 = vmatpush1.bf16.msra.mxu0 %v210
  %250 = vmatprep.subr.bf16.mxu0 0
  %251 = vmatpush1.bf16.msra.mxu0 %v211
  %252 = vmatprep.subr.bf16.mxu0 0
  %253 = vmatpush1.bf16.msra.mxu0 %v212
  %254 = vmatprep.subr.bf16.mxu0 0
  %255 = vmatpush1.bf16.msra.mxu0 %v213
  %256 = vmatprep.subr.bf16.mxu0 0
  %257 = vmatpush1.bf16.msra.mxu0 %v214
  %258 = vmatprep.subr.bf16.mxu0 0
  %259 = vmatpush1.bf16.msra.mxu0 %v215
  %260 = vmatprep.subr.bf16.mxu0 0
  %261 = vmatpush1.bf16.msra.mxu0 %v216
  %262 = vmatprep.subr.bf16.mxu0 0
  %263 = vmatpush1.bf16.msra.mxu0 %v217
  %264 = vmatprep.subr.bf16.mxu0 0
  %265 = vmatpush1.bf16.msra.mxu0 %v218
  %266 = vmatprep.subr.bf16.mxu0 0
  %267 = vmatpush1.bf16.msra.mxu0 %v219
  %268 = vmatprep.mubr.bf16.mxu0 %v109
  %269 = vmatmul.mubr.bf16.gmra.mrb[0].mxu0 %v108
  %v270 = vpop.f32.mrb[0].mxu0
  %v271 = vadd.f32 0.0, %v270
  %v272 = vpop.f32.mrb[0].mxu0
  %v273 = vpop.f32.mrb[0].mxu0
  %v274 = vadd.f32 0.0, %v273
  %v275 = vpop.f32.mrb[0].mxu0
  %276 = vmatprep.mubr.bf16.mxu0 %v111
  %277 = vmatmul.mubr.bf16.gmra.mrb[0].mxu0 %v110
  %v278 = vpop.f32.mrb[0].mxu0
  %v279 = vadd.f32 0.0, %v278
  %v280 = vpop.f32.mrb[0].mxu0
  %v281 = vpop.f32.mrb[0].mxu0
  %v282 = vadd.f32 0.0, %v281
  %v283 = vpop.f32.mrb[0].mxu0
  %284 = vmatprep.mubr.bf16.mxu0 %v113
  %285 = vmatmul.mubr.bf16.gmra.mrb[0].mxu0 %v112
  %v286 = vpop.f32.mrb[0].mxu0
  %v287 = vadd.f32 0.0, %v286
  %v288 = vpop.f32.mrb[0].mxu0
  %v289 = vpop.f32.mrb[0].mxu0
  %v290 = vadd.f32 0.0, %v289
  %v291 = vpop.f32.mrb[0].mxu0
  %292 = vmatprep.mubr.bf16.mxu0 %v115
  %293 = vmatmul.mubr.bf16.gmra.mrb[0].mxu0 %v114
  %v294 = vpop.f32.mrb[0].mxu0
  %v295 = vadd.f32 0.0, %v294
  %v296 = vpop.f32.mrb[0].mxu0
  %v297 = vpop.f32.mrb[0].mxu0
  %v298 = vadd.f32 0.0, %v297
  %v299 = vpop.f32.mrb[0].mxu0
  %300 = vmatprep.mubr.bf16.mxu0 %v117
  %301 = vmatmul.mubr.bf16.gmra.mrb[0].mxu0 %v116
  %v302 = vpop.f32.mrb[0].mxu0
  %v303 = vadd.f32 0.0, %v302
  %v304 = vpop.f32.mrb[0].mxu0
  %v305 = vpop.f32.mrb[0].mxu0
  %v306 = vadd.f32 0.0, %v305
  %v307 = vpop.f32.mrb[0].mxu0
  %308 = vmatprep.mubr.bf16.mxu0 %v119
  %309 = vmatmul.mubr.bf16.gmra.mrb[0].mxu0 %v118
  %v310 = vpop.f32.mrb[0].mxu0
  %v311 = vadd.f32 0.0, %v310
  %v312 = vpop.f32.mrb[0].mxu0
  %v313 = vpop.f32.mrb[0].mxu0
  %v314 = vadd.f32 0.0, %v313
  %v315 = vpop.f32.mrb[0].mxu0
  %316 = vmatprep.mubr.bf16.mxu0 %v121
  %317 = vmatmul.mubr.bf16.gmra.mrb[0].mxu0 %v120
  %v318 = vpop.f32.mrb[0].mxu0
  %v319 = vadd.f32 0.0, %v318
  %v320 = vpop.f32.mrb[0].mxu0
  %v321 = vpop.f32.mrb[0].mxu0
  %v322 = vadd.f32 0.0, %v321
  %v323 = vpop.f32.mrb[0].mxu0
  %324 = vmatprep.mubr.bf16.mxu0 %v123
  %325 = vmatmul.mubr.bf16.gmra.mrb[0].mxu0 %v122
  %v326 = vpop.f32.mrb[0].mxu0
  %v327 = vadd.f32 0.0, %v326
  %v328 = vpop.f32.mrb[0].mxu0
  %v329 = vpop.f32.mrb[0].mxu0
  %v330 = vadd.f32 0.0, %v329
  %v331 = vpop.f32.mrb[0].mxu0
  %332 = vdwg.mxu0
  %v333 = vadd.f32 %v271, %v274
  %v334 = vadd.f32 %v333, %v279
  %v335 = vadd.f32 %v334, %v282
  %v336 = vadd.f32 %v335, %v287
  %v337 = vadd.f32 %v336, %v290
  %v338 = vadd.f32 %v337, %v295
  %v339 = vadd.f32 %v338, %v298
  %v340 = vadd.f32 %v339, %v303
  %v341 = vadd.f32 %v340, %v306
  %v342 = vadd.f32 %v341, %v311
  %v343 = vadd.f32 %v342, %v314
  %v344 = vadd.f32 %v343, %v319
  %v345 = vadd.f32 %v344, %v322
  %v346 = vadd.f32 %v345, %v327
  %v347 = vadd.f32 %v346, %v330
  %v348 = vrot.slane %v347, 4
  %v349 = vadd.f32 %v347, %v348
  %v350 = vrot.slane %v349, 2
  %v351 = vadd.f32 %v349, %v350
  %v352 = vrot.slane %v351, 1
  %v353 = vadd.f32 %v351, %v352
  %v354 = vmul.f32 %v353, 0.0078125
  %v355 = vsub.f32 %v271, %v354
  %v356 = vsub.f32 %v274, %v354
  %v357 = vsub.f32 %v279, %v354
  %v358 = vsub.f32 %v282, %v354
  %v359 = vsub.f32 %v287, %v354
  %v360 = vsub.f32 %v290, %v354
  %v361 = vsub.f32 %v295, %v354
  %v362 = vsub.f32 %v298, %v354
  %v363 = vsub.f32 %v303, %v354
  %v364 = vsub.f32 %v306, %v354
  %v365 = vsub.f32 %v311, %v354
  %v366 = vsub.f32 %v314, %v354
  %v367 = vsub.f32 %v319, %v354
  %v368 = vsub.f32 %v322, %v354
  %v369 = vsub.f32 %v327, %v354
  %v370 = vsub.f32 %v330, %v354
  %v371 = vmul.f32 %v355, %v355
  %v372 = vmul.f32 %v356, %v356
  %v373 = vmul.f32 %v357, %v357
  %v374 = vmul.f32 %v358, %v358
  %v375 = vmul.f32 %v359, %v359
  %v376 = vmul.f32 %v360, %v360
  %v377 = vmul.f32 %v361, %v361
  %v378 = vmul.f32 %v362, %v362
  %v379 = vmul.f32 %v363, %v363
  %v380 = vmul.f32 %v364, %v364
  %v381 = vmul.f32 %v365, %v365
  %v382 = vmul.f32 %v366, %v366
  %v383 = vmul.f32 %v367, %v367
  %v384 = vmul.f32 %v368, %v368
  %v385 = vmul.f32 %v369, %v369
  %v386 = vmul.f32 %v370, %v370
  %v387 = vadd.f32 %v371, %v372
  %v388 = vadd.f32 %v387, %v373
  %v389 = vadd.f32 %v388, %v374
  %v390 = vadd.f32 %v389, %v375
  %v391 = vadd.f32 %v390, %v376
  %v392 = vadd.f32 %v391, %v377
  %v393 = vadd.f32 %v392, %v378
  %v394 = vadd.f32 %v393, %v379
  %v395 = vadd.f32 %v394, %v380
  %v396 = vadd.f32 %v395, %v381
  %v397 = vadd.f32 %v396, %v382
  %v398 = vadd.f32 %v397, %v383
  %v399 = vadd.f32 %v398, %v384
  %v400 = vadd.f32 %v399, %v385
  %v401 = vadd.f32 %v400, %v386
  %v402 = vrot.slane %v401, 4
  %v403 = vadd.f32 %v401, %v402
  %v404 = vrot.slane %v403, 2
  %v405 = vadd.f32 %v403, %v404
  %v406 = vrot.slane %v405, 1
  %v407 = vadd.f32 %v405, %v406
  %v408 = vmul.f32 %v407, 0.0078125
  %v409 = vadd.f32 %v408, 1e-05
  %v410 = vrsqrt.pop %v409
  %v411 = vmul.f32 %v355, %v410
  %v412 = vmul.f32 %v356, %v410
  %v413 = vmul.f32 %v357, %v410
  %v414 = vmul.f32 %v358, %v410
  %v415 = vmul.f32 %v359, %v410
  %v416 = vmul.f32 %v360, %v410
  %v417 = vmul.f32 %v361, %v410
  %v418 = vmul.f32 %v362, %v410
  %v419 = vmul.f32 %v363, %v410
  %v420 = vmul.f32 %v364, %v410
  %v421 = vmul.f32 %v365, %v410
  %v422 = vmul.f32 %v366, %v410
  %v423 = vmul.f32 %v367, %v410
  %v424 = vmul.f32 %v368, %v410
  %v425 = vmul.f32 %v369, %v410
  %v426 = vmul.f32 %v370, %v410
  %vm427 = vcmp.ge.f32.partialorder %v411, 0.0
  %vm428 = vcmp.ge.f32.partialorder %v412, 0.0
  %vm429 = vcmp.ge.f32.partialorder %v413, 0.0
  %vm430 = vcmp.ge.f32.partialorder %v414, 0.0
  %vm431 = vcmp.ge.f32.partialorder %v415, 0.0
  %vm432 = vcmp.ge.f32.partialorder %v416, 0.0
  %vm433 = vcmp.ge.f32.partialorder %v417, 0.0
  %vm434 = vcmp.ge.f32.partialorder %v418, 0.0
  %vm435 = vcmp.ge.f32.partialorder %v419, 0.0
  %vm436 = vcmp.ge.f32.partialorder %v420, 0.0
  %vm437 = vcmp.ge.f32.partialorder %v421, 0.0
  %vm438 = vcmp.ge.f32.partialorder %v422, 0.0
  %vm439 = vcmp.ge.f32.partialorder %v423, 0.0
  %vm440 = vcmp.ge.f32.partialorder %v424, 0.0
  %vm441 = vcmp.ge.f32.partialorder %v425, 0.0
  %vm442 = vcmp.ge.f32.partialorder %v426, 0.0
  %v443 = vmul.f32 %v411, 0.2
  %v444 = vmul.f32 %v412, 0.2
  %v445 = vmul.f32 %v413, 0.2
  %v446 = vmul.f32 %v414, 0.2
  %v447 = vmul.f32 %v415, 0.2
  %v448 = vmul.f32 %v416, 0.2
  %v449 = vmul.f32 %v417, 0.2
  %v450 = vmul.f32 %v418, 0.2
  %v451 = vmul.f32 %v419, 0.2
  %v452 = vmul.f32 %v420, 0.2
  %v453 = vmul.f32 %v421, 0.2
  %v454 = vmul.f32 %v422, 0.2
  %v455 = vmul.f32 %v423, 0.2
  %v456 = vmul.f32 %v424, 0.2
  %v457 = vmul.f32 %v425, 0.2
  %v458 = vmul.f32 %v426, 0.2
  %v459 = vsel %vm427, %v411, %v443
  %v460 = vsel %vm428, %v412, %v444
  %v461 = vsel %vm429, %v413, %v445
  %v462 = vsel %vm430, %v414, %v446
  %v463 = vsel %vm431, %v415, %v447
  %v464 = vsel %vm432, %v416, %v448
  %v465 = vsel %vm433, %v417, %v449
  %v466 = vsel %vm434, %v418, %v450
  %v467 = vsel %vm435, %v419, %v451
  %v468 = vsel %vm436, %v420, %v452
  %v469 = vsel %vm437, %v421, %v453
  %v470 = vsel %vm438, %v422, %v454
  %v471 = vsel %vm439, %v423, %v455
  %v472 = vsel %vm440, %v424, %v456
  %v473 = vsel %vm441, %v425, %v457
  %v474 = vsel %vm442, %v426, %v458
  %v475 = vpack.c.bf16 %v460, %v459
  %v476 = vpack.c.bf16 %v462, %v461
  %v477 = vpack.c.bf16 %v464, %v463
  %v478 = vpack.c.bf16 %v466, %v465
  %v479 = vpack.c.bf16 %v468, %v467
  %v480 = vpack.c.bf16 %v470, %v469
  %v481 = vpack.c.bf16 %v472, %v471
  %v482 = vpack.c.bf16 %v474, %v473
  %v491 = vunpack.c.l.b16 %v475
  %v492 = vunpack.c.h.b16 %v475
  %v493 = vunpack.c.l.b16 %v476
  %v494 = vunpack.c.h.b16 %v476
  %v495 = vunpack.c.l.b16 %v477
  %v496 = vunpack.c.h.b16 %v477
  %v497 = vunpack.c.l.b16 %v478
  %v498 = vunpack.c.h.b16 %v478
  %v499 = vunpack.c.l.b16 %v479
  %v500 = vunpack.c.h.b16 %v479
  %v501 = vunpack.c.l.b16 %v480
  %v502 = vunpack.c.h.b16 %v480
  %v503 = vunpack.c.l.b16 %v481
  %v504 = vunpack.c.h.b16 %v481
  %v505 = vunpack.c.l.b16 %v482
  %v506 = vunpack.c.h.b16 %v482
  %v507 = vpack.c.b16 %v491, %v491
  %v508 = vpack.c.b16 %v492, %v492
  %v509 = vpack.c.b16 %v493, %v493
  %v510 = vpack.c.b16 %v494, %v494
  %v511 = vpack.c.b16 %v495, %v495
  %v512 = vpack.c.b16 %v496, %v496
  %v513 = vpack.c.b16 %v497, %v497
  %v514 = vpack.c.b16 %v498, %v498
  %v515 = vpack.c.b16 %v499, %v499
  %v516 = vpack.c.b16 %v500, %v500
  %v517 = vpack.c.b16 %v501, %v501
  %v518 = vpack.c.b16 %v502, %v502
  %v519 = vpack.c.b16 %v503, %v503
  %v520 = vpack.c.b16 %v504, %v504
  %v521 = vpack.c.b16 %v505, %v505
  %v522 = vpack.c.b16 %v506, %v506
  %539 = vst [vmem:[%s2] sm:$0xf] %v507
  %540 = vst [vmem:[%s2 + $0x4] sm:$0xf] %v508
  %541 = vst [vmem:[%s2 + $0x8] sm:$0xf] %v509
  %542 = vst [vmem:[%s2 + $0xc] sm:$0xf] %v510
  %543 = vst [vmem:[%s2 + $0x10] sm:$0xf] %v511
  %544 = vst [vmem:[%s2 + $0x14] sm:$0xf] %v512
  %545 = vst [vmem:[%s2 + $0x18] sm:$0xf] %v513
  %546 = vst [vmem:[%s2 + $0x1c] sm:$0xf] %v514
  %547 = vst [vmem:[%s2 + $0x20] sm:$0xf] %v515
  %548 = vst [vmem:[%s2 + $0x24] sm:$0xf] %v516
  %549 = vst [vmem:[%s2 + $0x28] sm:$0xf] %v517
  %550 = vst [vmem:[%s2 + $0x2c] sm:$0xf] %v518
  %551 = vst [vmem:[%s2 + $0x30] sm:$0xf] %v519
  %552 = vst [vmem:[%s2 + $0x34] sm:$0xf] %v520
  %553 = vst [vmem:[%s2 + $0x38] sm:$0xf] %v521
  %554 = vst [vmem:[%s2 + $0x3c] sm:$0xf] %v522
  // Predicated region
  $region10: #{netd_forward.7} parent=0 // pred_check
    _
  $region11: #{netd_forward.7} parent=0 // pred_check_branch
    %556 = sbr.rel (0) target = $region13
  $region12: #{netd_forward.7} parent=0 // pred_region
    _
  $region13: #{netd_forward.7} parent=0 // pred_fallthru
    _
  // Predicated region
  $region14: #{netd_forward.7} parent=0 // pred_check
    _
  $region15: #{netd_forward.7} parent=0 // pred_check_branch
    %558 = sbr.rel (0) target = $region17
  $region16: #{netd_forward.7} parent=0 // pred_region
    _
  $region17: #{netd_forward.7} parent=0 // pred_fallthru
    _

// kernel: netd_forward.8
$region0: #{netd_forward.8}
  #allocation0 [shape = 'u32[]', space=smem, size = 0x4, offset = 0x4, fixed_abs, tag = 'smem constant byte address 0x4 - core index']
  #allocation1 [shape = 'u32[144,128]{1,0:T(1,128)}', space=vmem, size = 0x12000, scoped, tag = 'internal scratch']
  %s0 = inlined_call_operand.vmem [shape: bf16[32,512], index: 0, kind: input, shape index: {}]
  %s1 = inlined_call_operand.vmem [shape: bf16[512,128], index: 1, kind: input, shape index: {}]
  %s2 = inlined_call_operand.vmem [shape: bf16[32,128], index: 2, kind: output, shape index: {}]
  %s3 = sld [smem:[#allocation0]]
  $region18: #{netd_forward.8} parent=0
    _
  %s5 = ssub.s32 1, %s3
  %s6 = scalar_select 0, %s5, %s3
  // Predicated region
  $region2: #{netd_forward.8} parent=0 // pred_check
    _
  $region3: #{netd_forward.8} parent=0 // pred_check_branch
    %8 = sbr.rel (0) target = $region5
  $region4: #{netd_forward.8} parent=0 // pred_region
    _
  $region5: #{netd_forward.8} parent=0 // pred_fallthru
    _
  // Predicated region
  $region6: #{netd_forward.8} parent=0 // pred_check
    _
  $region7: #{netd_forward.8} parent=0 // pred_check_branch
    %10 = sbr.rel (0) target = $region9
  $region8: #{netd_forward.8} parent=0 // pred_region
    _
  $region9: #{netd_forward.8} parent=0 // pred_fallthru
    _
  %v12 = vld [vmem:[%s0] sm:$0xff]
  %v13 = vld [vmem:[%s0 + $0x8] sm:$0xff]
  %v14 = vld [vmem:[%s0 + $0x10] sm:$0xff]
  %v15 = vld [vmem:[%s0 + $0x18] sm:$0xff]
  %v16 = vld [vmem:[%s0 + $0x20] sm:$0xff]
  %v17 = vld [vmem:[%s0 + $0x28] sm:$0xff]
  %v18 = vld [vmem:[%s0 + $0x30] sm:$0xff]
  %v19 = vld [vmem:[%s0 + $0x38] sm:$0xff]
  %v20 = vld [vmem:[%s1] sm:$0xf]
  %v21 = vld [vmem:[%s1 + $0x4] sm:$0xf]
  %v22 = vld [vmem:[%s1 + $0x8] sm:$0xf]
  %v23 = vld [vmem:[%s1 + $0xc] sm:$0xf]
  %v24 = vld [vmem:[%s1 + $0x10] sm:$0xf]
  %v25 = vld [vmem:[%s1 + $0x14] sm:$0xf]
  %v26 = vld [vmem:[%s1 + $0x18] sm:$0xf]
  %v27 = vld [vmem:[%s1 + $0x1c] sm:$0xf]
  %v28 = vld [vmem:[%s1 + $0x20] sm:$0xf]
  %v29 = vld [vmem:[%s1 + $0x24] sm:$0xf]
  %v30 = vld [vmem:[%s1 + $0x28] sm:$0xf]
  %v31 = vld [vmem:[%s1 + $0x2c] sm:$0xf]
  %v32 = vld [vmem:[%s1 + $0x30] sm:$0xf]
  %v33 = vld [vmem:[%s1 + $0x34] sm:$0xf]
  %v34 = vld [vmem:[%s1 + $0x38] sm:$0xf]
  %v35 = vld [vmem:[%s1 + $0x3c] sm:$0xf]
  %v36 = vld [vmem:[%s1 + $0x40] sm:$0xf]
  %v37 = vld [vmem:[%s1 + $0x44] sm:$0xf]
  %v38 = vld [vmem:[%s1 + $0x48] sm:$0xf]
  %v39 = vld [vmem:[%s1 + $0x4c] sm:$0xf]
  %v40 = vld [vmem:[%s1 + $0x50] sm:$0xf]
  %v41 = vld [vmem:[%s1 + $0x54] sm:$0xf]
  %v42 = vld [vmem:[%s1 + $0x58] sm:$0xf]
  %v43 = vld [vmem:[%s1 + $0x5c] sm:$0xf]
  %v44 = vld [vmem:[%s1 + $0x60] sm:$0xf]
  %v45 = vld [vmem:[%s1 + $0x64] sm:$0xf]
  %v46 = vld [vmem:[%s1 + $0x68] sm:$0xf]
  %v47 = vld [vmem:[%s1 + $0x6c] sm:$0xf]
  %v48 = vld [vmem:[%s1 + $0x70] sm:$0xf]
  %v49 = vld [vmem:[%s1 + $0x74] sm:$0xf]
  %v50 = vld [vmem:[%s1 + $0x78] sm:$0xf]
  %v51 = vld [vmem:[%s1 + $0x7c] sm:$0xf]
  %v52 = vld [vmem:[%s1 + $0x80] sm:$0xf]
  %v53 = vld [vmem:[%s1 + $0x84] sm:$0xf]
  %v54 = vld [vmem:[%s1 + $0x88] sm:$0xf]
  %v55 = vld [vmem:[%s1 + $0x8c] sm:$0xf]
  %v56 = vld [vmem:[%s1 + $0x90] sm:$0xf]
  %v57 = vld [vmem:[%s1 + $0x94] sm:$0xf]
  %v58 = vld [vmem:[%s1 + $0x98] sm:$0xf]
  %v59 = vld [vmem:[%s1 + $0x9c] sm:$0xf]
  %v60 = vld [vmem:[%s1 + $0xa0] sm:$0xf]
  %v61 = vld [vmem:[%s1 + $0xa4] sm:$0xf]
  %v62 = vld [vmem:[%s1 + $0xa8] sm:$0xf]
  %v63 = vld [vmem:[%s1 + $0xac] sm:$0xf]
  %v64 = vld [vmem:[%s1 + $0xb0] sm:$0xf]
  %v65 = vld [vmem:[%s1 + $0xb4] sm:$0xf]
  %v66 = vld [vmem:[%s1 + $0xb8] sm:$0xf]
  %v67 = vld [vmem:[%s1 + $0xbc] sm:$0xf]
  %v68 = vld [vmem:[%s1 + $0xc0] sm:$0xf]
  %v69 = vld [vmem:[%s1 + $0xc4] sm:$0xf]
  %v70 = vld [vmem:[%s1 + $0xc8] sm:$0xf]
  %v71 = vld [vmem:[%s1 + $0xcc] sm:$0xf]
  %v72 = vld [vmem:[%s1 + $0xd0] sm:$0xf]
  %v73 = vld [vmem:[%s1 + $0xd4] sm:$0xf]
  %v74 = vld [vmem:[%s1 + $0xd8] sm:$0xf]
  %v75 = vld [vmem:[%s1 + $0xdc] sm:$0xf]
  %v76 = vld [vmem:[%s1 + $0xe0] sm:$0xf]
  %v77 = vld [vmem:[%s1 + $0xe4] sm:$0xf]
  %v78 = vld [vmem:[%s1 + $0xe8] sm:$0xf]
  %v79 = vld [vmem:[%s1 + $0xec] sm:$0xf]
  %v80 = vld [vmem:[%s1 + $0xf0] sm:$0xf]
  %v81 = vld [vmem:[%s1 + $0xf4] sm:$0xf]
  %v82 = vld [vmem:[%s1 + $0xf8] sm:$0xf]
  %v83 = vld [vmem:[%s1 + $0xfc] sm:$0xf]
  %v92 = vunpack.c.l.b16 %v12
  %v93 = vunpack.c.h.b16 %v12
  %v94 = vunpack.c.l.b16 %v13
  %v95 = vunpack.c.h.b16 %v13
  %v96 = vunpack.c.l.b16 %v14
  %v97 = vunpack.c.h.b16 %v14
  %v98 = vunpack.c.l.b16 %v15
  %v99 = vunpack.c.h.b16 %v15
  %v100 = vunpack.c.l.b16 %v16
  %v101 = vunpack.c.h.b16 %v16
  %v102 = vunpack.c.l.b16 %v17
  %v103 = vunpack.c.h.b16 %v17
  %v104 = vunpack.c.l.b16 %v18
  %v105 = vunpack.c.h.b16 %v18
  %v106 = vunpack.c.l.b16 %v19
  %v107 = vunpack.c.h.b16 %v19
  %v108 = vpack.c.b16 %v96, %v92
  %v109 = vpack.c.b16 %v97, %v93
  %v110 = vpack.c.b16 %v98, %v94
  %v111 = vpack.c.b16 %v99, %v95
  %v112 = vpack.c.b16 %v104, %v100
  %v113 = vpack.c.b16 %v105, %v101
  %v114 = vpack.c.b16 %v106, %v102
  %v115 = vpack.c.b16 %v107, %v103
  %v188 = vunpack.c.l.b16 %v20
  %v189 = vunpack.c.l.b16 %v21
  %v190 = vunpack.c.l.b16 %v22
  %v191 = vunpack.c.l.b16 %v23
  %v192 = vunpack.c.l.b16 %v24
  %v193 = vunpack.c.l.b16 %v25
  %v194 = vunpack.c.l.b16 %v26
  %v195 = vunpack.c.l.b16 %v27
  %v196 = vunpack.c.l.b16 %v28
  %v197 = vunpack.c.l.b16 %v29
  %v198 = vunpack.c.l.b16 %v30
  %v199 = vunpack.c.l.b16 %v31
  %v200 = vunpack.c.l.b16 %v32
  %v201 = vunpack.c.l.b16 %v33
  %v202 = vunpack.c.l.b16 %v34
  %v203 = vunpack.c.l.b16 %v35
  %v204 = vunpack.c.l.b16 %v36
  %v205 = vunpack.c.l.b16 %v37
  %v206 = vunpack.c.l.b16 %v38
  %v207 = vunpack.c.l.b16 %v39
  %v208 = vunpack.c.l.b16 %v40
  %v209 = vunpack.c.l.b16 %v41
  %v210 = vunpack.c.l.b16 %v42
  %v211 = vunpack.c.l.b16 %v43
  %v212 = vunpack.c.l.b16 %v44
  %v213 = vunpack.c.l.b16 %v45
  %v214 = vunpack.c.l.b16 %v46
  %v215 = vunpack.c.l.b16 %v47
  %v216 = vunpack.c.l.b16 %v48
  %v217 = vunpack.c.l.b16 %v49
  %v218 = vunpack.c.l.b16 %v50
  %v219 = vunpack.c.l.b16 %v51
  %v220 = vunpack.c.l.b16 %v52
  %v221 = vunpack.c.l.b16 %v53
  %v222 = vunpack.c.l.b16 %v54
  %v223 = vunpack.c.l.b16 %v55
  %v224 = vunpack.c.l.b16 %v56
  %v225 = vunpack.c.l.b16 %v57
  %v226 = vunpack.c.l.b16 %v58
  %v227 = vunpack.c.l.b16 %v59
  %v228 = vunpack.c.l.b16 %v60
  %v229 = vunpack.c.l.b16 %v61
  %v230 = vunpack.c.l.b16 %v62
  %v231 = vunpack.c.l.b16 %v63
  %v232 = vunpack.c.l.b16 %v64
  %v233 = vunpack.c.l.b16 %v65
  %v234 = vunpack.c.l.b16 %v66
  %v235 = vunpack.c.l.b16 %v67
  %v236 = vunpack.c.l.b16 %v68
  %v237 = vunpack.c.l.b16 %v69
  %v238 = vunpack.c.l.b16 %v70
  %v239 = vunpack.c.l.b16 %v71
  %v240 = vunpack.c.l.b16 %v72
  %v241 = vunpack.c.l.b16 %v73
  %v242 = vunpack.c.l.b16 %v74
  %v243 = vunpack.c.l.b16 %v75
  %v244 = vunpack.c.l.b16 %v76
  %v245 = vunpack.c.l.b16 %v77
  %v246 = vunpack.c.l.b16 %v78
  %v247 = vunpack.c.l.b16 %v79
  %v248 = vunpack.c.l.b16 %v80
  %v249 = vunpack.c.l.b16 %v81
  %v250 = vunpack.c.l.b16 %v82
  %v251 = vunpack.c.l.b16 %v83
  %v252 = vpack.c.b16 %v189, %v188
  %v253 = vpack.c.b16 %v191, %v190
  %v254 = vpack.c.b16 %v193, %v192
  %v255 = vpack.c.b16 %v195, %v194
  %v256 = vpack.c.b16 %v197, %v196
  %v257 = vpack.c.b16 %v199, %v198
  %v258 = vpack.c.b16 %v201, %v200
  %v259 = vpack.c.b16 %v203, %v202
  %v260 = vpack.c.b16 %v205, %v204
  %v261 = vpack.c.b16 %v207, %v206
  %v262 = vpack.c.b16 %v209, %v208
  %v263 = vpack.c.b16 %v211, %v210
  %v264 = vpack.c.b16 %v213, %v212
  %v265 = vpack.c.b16 %v215, %v214
  %v266 = vpack.c.b16 %v217, %v216
  %v267 = vpack.c.b16 %v219, %v218
  %v268 = vpack.c.b16 %v221, %v220
  %v269 = vpack.c.b16 %v223, %v222
  %v270 = vpack.c.b16 %v225, %v224
  %v271 = vpack.c.b16 %v227, %v226
  %v272 = vpack.c.b16 %v229, %v228
  %v273 = vpack.c.b16 %v231, %v230
  %v274 = vpack.c.b16 %v233, %v232
  %v275 = vpack.c.b16 %v235, %v234
  %v276 = vpack.c.b16 %v237, %v236
  %v277 = vpack.c.b16 %v239, %v238
  %v278 = vpack.c.b16 %v241, %v240
  %v279 = vpack.c.b16 %v243, %v242
  %v280 = vpack.c.b16 %v245, %v244
  %v281 = vpack.c.b16 %v247, %v246
  %v282 = vpack.c.b16 %v249, %v248
  %v283 = vpack.c.b16 %v251, %v250
  %316 = vmatprep.subr.bf16.mxu0 0
  %317 = vmatpush1.bf16.msra.mxu0 %v252
  %318 = vmatprep.subr.bf16.mxu0 0
  %319 = vmatpush1.bf16.msra.mxu0 %v253
  %320 = vmatprep.subr.bf16.mxu0 0
  %321 = vmatpush1.bf16.msra.mxu0 %v254
  %322 = vmatprep.subr.bf16.mxu0 0
  %323 = vmatpush1.bf16.msra.mxu0 %v255
  %324 = vmatprep.subr.bf16.mxu0 0
  %325 = vmatpush1.bf16.msra.mxu0 %v256
  %326 = vmatprep.subr.bf16.mxu0 0
  %327 = vmatpush1.bf16.msra.mxu0 %v257
  %328 = vmatprep.subr.bf16.mxu0 0
  %329 = vmatpush1.bf16.msra.mxu0 %v258
  %330 = vmatprep.subr.bf16.mxu0 0
  %331 = vmatpush1.bf16.msra.mxu0 %v259
  %332 = vmatprep.subr.bf16.mxu0 0
  %333 = vmatpush1.bf16.msra.mxu0 %v260
  %334 = vmatprep.subr.bf16.mxu0 0
  %335 = vmatpush1.bf16.msra.mxu0 %v261
  %336 = vmatprep.subr.bf16.mxu0 0
  %337 = vmatpush1.bf16.msra.mxu0 %v262
  %338 = vmatprep.subr.bf16.mxu0 0
  %339 = vmatpush1.bf16.msra.mxu0 %v263
  %340 = vmatprep.subr.bf16.mxu0 0
  %341 = vmatpush1.bf16.msra.mxu0 %v264
  %342 = vmatprep.subr.bf16.mxu0 0
  %343 = vmatpush1.bf16.msra.mxu0 %v265
  %344 = vmatprep.subr.bf16.mxu0 0
  %345 = vmatpush1.bf16.msra.mxu0 %v266
  %346 = vmatprep.subr.bf16.mxu0 0
  %347 = vmatpush1.bf16.msra.mxu0 %v267
  %348 = vmatprep.mubr.bf16.mxu0 %v109
  %349 = vmatmul.mubr.bf16.gmra.mrb[0].mxu0 %v108
  %v350 = vpop.f32.mrb[0].mxu0
  %v351 = vadd.f32 0.0, %v350
  %v352 = vpop.f32.mrb[0].mxu0
  %v353 = vpop.f32.mrb[0].mxu0
  %v354 = vadd.f32 0.0, %v353
  %v355 = vpop.f32.mrb[0].mxu0
  %356 = vmatprep.mubr.bf16.mxu0 %v113
  %357 = vmatmul.mubr.bf16.gmra.mrb[0].mxu0 %v112
  %v358 = vpop.f32.mrb[0].mxu0
  %v359 = vadd.f32 0.0, %v358
  %v360 = vpop.f32.mrb[0].mxu0
  %v361 = vpop.f32.mrb[0].mxu0
  %v362 = vadd.f32 0.0, %v361
  %v363 = vpop.f32.mrb[0].mxu0
  %364 = vdwg.mxu0
  %365 = vmatprep.subr.bf16.mxu0 0
  %366 = vmatpush1.bf16.msra.mxu0 %v268
  %367 = vmatprep.subr.bf16.mxu0 0
  %368 = vmatpush1.bf16.msra.mxu0 %v269
  %369 = vmatprep.subr.bf16.mxu0 0
  %370 = vmatpush1.bf16.msra.mxu0 %v270
  %371 = vmatprep.subr.bf16.mxu0 0
  %372 = vmatpush1.bf16.msra.mxu0 %v271
  %373 = vmatprep.subr.bf16.mxu0 0
  %374 = vmatpush1.bf16.msra.mxu0 %v272
  %375 = vmatprep.subr.bf16.mxu0 0
  %376 = vmatpush1.bf16.msra.mxu0 %v273
  %377 = vmatprep.subr.bf16.mxu0 0
  %378 = vmatpush1.bf16.msra.mxu0 %v274
  %379 = vmatprep.subr.bf16.mxu0 0
  %380 = vmatpush1.bf16.msra.mxu0 %v275
  %381 = vmatprep.subr.bf16.mxu0 0
  %382 = vmatpush1.bf16.msra.mxu0 %v276
  %383 = vmatprep.subr.bf16.mxu0 0
  %384 = vmatpush1.bf16.msra.mxu0 %v277
  %385 = vmatprep.subr.bf16.mxu0 0
  %386 = vmatpush1.bf16.msra.mxu0 %v278
  %387 = vmatprep.subr.bf16.mxu0 0
  %388 = vmatpush1.bf16.msra.mxu0 %v279
  %389 = vmatprep.subr.bf16.mxu0 0
  %390 = vmatpush1.bf16.msra.mxu0 %v280
  %391 = vmatprep.subr.bf16.mxu0 0
  %392 = vmatpush1.bf16.msra.mxu0 %v281
  %393 = vmatprep.subr.bf16.mxu0 0
  %394 = vmatpush1.bf16.msra.mxu0 %v282
  %395 = vmatprep.subr.bf16.mxu0 0
  %396 = vmatpush1.bf16.msra.mxu0 %v283
  %397 = vmatprep.mubr.bf16.mxu0 %v111
  %398 = vmatmul.mubr.bf16.gmra.mrb[0].mxu0 %v110
  %v399 = vpop.f32.mrb[0].mxu0
  %v400 = vadd.f32 %v351, %v399
  %v401 = vpop.f32.mrb[0].mxu0
  %v402 = vpop.f32.mrb[0].mxu0
  %v403 = vadd.f32 %v354, %v402
  %v404 = vpop.f32.mrb[0].mxu0
  %405 = vmatprep.mubr.bf16.mxu0 %v115
  %406 = vmatmul.mubr.bf16.gmra.mrb[0].mxu0 %v114
  %v407 = vpop.f32.mrb[0].mxu0
  %v408 = vadd.f32 %v359, %v407
  %v409 = vpop.f32.mrb[0].mxu0
  %v410 = vpop.f32.mrb[0].mxu0
  %v411 = vadd.f32 %v362, %v410
  %v412 = vpop.f32.mrb[0].mxu0
  %413 = vdwg.mxu0
  %v414 = vadd.f32 %v400, %v403
  %v415 = vadd.f32 %v414, %v408
  %v416 = vadd.f32 %v415, %v411
  %v417 = vrot.slane %v416, 4
  %v418 = vadd.f32 %v416, %v417
  %v419 = vrot.slane %v418, 2
  %v420 = vadd.f32 %v418, %v419
  %v421 = vrot.slane %v420, 1
  %v422 = vadd.f32 %v420, %v421
  %v423 = vmul.f32 %v422, 0.03125
  %v424 = vsub.f32 %v400, %v423
  %v425 = vsub.f32 %v403, %v423
  %v426 = vsub.f32 %v408, %v423
  %v427 = vsub.f32 %v411, %v423
  %v428 = vmul.f32 %v424, %v424
  %v429 = vmul.f32 %v425, %v425
  %v430 = vmul.f32 %v426, %v426
  %v431 = vmul.f32 %v427, %v427
  %v432 = vadd.f32 %v428, %v429
  %v433 = vadd.f32 %v432, %v430
  %v434 = vadd.f32 %v433, %v431
  %v435 = vrot.slane %v434, 4
  %v436 = vadd.f32 %v434, %v435
  %v437 = vrot.slane %v436, 2
  %v438 = vadd.f32 %v436, %v437
  %v439 = vrot.slane %v438, 1
  %v440 = vadd.f32 %v438, %v439
  %v441 = vmul.f32 %v440, 0.03125
  %v442 = vadd.f32 %v441, 1e-05
  %v443 = vrsqrt.pop %v442
  %v444 = vmul.f32 %v424, %v443
  %v445 = vmul.f32 %v425, %v443
  %v446 = vmul.f32 %v426, %v443
  %v447 = vmul.f32 %v427, %v443
  %vm448 = vcmp.ge.f32.partialorder %v444, 0.0
  %vm449 = vcmp.ge.f32.partialorder %v445, 0.0
  %vm450 = vcmp.ge.f32.partialorder %v446, 0.0
  %vm451 = vcmp.ge.f32.partialorder %v447, 0.0
  %v452 = vmul.f32 %v444, 0.2
  %v453 = vmul.f32 %v445, 0.2
  %v454 = vmul.f32 %v446, 0.2
  %v455 = vmul.f32 %v447, 0.2
  %v456 = vsel %vm448, %v444, %v452
  %v457 = vsel %vm449, %v445, %v453
  %v458 = vsel %vm450, %v446, %v454
  %v459 = vsel %vm451, %v447, %v455
  %v460 = vpack.c.bf16 %v457, %v456
  %v461 = vpack.c.bf16 %v459, %v458
  %v464 = vunpack.c.l.b16 %v460
  %v465 = vunpack.c.h.b16 %v460
  %v466 = vunpack.c.l.b16 %v461
  %v467 = vunpack.c.h.b16 %v461
  %v468 = vpack.c.b16 %v464, %v464
  %v469 = vpack.c.b16 %v465, %v465
  %v470 = vpack.c.b16 %v466, %v466
  %v471 = vpack.c.b16 %v467, %v467
  %476 = vst [vmem:[%s2] sm:$0xf] %v468
  %477 = vst [vmem:[%s2 + $0x4] sm:$0xf] %v469
  %478 = vst [vmem:[%s2 + $0x8] sm:$0xf] %v470
  %479 = vst [vmem:[%s2 + $0xc] sm:$0xf] %v471
  // Predicated region
  $region10: #{netd_forward.8} parent=0 // pred_check
    _
  $region11: #{netd_forward.8} parent=0 // pred_check_branch
    %481 = sbr.rel (0) target = $region13
  $region12: #{netd_forward.8} parent=0 // pred_region
    _
  $region13: #{netd_forward.8} parent=0 // pred_fallthru
    _
  // Predicated region
  $region14: #{netd_forward.8} parent=0 // pred_check
    _
  $region15: #{netd_forward.8} parent=0 // pred_check_branch
    %483 = sbr.rel (0) target = $region17
  $region16: #{netd_forward.8} parent=0 // pred_region
    _
  $region17: #{netd_forward.8} parent=0 // pred_fallthru
    _

// kernel: netd_forward.9
$region0: #{netd_forward.9}
  #allocation0 [shape = 'u32[]', space=smem, size = 0x4, offset = 0x4, fixed_abs, tag = 'smem constant byte address 0x4 - core index']
  #allocation1 [shape = 'u32[144,128]{1,0:T(1,128)}', space=vmem, size = 0x12000, scoped, tag = 'internal scratch']
  %s0 = inlined_call_operand.vmem [shape: bf16[8,1024], index: 0, kind: input, shape index: {}]
  %s1 = inlined_call_operand.vmem [shape: bf16[1024,128], index: 1, kind: input, shape index: {}]
  %s2 = inlined_call_operand.vmem [shape: f32[8,128], index: 2, kind: output, shape index: {}]
  %s3 = sld [smem:[#allocation0]]
  $region18: #{netd_forward.9} parent=0
    _
  %s5 = ssub.s32 1, %s3
  %s6 = scalar_select 0, %s5, %s3
  // Predicated region
  $region2: #{netd_forward.9} parent=0 // pred_check
    _
  $region3: #{netd_forward.9} parent=0 // pred_check_branch
    %8 = sbr.rel (0) target = $region5
  $region4: #{netd_forward.9} parent=0 // pred_region
    _
  $region5: #{netd_forward.9} parent=0 // pred_fallthru
    _
  // Predicated region
  $region6: #{netd_forward.9} parent=0 // pred_check
    _
  $region7: #{netd_forward.9} parent=0 // pred_check_branch
    %10 = sbr.rel (0) target = $region9
  $region8: #{netd_forward.9} parent=0 // pred_region
    _
  $region9: #{netd_forward.9} parent=0 // pred_fallthru
    _
  %v12 = vld [vmem:[%s0] sm:$0xff]
  %v13 = vld [vmem:[%s0 + $0x8] sm:$0xff]
  %v14 = vld [vmem:[%s0 + $0x10] sm:$0xff]
  %v15 = vld [vmem:[%s0 + $0x18] sm:$0xff]
  %v16 = vld [vmem:[%s1] sm:$0xf]
  %v17 = vld [vmem:[%s1 + $0x4] sm:$0xf]
  %v18 = vld [vmem:[%s1 + $0x8] sm:$0xf]
  %v19 = vld [vmem:[%s1 + $0xc] sm:$0xf]
  %v20 = vld [vmem:[%s1 + $0x10] sm:$0xf]
  %v21 = vld [vmem:[%s1 + $0x14] sm:$0xf]
  %v22 = vld [vmem:[%s1 + $0x18] sm:$0xf]
  %v23 = vld [vmem:[%s1 + $0x1c] sm:$0xf]
  %v24 = vld [vmem:[%s1 + $0x20] sm:$0xf]
  %v25 = vld [vmem:[%s1 + $0x24] sm:$0xf]
  %v26 = vld [vmem:[%s1 + $0x28] sm:$0xf]
  %v27 = vld [vmem:[%s1 + $0x2c] sm:$0xf]
  %v28 = vld [vmem:[%s1 + $0x30] sm:$0xf]
  %v29 = vld [vmem:[%s1 + $0x34] sm:$0xf]
  %v30 = vld [vmem:[%s1 + $0x38] sm:$0xf]
  %v31 = vld [vmem:[%s1 + $0x3c] sm:$0xf]
  %v32 = vld [vmem:[%s1 + $0x40] sm:$0xf]
  %v33 = vld [vmem:[%s1 + $0x44] sm:$0xf]
  %v34 = vld [vmem:[%s1 + $0x48] sm:$0xf]
  %v35 = vld [vmem:[%s1 + $0x4c] sm:$0xf]
  %v36 = vld [vmem:[%s1 + $0x50] sm:$0xf]
  %v37 = vld [vmem:[%s1 + $0x54] sm:$0xf]
  %v38 = vld [vmem:[%s1 + $0x58] sm:$0xf]
  %v39 = vld [vmem:[%s1 + $0x5c] sm:$0xf]
  %v40 = vld [vmem:[%s1 + $0x60] sm:$0xf]
  %v41 = vld [vmem:[%s1 + $0x64] sm:$0xf]
  %v42 = vld [vmem:[%s1 + $0x68] sm:$0xf]
  %v43 = vld [vmem:[%s1 + $0x6c] sm:$0xf]
  %v44 = vld [vmem:[%s1 + $0x70] sm:$0xf]
  %v45 = vld [vmem:[%s1 + $0x74] sm:$0xf]
  %v46 = vld [vmem:[%s1 + $0x78] sm:$0xf]
  %v47 = vld [vmem:[%s1 + $0x7c] sm:$0xf]
  %v48 = vld [vmem:[%s1 + $0x80] sm:$0xf]
  %v49 = vld [vmem:[%s1 + $0x84] sm:$0xf]
  %v50 = vld [vmem:[%s1 + $0x88] sm:$0xf]
  %v51 = vld [vmem:[%s1 + $0x8c] sm:$0xf]
  %v52 = vld [vmem:[%s1 + $0x90] sm:$0xf]
  %v53 = vld [vmem:[%s1 + $0x94] sm:$0xf]
  %v54 = vld [vmem:[%s1 + $0x98] sm:$0xf]
  %v55 = vld [vmem:[%s1 + $0x9c] sm:$0xf]
  %v56 = vld [vmem:[%s1 + $0xa0] sm:$0xf]
  %v57 = vld [vmem:[%s1 + $0xa4] sm:$0xf]
  %v58 = vld [vmem:[%s1 + $0xa8] sm:$0xf]
  %v59 = vld [vmem:[%s1 + $0xac] sm:$0xf]
  %v60 = vld [vmem:[%s1 + $0xb0] sm:$0xf]
  %v61 = vld [vmem:[%s1 + $0xb4] sm:$0xf]
  %v62 = vld [vmem:[%s1 + $0xb8] sm:$0xf]
  %v63 = vld [vmem:[%s1 + $0xbc] sm:$0xf]
  %v64 = vld [vmem:[%s1 + $0xc0] sm:$0xf]
  %v65 = vld [vmem:[%s1 + $0xc4] sm:$0xf]
  %v66 = vld [vmem:[%s1 + $0xc8] sm:$0xf]
  %v67 = vld [vmem:[%s1 + $0xcc] sm:$0xf]
  %v68 = vld [vmem:[%s1 + $0xd0] sm:$0xf]
  %v69 = vld [vmem:[%s1 + $0xd4] sm:$0xf]
  %v70 = vld [vmem:[%s1 + $0xd8] sm:$0xf]
  %v71 = vld [vmem:[%s1 + $0xdc] sm:$0xf]
  %v72 = vld [vmem:[%s1 + $0xe0] sm:$0xf]
  %v73 = vld [vmem:[%s1 + $0xe4] sm:$0xf]
  %v74 = vld [vmem:[%s1 + $0xe8] sm:$0xf]
  %v75 = vld [vmem:[%s1 + $0xec] sm:$0xf]
  %v76 = vld [vmem:[%s1 + $0xf0] sm:$0xf]
  %v77 = vld [vmem:[%s1 + $0xf4] sm:$0xf]
  %v78 = vld [vmem:[%s1 + $0xf8] sm:$0xf]
  %v79 = vld [vmem:[%s1 + $0xfc] sm:$0xf]
  %v80 = vld [vmem:[%s1 + $0x100] sm:$0xf]
  %v81 = vld [vmem:[%s1 + $0x104] sm:$0xf]
  %v82 = vld [vmem:[%s1 + $0x108] sm:$0xf]
  %v83 = vld [vmem:[%s1 + $0x10c] sm:$0xf]
  %v84 = vld [vmem:[%s1 + $0x110] sm:$0xf]
  %v85 = vld [vmem:[%s1 + $0x114] sm:$0xf]
  %v86 = vld [vmem:[%s1 + $0x118] sm:$0xf]
  %v87 = vld [vmem:[%s1 + $0x11c] sm:$0xf]
  %v88 = vld [vmem:[%s1 + $0x120] sm:$0xf]
  %v89 = vld [vmem:[%s1 + $0x124] sm:$0xf]
  %v90 = vld [vmem:[%s1 + $0x128] sm:$0xf]
  %v91 = vld [vmem:[%s1 + $0x12c] sm:$0xf]
  %v92 = vld [vmem:[%s1 + $0x130] sm:$0xf]
  %v93 = vld [vmem:[%s1 + $0x134] sm:$0xf]
  %v94 = vld [vmem:[%s1 + $0x138] sm:$0xf]
  %v95 = vld [vmem:[%s1 + $0x13c] sm:$0xf]
  %v96 = vld [vmem:[%s1 + $0x140] sm:$0xf]
  %v97 = vld [vmem:[%s1 + $0x144] sm:$0xf]
  %v98 = vld [vmem:[%s1 + $0x148] sm:$0xf]
  %v99 = vld [vmem:[%s1 + $0x14c] sm:$0xf]
  %v100 = vld [vmem:[%s1 + $0x150] sm:$0xf]
  %v101 = vld [vmem:[%s1 + $0x154] sm:$0xf]
  %v102 = vld [vmem:[%s1 + $0x158] sm:$0xf]
  %v103 = vld [vmem:[%s1 + $0x15c] sm:$0xf]
  %v104 = vld [vmem:[%s1 + $0x160] sm:$0xf]
  %v105 = vld [vmem:[%s1 + $0x164] sm:$0xf]
  %v106 = vld [vmem:[%s1 + $0x168] sm:$0xf]
  %v107 = vld [vmem:[%s1 + $0x16c] sm:$0xf]
  %v108 = vld [vmem:[%s1 + $0x170] sm:$0xf]
  %v109 = vld [vmem:[%s1 + $0x174] sm:$0xf]
  %v110 = vld [vmem:[%s1 + $0x178] sm:$0xf]
  %v111 = vld [vmem:[%s1 + $0x17c] sm:$0xf]
  %v112 = vld [vmem:[%s1 + $0x180] sm:$0xf]
  %v113 = vld [vmem:[%s1 + $0x184] sm:$0xf]
  %v114 = vld [vmem:[%s1 + $0x188] sm:$0xf]
  %v115 = vld [vmem:[%s1 + $0x18c] sm:$0xf]
  %v116 = vld [vmem:[%s1 + $0x190] sm:$0xf]
  %v117 = vld [vmem:[%s1 + $0x194] sm:$0xf]
  %v118 = vld [vmem:[%s1 + $0x198] sm:$0xf]
  %v119 = vld [vmem:[%s1 + $0x19c] sm:$0xf]
  %v120 = vld [vmem:[%s1 + $0x1a0] sm:$0xf]
  %v121 = vld [vmem:[%s1 + $0x1a4] sm:$0xf]
  %v122 = vld [vmem:[%s1 + $0x1a8] sm:$0xf]
  %v123 = vld [vmem:[%s1 + $0x1ac] sm:$0xf]
  %v124 = vld [vmem:[%s1 + $0x1b0] sm:$0xf]
  %v125 = vld [vmem:[%s1 + $0x1b4] sm:$0xf]
  %v126 = vld [vmem:[%s1 + $0x1b8] sm:$0xf]
  %v127 = vld [vmem:[%s1 + $0x1bc] sm:$0xf]
  %v128 = vld [vmem:[%s1 + $0x1c0] sm:$0xf]
  %v129 = vld [vmem:[%s1 + $0x1c4] sm:$0xf]
  %v130 = vld [vmem:[%s1 + $0x1c8] sm:$0xf]
  %v131 = vld [vmem:[%s1 + $0x1cc] sm:$0xf]
  %v132 = vld [vmem:[%s1 + $0x1d0] sm:$0xf]
  %v133 = vld [vmem:[%s1 + $0x1d4] sm:$0xf]
  %v134 = vld [vmem:[%s1 + $0x1d8] sm:$0xf]
  %v135 = vld [vmem:[%s1 + $0x1dc] sm:$0xf]
  %v136 = vld [vmem:[%s1 + $0x1e0] sm:$0xf]
  %v137 = vld [vmem:[%s1 + $0x1e4] sm:$0xf]
  %v138 = vld [vmem:[%s1 + $0x1e8] sm:$0xf]
  %v139 = vld [vmem:[%s1 + $0x1ec] sm:$0xf]
  %v140 = vld [vmem:[%s1 + $0x1f0] sm:$0xf]
  %v141 = vld [vmem:[%s1 + $0x1f4] sm:$0xf]
  %v142 = vld [vmem:[%s1 + $0x1f8] sm:$0xf]
  %v143 = vld [vmem:[%s1 + $0x1fc] sm:$0xf]
  %v148 = vunpack.c.l.b16 %v12
  %v149 = vunpack.c.h.b16 %v12
  %v150 = vunpack.c.l.b16 %v13
  %v151 = vunpack.c.h.b16 %v13
  %v152 = vunpack.c.l.b16 %v14
  %v153 = vunpack.c.h.b16 %v14
  %v154 = vunpack.c.l.b16 %v15
  %v155 = vunpack.c.h.b16 %v15
  %v156 = vpack.c.b16 %v148, %v148
  %v157 = vpack.c.b16 %v149, %v149
  %v158 = vpack.c.b16 %v150, %v150
  %v159 = vpack.c.b16 %v151, %v151
  %v160 = vpack.c.b16 %v152, %v152
  %v161 = vpack.c.b16 %v153, %v153
  %v162 = vpack.c.b16 %v154, %v154
  %v163 = vpack.c.b16 %v155, %v155
  %v300 = vunpack.c.l.b16 %v16
  %v301 = vunpack.c.l.b16 %v17
  %v302 = vunpack.c.l.b16 %v18
  %v303 = vunpack.c.l.b16 %v19
  %v304 = vunpack.c.l.b16 %v20
  %v305 = vunpack.c.l.b16 %v21
  %v306 = vunpack.c.l.b16 %v22
  %v307 = vunpack.c.l.b16 %v23
  %v308 = vunpack.c.l.b16 %v24
  %v309 = vunpack.c.l.b16 %v25
  %v310 = vunpack.c.l.b16 %v26
  %v311 = vunpack.c.l.b16 %v27
  %v312 = vunpack.c.l.b16 %v28
  %v313 = vunpack.c.l.b16 %v29
  %v314 = vunpack.c.l.b16 %v30
  %v315 = vunpack.c.l.b16 %v31
  %v316 = vunpack.c.l.b16 %v32
  %v317 = vunpack.c.l.b16 %v33
  %v318 = vunpack.c.l.b16 %v34
  %v319 = vunpack.c.l.b16 %v35
  %v320 = vunpack.c.l.b16 %v36
  %v321 = vunpack.c.l.b16 %v37
  %v322 = vunpack.c.l.b16 %v38
  %v323 = vunpack.c.l.b16 %v39
  %v324 = vunpack.c.l.b16 %v40
  %v325 = vunpack.c.l.b16 %v41
  %v326 = vunpack.c.l.b16 %v42
  %v327 = vunpack.c.l.b16 %v43
  %v328 = vunpack.c.l.b16 %v44
  %v329 = vunpack.c.l.b16 %v45
  %v330 = vunpack.c.l.b16 %v46
  %v331 = vunpack.c.l.b16 %v47
  %v332 = vunpack.c.l.b16 %v48
  %v333 = vunpack.c.l.b16 %v49
  %v334 = vunpack.c.l.b16 %v50
  %v335 = vunpack.c.l.b16 %v51
  %v336 = vunpack.c.l.b16 %v52
  %v337 = vunpack.c.l.b16 %v53
  %v338 = vunpack.c.l.b16 %v54
  %v339 = vunpack.c.l.b16 %v55
  %v340 = vunpack.c.l.b16 %v56
  %v341 = vunpack.c.l.b16 %v57
  %v342 = vunpack.c.l.b16 %v58
  %v343 = vunpack.c.l.b16 %v59
  %v344 = vunpack.c.l.b16 %v60
  %v345 = vunpack.c.l.b16 %v61
  %v346 = vunpack.c.l.b16 %v62
  %v347 = vunpack.c.l.b16 %v63
  %v348 = vunpack.c.l.b16 %v64
  %v349 = vunpack.c.l.b16 %v65
  %v350 = vunpack.c.l.b16 %v66
  %v351 = vunpack.c.l.b16 %v67
  %v352 = vunpack.c.l.b16 %v68
  %v353 = vunpack.c.l.b16 %v69
  %v354 = vunpack.c.l.b16 %v70
  %v355 = vunpack.c.l.b16 %v71
  %v356 = vunpack.c.l.b16 %v72
  %v357 = vunpack.c.l.b16 %v73
  %v358 = vunpack.c.l.b16 %v74
  %v359 = vunpack.c.l.b16 %v75
  %v360 = vunpack.c.l.b16 %v76
  %v361 = vunpack.c.l.b16 %v77
  %v362 = vunpack.c.l.b16 %v78
  %v363 = vunpack.c.l.b16 %v79
  %v364 = vunpack.c.l.b16 %v80
  %v365 = vunpack.c.l.b16 %v81
  %v366 = vunpack.c.l.b16 %v82
  %v367 = vunpack.c.l.b16 %v83
  %v368 = vunpack.c.l.b16 %v84
  %v369 = vunpack.c.l.b16 %v85
  %v370 = vunpack.c.l.b16 %v86
  %v371 = vunpack.c.l.b16 %v87
  %v372 = vunpack.c.l.b16 %v88
  %v373 = vunpack.c.l.b16 %v89
  %v374 = vunpack.c.l.b16 %v90
  %v375 = vunpack.c.l.b16 %v91
  %v376 = vunpack.c.l.b16 %v92
  %v377 = vunpack.c.l.b16 %v93
  %v378 = vunpack.c.l.b16 %v94
  %v379 = vunpack.c.l.b16 %v95
  %v380 = vunpack.c.l.b16 %v96
  %v381 = vunpack.c.l.b16 %v97
  %v382 = vunpack.c.l.b16 %v98
  %v383 = vunpack.c.l.b16 %v99
  %v384 = vunpack.c.l.b16 %v100
  %v385 = vunpack.c.l.b16 %v101
  %v386 = vunpack.c.l.b16 %v102
  %v387 = vunpack.c.l.b16 %v103
  %v388 = vunpack.c.l.b16 %v104
  %v389 = vunpack.c.l.b16 %v105
  %v390 = vunpack.c.l.b16 %v106
  %v391 = vunpack.c.l.b16 %v107
  %v392 = vunpack.c.l.b16 %v108
  %v393 = vunpack.c.l.b16 %v109
  %v394 = vunpack.c.l.b16 %v110
  %v395 = vunpack.c.l.b16 %v111
  %v396 = vunpack.c.l.b16 %v112
  %v397 = vunpack.c.l.b16 %v113
  %v398 = vunpack.c.l.b16 %v114
  %v399 = vunpack.c.l.b16 %v115
  %v400 = vunpack.c.l.b16 %v116
  %v401 = vunpack.c.l.b16 %v117
  %v402 = vunpack.c.l.b16 %v118
  %v403 = vunpack.c.l.b16 %v119
  %v404 = vunpack.c.l.b16 %v120
  %v405 = vunpack.c.l.b16 %v121
  %v406 = vunpack.c.l.b16 %v122
  %v407 = vunpack.c.l.b16 %v123
  %v408 = vunpack.c.l.b16 %v124
  %v409 = vunpack.c.l.b16 %v125
  %v410 = vunpack.c.l.b16 %v126
  %v411 = vunpack.c.l.b16 %v127
  %v412 = vunpack.c.l.b16 %v128
  %v413 = vunpack.c.l.b16 %v129
  %v414 = vunpack.c.l.b16 %v130
  %v415 = vunpack.c.l.b16 %v131
  %v416 = vunpack.c.l.b16 %v132
  %v417 = vunpack.c.l.b16 %v133
  %v418 = vunpack.c.l.b16 %v134
  %v419 = vunpack.c.l.b16 %v135
  %v420 = vunpack.c.l.b16 %v136
  %v421 = vunpack.c.l.b16 %v137
  %v422 = vunpack.c.l.b16 %v138
  %v423 = vunpack.c.l.b16 %v139
  %v424 = vunpack.c.l.b16 %v140
  %v425 = vunpack.c.l.b16 %v141
  %v426 = vunpack.c.l.b16 %v142
  %v427 = vunpack.c.l.b16 %v143
  %v428 = vpack.c.b16 %v301, %v300
  %v429 = vpack.c.b16 %v303, %v302
  %v430 = vpack.c.b16 %v305, %v304
  %v431 = vpack.c.b16 %v307, %v306
  %v432 = vpack.c.b16 %v309, %v308
  %v433 = vpack.c.b16 %v311, %v310
  %v434 = vpack.c.b16 %v313, %v312
  %v435 = vpack.c.b16 %v315, %v314
  %v436 = vpack.c.b16 %v317, %v316
  %v437 = vpack.c.b16 %v319, %v318
  %v438 = vpack.c.b16 %v321, %v320
  %v439 = vpack.c.b16 %v323, %v322
  %v440 = vpack.c.b16 %v325, %v324
  %v441 = vpack.c.b16 %v327, %v326
  %v442 = vpack.c.b16 %v329, %v328
  %v443 = vpack.c.b16 %v331, %v330
  %v444 = vpack.c.b16 %v333, %v332
  %v445 = vpack.c.b16 %v335, %v334
  %v446 = vpack.c.b16 %v337, %v336
  %v447 = vpack.c.b16 %v339, %v338
  %v448 = vpack.c.b16 %v341, %v340
  %v449 = vpack.c.b16 %v343, %v342
  %v450 = vpack.c.b16 %v345, %v344
  %v451 = vpack.c.b16 %v347, %v346
  %v452 = vpack.c.b16 %v349, %v348
  %v453 = vpack.c.b16 %v351, %v350
  %v454 = vpack.c.b16 %v353, %v352
  %v455 = vpack.c.b16 %v355, %v354
  %v456 = vpack.c.b16 %v357, %v356
  %v457 = vpack.c.b16 %v359, %v358
  %v458 = vpack.c.b16 %v361, %v360
  %v459 = vpack.c.b16 %v363, %v362
  %v460 = vpack.c.b16 %v365, %v364
  %v461 = vpack.c.b16 %v367, %v366
  %v462 = vpack.c.b16 %v369, %v368
  %v463 = vpack.c.b16 %v371, %v370
  %v464 = vpack.c.b16 %v373, %v372
  %v465 = vpack.c.b16 %v375, %v374
  %v466 = vpack.c.b16 %v377, %v376
  %v467 = vpack.c.b16 %v379, %v378
  %v468 = vpack.c.b16 %v381, %v380
  %v469 = vpack.c.b16 %v383, %v382
  %v470 = vpack.c.b16 %v385, %v384
  %v471 = vpack.c.b16 %v387, %v386
  %v472 = vpack.c.b16 %v389, %v388
  %v473 = vpack.c.b16 %v391, %v390
  %v474 = vpack.c.b16 %v393, %v392
  %v475 = vpack.c.b16 %v395, %v394
  %v476 = vpack.c.b16 %v397, %v396
  %v477 = vpack.c.b16 %v399, %v398
  %v478 = vpack.c.b16 %v401, %v400
  %v479 = vpack.c.b16 %v403, %v402
  %v480 = vpack.c.b16 %v405, %v404
  %v481 = vpack.c.b16 %v407, %v406
  %v482 = vpack.c.b16 %v409, %v408
  %v483 = vpack.c.b16 %v411, %v410
  %v484 = vpack.c.b16 %v413, %v412
  %v485 = vpack.c.b16 %v415, %v414
  %v486 = vpack.c.b16 %v417, %v416
  %v487 = vpack.c.b16 %v419, %v418
  %v488 = vpack.c.b16 %v421, %v420
  %v489 = vpack.c.b16 %v423, %v422
  %v490 = vpack.c.b16 %v425, %v424
  %v491 = vpack.c.b16 %v427, %v426
  %556 = vmatprep.subr.bf16.mxu0 0
  %557 = vmatpush1.bf16.msra.mxu0 %v428
  %558 = vmatprep.subr.bf16.mxu0 0
  %559 = vmatpush1.bf16.msra.mxu0 %v429
  %560 = vmatprep.subr.bf16.mxu0 0
  %561 = vmatpush1.bf16.msra.mxu0 %v430
  %562 = vmatprep.subr.bf16.mxu0 0
  %563 = vmatpush1.bf16.msra.mxu0 %v431
  %564 = vmatprep.subr.bf16.mxu0 0
  %565 = vmatpush1.bf16.msra.mxu0 %v432
  %566 = vmatprep.subr.bf16.mxu0 0
  %567 = vmatpush1.bf16.msra.mxu0 %v433
  %568 = vmatprep.subr.bf16.mxu0 0
  %569 = vmatpush1.bf16.msra.mxu0 %v434
  %570 = vmatprep.subr.bf16.mxu0 0
  %571 = vmatpush1.bf16.msra.mxu0 %v435
  %572 = vmatprep.subr.bf16.mxu0 0
  %573 = vmatpush1.bf16.msra.mxu0 %v436
  %574 = vmatprep.subr.bf16.mxu0 0
  %575 = vmatpush1.bf16.msra.mxu0 %v437
  %576 = vmatprep.subr.bf16.mxu0 0
  %577 = vmatpush1.bf16.msra.mxu0 %v438
  %578 = vmatprep.subr.bf16.mxu0 0
  %579 = vmatpush1.bf16.msra.mxu0 %v439
  %580 = vmatprep.subr.bf16.mxu0 0
  %581 = vmatpush1.bf16.msra.mxu0 %v440
  %582 = vmatprep.subr.bf16.mxu0 0
  %583 = vmatpush1.bf16.msra.mxu0 %v441
  %584 = vmatprep.subr.bf16.mxu0 0
  %585 = vmatpush1.bf16.msra.mxu0 %v442
  %586 = vmatprep.subr.bf16.mxu0 0
  %587 = vmatpush1.bf16.msra.mxu0 %v443
  %588 = vmatprep.mubr.bf16.mxu0 %v157
  %589 = vmatmul.mubr.bf16.gmra.mrb[0].mxu0 %v156
  %v590 = vpop.f32.mrb[0].mxu0
  %v591 = vadd.f32 0.0, %v590
  %v592 = vpop.f32.mrb[0].mxu0
  %v593 = vpop.f32.mrb[0].mxu0
  %v594 = vpop.f32.mrb[0].mxu0
  %595 = vdwg.mxu0
  %596 = vmatprep.subr.bf16.mxu0 0
  %597 = vmatpush1.bf16.msra.mxu0 %v444
  %598 = vmatprep.subr.bf16.mxu0 0
  %599 = vmatpush1.bf16.msra.mxu0 %v445
  %600 = vmatprep.subr.bf16.mxu0 0
  %601 = vmatpush1.bf16.msra.mxu0 %v446
  %602 = vmatprep.subr.bf16.mxu0 0
  %603 = vmatpush1.bf16.msra.mxu0 %v447
  %604 = vmatprep.subr.bf16.mxu0 0
  %605 = vmatpush1.bf16.msra.mxu0 %v448
  %606 = vmatprep.subr.bf16.mxu0 0
  %607 = vmatpush1.bf16.msra.mxu0 %v449
  %608 = vmatprep.subr.bf16.mxu0 0
  %609 = vmatpush1.bf16.msra.mxu0 %v450
  %610 = vmatprep.subr.bf16.mxu0 0
  %611 = vmatpush1.bf16.msra.mxu0 %v451
  %612 = vmatprep.subr.bf16.mxu0 0
  %613 = vmatpush1.bf16.msra.mxu0 %v452
  %614 = vmatprep.subr.bf16.mxu0 0
  %615 = vmatpush1.bf16.msra.mxu0 %v453
  %616 = vmatprep.subr.bf16.mxu0 0
  %617 = vmatpush1.bf16.msra.mxu0 %v454
  %618 = vmatprep.subr.bf16.mxu0 0
  %619 = vmatpush1.bf16.msra.mxu0 %v455
  %620 = vmatprep.subr.bf16.mxu0 0
  %621 = vmatpush1.bf16.msra.mxu0 %v456
  %622 = vmatprep.subr.bf16.mxu0 0
  %623 = vmatpush1.bf16.msra.mxu0 %v457
  %624 = vmatprep.subr.bf16.mxu0 0
  %625 = vmatpush1.bf16.msra.mxu0 %v458
  %626 = vmatprep.subr.bf16.mxu0 0
  %627 = vmatpush1.bf16.msra.mxu0 %v459
  %628 = vmatprep.mubr.bf16.mxu0 %v159
  %629 = vmatmul.mubr.bf16.gmra.mrb[0].mxu0 %v158
  %v630 = vpop.f32.mrb[0].mxu0
  %v631 = vadd.f32 %v591, %v630
  %v632 = vpop.f32.mrb[0].mxu0
  %v633 = vpop.f32.mrb[0].mxu0
  %v634 = vpop.f32.mrb[0].mxu0
  %635 = vdwg.mxu0
  %636 = vmatprep.subr.bf16.mxu0 0
  %637 = vmatpush1.bf16.msra.mxu0 %v460
  %638 = vmatprep.subr.bf16.mxu0 0
  %639 = vmatpush1.bf16.msra.mxu0 %v461
  %640 = vmatprep.subr.bf16.mxu0 0
  %641 = vmatpush1.bf16.msra.mxu0 %v462
  %642 = vmatprep.subr.bf16.mxu0 0
  %643 = vmatpush1.bf16.msra.mxu0 %v463
  %644 = vmatprep.subr.bf16.mxu0 0
  %645 = vmatpush1.bf16.msra.mxu0 %v464
  %646 = vmatprep.subr.bf16.mxu0 0
  %647 = vmatpush1.bf16.msra.mxu0 %v465
  %648 = vmatprep.subr.bf16.mxu0 0
  %649 = vmatpush1.bf16.msra.mxu0 %v466
  %650 = vmatprep.subr.bf16.mxu0 0
  %651 = vmatpush1.bf16.msra.mxu0 %v467
  %652 = vmatprep.subr.bf16.mxu0 0
  %653 = vmatpush1.bf16.msra.mxu0 %v468
  %654 = vmatprep.subr.bf16.mxu0 0
  %655 = vmatpush1.bf16.msra.mxu0 %v469
  %656 = vmatprep.subr.bf16.mxu0 0
  %657 = vmatpush1.bf16.msra.mxu0 %v470
  %658 = vmatprep.subr.bf16.mxu0 0
  %659 = vmatpush1.bf16.msra.mxu0 %v471
  %660 = vmatprep.subr.bf16.mxu0 0
  %661 = vmatpush1.bf16.msra.mxu0 %v472
  %662 = vmatprep.subr.bf16.mxu0 0
  %663 = vmatpush1.bf16.msra.mxu0 %v473
  %664 = vmatprep.subr.bf16.mxu0 0
  %665 = vmatpush1.bf16.msra.mxu0 %v474
  %666 = vmatprep.subr.bf16.mxu0 0
  %667 = vmatpush1.bf16.msra.mxu0 %v475
  %668 = vmatprep.mubr.bf16.mxu0 %v161
  %669 = vmatmul.mubr.bf16.gmra.mrb[0].mxu0 %v160
  %v670 = vpop.f32.mrb[0].mxu0
  %v671 = vadd.f32 %v631, %v670
  %v672 = vpop.f32.mrb[0].mxu0
  %v673 = vpop.f32.mrb[0].mxu0
  %v674 = vpop.f32.mrb[0].mxu0
  %675 = vdwg.mxu0
  %676 = vmatprep.subr.bf16.mxu0 0
  %677 = vmatpush1.bf16.msra.mxu0 %v476
  %678 = vmatprep.subr.bf16.mxu0 0
  %679 = vmatpush1.bf16.msra.mxu0 %v477
  %680 = vmatprep.subr.bf16.mxu0 0
  %681 = vmatpush1.bf16.msra.mxu0 %v478
  %682 = vmatprep.subr.bf16.mxu0 0
  %683 = vmatpush1.bf16.msra.mxu0 %v479
  %684 = vmatprep.subr.bf16.mxu0 0
  %685 = vmatpush1.bf16.msra.mxu0 %v480
  %686 = vmatprep.subr.bf16.mxu0 0
  %687 = vmatpush1.bf16.msra.mxu0 %v481
  %688 = vmatprep.subr.bf16.mxu0 0
  %689 = vmatpush1.bf16.msra.mxu0 %v482
  %690 = vmatprep.subr.bf16.mxu0 0
  %691 = vmatpush1.bf16.msra.mxu0 %v483
  %692 = vmatprep.subr.bf16.mxu0 0
  %693 = vmatpush1.bf16.msra.mxu0 %v484
  %694 = vmatprep.subr.bf16.mxu0 0
  %695 = vmatpush1.bf16.msra.mxu0 %v485
  %696 = vmatprep.subr.bf16.mxu0 0
  %697 = vmatpush1.bf16.msra.mxu0 %v486
  %698 = vmatprep.subr.bf16.mxu0 0
  %699 = vmatpush1.bf16.msra.mxu0 %v487
  %700 = vmatprep.subr.bf16.mxu0 0
  %701 = vmatpush1.bf16.msra.mxu0 %v488
  %702 = vmatprep.subr.bf16.mxu0 0
  %703 = vmatpush1.bf16.msra.mxu0 %v489
  %704 = vmatprep.subr.bf16.mxu0 0
  %705 = vmatpush1.bf16.msra.mxu0 %v490
  %706 = vmatprep.subr.bf16.mxu0 0
  %707 = vmatpush1.bf16.msra.mxu0 %v491
  %708 = vmatprep.mubr.bf16.mxu0 %v163
  %709 = vmatmul.mubr.bf16.gmra.mrb[0].mxu0 %v162
  %v710 = vpop.f32.mrb[0].mxu0
  %v711 = vadd.f32 %v671, %v710
  %v712 = vpop.f32.mrb[0].mxu0
  %v713 = vpop.f32.mrb[0].mxu0
  %v714 = vpop.f32.mrb[0].mxu0
  %715 = vdwg.mxu0
  %v716 = vxor.u32 %v711, 2147483648
  %v717 = vmul.f32 %v716, 1.442695
  %v718 = vpow.pop %v717
  %v719 = vadd.f32 %v718, 1.0
  %v720 = vrcp.pop %v719
  %v721 = vmul.f32 1.0, %v720
  %722 = vst [vmem:[%s2] sm:$0xff] %v721
  // Predicated region
  $region10: #{netd_forward.9} parent=0 // pred_check
    _
  $region11: #{netd_forward.9} parent=0 // pred_check_branch
    %724 = sbr.rel (0) target = $region13
  $region12: #{netd_forward.9} parent=0 // pred_region
    _
  $region13: #{netd_forward.9} parent=0 // pred_fallthru
    _
  // Predicated region
  $region14: #{netd_forward.9} parent=0 // pred_check
    _
  $region15: #{netd_forward.9} parent=0 // pred_check_branch
    %726 = sbr.rel (0) target = $region17
  $region16: #{netd_forward.9} parent=0 // pred_region
    _
  $region17: #{netd_forward.9} parent=0 // pred_fallthru
    _

</llo_original>
